<compile_context>
chip_gen: v5e
topology: v5e:2x2
jax: 0.10.0
libtpu: 0.0.40
codegen_flags: <defaults>
</compile_context>

<pallas_src>
import numpy as np
import jax
import jax.numpy as jnp
from jax import lax
from jax.experimental import pallas as pl
from jax.experimental.pallas import tpu as pltpu

GROUPS = [1, 2, 2, 3]            # Attention.group
_SQRT2 = 1.4142135623730951
_LN_EPS = 1e-5                   # WithBias_LayerNorm eps
_NEG_INF = -1e30                 # additive off-block mask for the grouped softmax
_BF16 = jnp.bfloat16


# --------------------------------------------------------------------------- #
# In-kernel helpers (pure jnp / lax, all lower on the TPU VPU / MXU / EUP / XLU)
# --------------------------------------------------------------------------- #
def _erf_approx(x):
    # Abramowitz & Stegun 7.1.26 (max abs err ~1.5e-7): matches PyTorch's exact
    # erf-based F.gelu to ~f32 precision with only VPU/EUP ops.
    a1, a2, a3, a4, a5 = (0.254829592, -0.284496736, 1.421413741,
                          -1.453152027, 1.061405429)
    p = 0.3275911
    ax = jnp.abs(x)
    t = 1.0 / (1.0 + p * ax)
    poly = ((((a5 * t + a4) * t + a3) * t + a2) * t + a1) * t
    y = 1.0 - poly * jnp.exp(-ax * ax)
    return jnp.where(x < 0, -y, y)


def _gelu(x):
    return 0.5 * x * (1.0 + _erf_approx(x / _SQRT2))


def _layernorm_cols(x, w, b):
    # WithBias_LayerNorm over channels (rows) for every pixel (column); f32 stats.
    mu = jnp.mean(x, axis=0, keepdims=True)
    xc = x - mu
    var = jnp.mean(xc * xc, axis=0, keepdims=True)       # torch var(unbiased=False)
    return xc * lax.rsqrt(var + _LN_EPS) * w + b


def _bf16(x):
    return x.astype(_BF16)


# --------------------------------------------------------------------------- #
# Kernel factory (closes over static geometry)
# --------------------------------------------------------------------------- #
def _make_kernels(B, C, H, W, hidden):
    L = H * W
    M = B * L
    C3 = 3 * C

    def _dw3x3(x, w9, bias, masks):
        """Depthwise 3x3 conv (stride 1, pad 1) on a channels-major (Cx, M) slab.

        Neighbour access = pltpu.roll lane shift by dy*W + dx (XLU), zeroed at
        image/batch borders by the precomputed (9, M) masks; per-tap channel
        scale w9[:, t] on the VPU.  Column t == flattened torch depthwise tap
        (ky, kx) = (t // 3, t % 3)."""
        acc = jnp.zeros_like(x)
        for t in range(9):
            dy, dx = t // 3 - 1, t % 3 - 1
            k = dy * W + dx
            shifted = x if k == 0 else pltpu.roll(x, shift=(-k) % M, axis=1)
            acc = acc + (shifted * masks[t:t + 1, :]) * w9[:, t:t + 1]
        return acc + bias

    # ------------------------------------------------------------------ #
    # Kernel 1: norm1 -> qkv 1x1 conv -> depthwise 3x3 conv (+ ReGroup feats)
    # ------------------------------------------------------------------ #
    def norm_qkv_dw_kernel(x_ref, ln_w_ref, ln_b_ref, w_ref, b_ref,
                           dw_w_ref, dw_b_ref, mask_ref, qkv_ref, feats_ref):
        # in-kernel transpose to channels-major (C, M): lane axis = pixels
        x_cm = jnp.concatenate([x_ref[b] for b in range(B)], axis=-1)
        y = _layernorm_cols(x_cm, ln_w_ref[...], ln_b_ref[...])
        qkv = jnp.dot(w_ref[...], _bf16(y),
                      preferred_element_type=jnp.float32) + b_ref[...]
        qkv = _dw3x3(qkv, dw_w_ref[...], dw_b_ref[...], mask_ref[...])
        qkv_ref[...] = qkv
        # ReGroup channel features: batch-mean of raw q (before normalize)
        q = qkv[:C]
        f = jnp.zeros((C, L), jnp.float32)
        for b in range(B):
            f = f + q[:, b * L:(b + 1) * L]
        feats_ref[...] = f * (1.0 / B)

    # ------------------------------------------------------------------ #
    # Kernel 2: permute (ReGroup) -> grouped attention -> Intra_CacheModulation
    #           -> project_out -> residual -> norm2 -> FeedForward -> residual
    # ------------------------------------------------------------------ #
    def attn_mod_ffn_kernel(x_ref, qkv_ref, perm_ref, trow_ref, nmask_ref,
                            mask_ref,
                            gate_w_ref, gate_b_ref, down_w_ref, down_b_ref,
                            up_w_ref, up_b_ref, proj_w_ref, proj_b_ref,
                            ln2_w_ref, ln2_b_ref, fin_w_ref, fin_b_ref,
                            fdw_w_ref, fdw_b_ref, fout_w_ref, fout_b_ref,
                            out_ref, pmean_ref):
        x_cm = jnp.concatenate([x_ref[b] for b in range(B)], axis=-1)   # (C, M)
        qkv = qkv_ref[...]
        perm = perm_ref[...]                    # (C, C) one-hot permutation (f32)
        # ReGroup gather realised as a tiny in-VMEM permutation matmul
        q = jnp.dot(perm, qkv[:C], preferred_element_type=jnp.float32)
        k = jnp.dot(perm, qkv[C:2 * C], preferred_element_type=jnp.float32)
        v = jnp.dot(perm, qkv[2 * C:], preferred_element_type=jnp.float32)
        trow = trow_ref[...]                    # (C, 1) per-row temperature
        nmask = nmask_ref[...]                  # (C, C) additive off-block -inf

        out_cols, tmp_cols = [], []
        p_sum = jnp.zeros((C, C), jnp.float32)
        for b in range(B):                      # batch-sliced attention
            s0 = b * L
            qb = q[:, s0:s0 + L]
            kb = k[:, s0:s0 + L]
            vb = v[:, s0:s0 + L]
            # F.normalize(dim=-1): max(||.||, 1e-12), f32 stats
            qn = qb * lax.rsqrt(jnp.maximum(jnp.sum(qb * qb, -1, keepdims=True), 1e-24))
            kn = kb * lax.rsqrt(jnp.maximum(jnp.sum(kb * kb, -1, keepdims=True), 1e-24))
            tmp_cols.append(qn + kn)            # t_cache (sorted channel order)
            s = lax.dot_general(_bf16(qn), _bf16(kn), (((1,), (1,)), ((), ())),
                                preferred_element_type=jnp.float32)     # q @ k^T
            s = s * trow + nmask                # block-diagonal grouped softmax
            m = jnp.max(s, axis=-1, keepdims=True)
            e = jnp.exp(s - m)                  # off-block -> exactly 0
            p = e * pl.reciprocal(jnp.sum(e, axis=-1, keepdims=True), approx=True)
            p_sum = p_sum + p
            out_cols.append(jnp.dot(_bf16(p), _bf16(vb),
                                    preferred_element_type=jnp.float32))
        pmean_ref[...] = p_sum * (1.0 / B)      # batch-mean attention for cache
        out_all = jnp.concatenate(out_cols, axis=-1)                    # (C, M)
        tmp_all = jnp.concatenate(tmp_cols, axis=-1)                    # (C, M)

        # ---- Intra_CacheModulation + residual ("intra_modulator(...) + out_all")
        s2 = out_all + tmp_all
        g = jnp.dot(gate_w_ref[...], _bf16(s2),
                    preferred_element_type=jnp.float32) + gate_b_ref[...]
        gated = _gelu(g) * s2
        d = jnp.dot(down_w_ref[...], _bf16(gated),
                    preferred_element_type=jnp.float32) + down_b_ref[...]
        u = jnp.dot(up_w_ref[...], _bf16(d),
                    preferred_element_type=jnp.float32) + up_b_ref[...]
        out2 = u + out_all

        # ---- project_out (1x1 conv) + residual with the block input ----
        y = jnp.dot(proj_w_ref[...], _bf16(out2),
                    preferred_element_type=jnp.float32) + proj_b_ref[...]
        x1 = x_cm + y

        # ---- norm2 + FeedForward (1x1 -> dw3x3 -> gelu gate -> 1x1) + residual
        z = _layernorm_cols(x1, ln2_w_ref[...], ln2_b_ref[...])
        h = jnp.dot(fin_w_ref[...], _bf16(z),
                    preferred_element_type=jnp.float32) + fin_b_ref[...]
        h = _dw3x3(h, fdw_w_ref[...], fdw_b_ref[...], mask_ref[...])
        act = _gelu(h[:hidden]) * h[hidden:]
        f = jnp.dot(fout_w_ref[...], _bf16(act),
                    preferred_element_type=jnp.float32) + fout_b_ref[...]
        outc = x1 + f

        # write back in (B, C, L) order (wrapper reshape to (B,C,H,W) is free)
        for b in range(B):
            out_ref[b, :, :] = outc[:, b * L:(b + 1) * L]

    return norm_qkv_dw_kernel, attn_mod_ffn_kernel


# --------------------------------------------------------------------------- #
# Static (trace-time) constants
# --------------------------------------------------------------------------- #
def _dw_boundary_masks(B, H, W):
    """(9, M) 0/1 masks: mask[t, m]=1 iff the (dy,dx)-shifted source pixel of
    output pixel m lies inside the same image (torch zero-padding)."""
    M = B * H * W
    masks = np.zeros((9, M), np.float32)
    for t in range(9):
        dy, dx = t // 3 - 1, t % 3 - 1
        for b in range(B):
            for h in range(H):
                for w in range(W):
                    if 0 <= h + dy < H and 0 <= w + dx < W:
                        masks[t, (b * H + h) * W + w] = 1.0
    return masks


def _block_neg_mask(group_sizes):
    C = sum(group_sizes)
    blk = np.full((C, C), _NEG_INF, np.float32)
    st = 0
    for g in group_sizes:
        blk[st:st + g, st:st + g] = 0.0
        st += g
    return blk


# --------------------------------------------------------------------------- #
# Plain-JAX glue (data-dependent ReGroup argsort + bilinear cache resize) -- tiny
# --------------------------------------------------------------------------- #
def _regroup_order(feats):
    """ReGroup channel ordering: corrcoef of batch-mean features, sort desc."""
    fm = feats - feats.mean(axis=1, keepdims=True)
    cov = fm @ fm.T / (feats.shape[1] - 1)
    dg = jnp.sqrt(jnp.maximum(jnp.diag(cov), 0.0))
    denom = jnp.maximum(dg[:, None] * dg[None, :], 1e-12)   # eps: avoid 0/0 NaN
    corr = jnp.clip(cov / denom, -1.0, 1.0)
    # TODO(synk): torch.sort tie-breaking may differ from jnp.argsort on exact ties.
    return jnp.argsort(-corr.mean(axis=1))


def _bilinear_resize_torch(x2d, out_h, out_w):
    """PyTorch F.interpolate(mode='bilinear', align_corners=False) on a 2D map."""
    in_h, in_w = x2d.shape

    def idx(out_size, in_size):
        scale = in_size / out_size
        s = (jnp.arange(out_size, dtype=jnp.float32) + 0.5) * scale - 0.5
        s = jnp.maximum(s, 0.0)
        i0 = jnp.clip(jnp.floor(s).astype(jnp.int32), 0, in_size - 1)
        i1 = jnp.clip(i0 + 1, 0, in_size - 1)
        lam = s - i0.astype(jnp.float32)
        return i0, i1, lam

    i0h, i1h, lh = idx(out_h, in_h)
    i0w, i1w, lw = idx(out_w, in_w)
    rows = x2d[i0h, :] * (1.0 - lh)[:, None] + x2d[i1h, :] * lh[:, None]
    return rows[:, i0w] * (1.0 - lw)[None, :] + rows[:, i1w] * lw[None, :]


def _calc_layer_cache(p_mean, group_sizes, dim):
    """CalculateCurrentLayerCache (qv_cache=None path) from the in-kernel
    batch-mean block-diagonal attention.  Relies on torch float '//' being
    floor division (current PyTorch behaviour); cache is in sorted channel
    order, matching the reference (attScore is on regrouped channels)."""
    qv = None
    st = 0
    for g in group_sizes:
        m = p_mean[st:st + g, st:st + g]
        up = _bilinear_resize_torch(m, dim, dim)
        term = jnp.floor(up * g / dim)
        qv = term if qv is None else qv + term
        st += g
    return qv[None, :, :]                      # (1, dim, dim)


# --------------------------------------------------------------------------- #
# TransformerBlock forward (isAtt=True, WithBias LayerNorm, qv_cache=None path)
# --------------------------------------------------------------------------- #
def transformer_block_forward(params, x):
    B, C, H, W = x.shape
    L = H * W
    M = B * L
    C3 = 3 * C
    hidden = params['ffn_out_w'].shape[1]

    total = sum(GROUPS)
    group_sizes = [int(r / total * C) for r in GROUPS]
    # ReGroup silently drops channels when dim is not a multiple of sum(GROUPS)=8.
    assert sum(group_sizes) == C, "dim must be a multiple of 8"

    k1, k2 = _make_kernels(B, C, H, W, hidden)

    # static constants (trace-time numpy -> embedded constants)
    dw_masks = jnp.asarray(_dw_boundary_masks(B, H, W))        # (9, M)
    neg_mask = jnp.asarray(_block_neg_mask(group_sizes))       # (C, C)
    gidx = np.concatenate([np.full(g, i, np.int32)
                           for i, g in enumerate(group_sizes)])
    t_row = params['temperature'][gidx].reshape(C, 1)          # per-row temperature

    vspec = pl.BlockSpec(memory_space=pltpu.MemorySpace.VMEM)
    cparams = pltpu.CompilerParams(vmem_limit_bytes=32 * 1024 * 1024)

    # natural layout (B, C, H*W): free reshape, transposes happen in-VMEM
    x_bcl = x.reshape(B, C, L).astype(jnp.float32)

    # ---- kernel 1: norm1 + qkv 1x1 conv + depthwise 3x3 (+ ReGroup feats) ----
    qkv, feats = pl.pallas_call(
        k1,
        out_shape=(jax.ShapeDtypeStruct((C3, M), jnp.float32),
                   jax.ShapeDtypeStruct((C, L), jnp.float32)),
        in_specs=[vspec] * 8,
        out_specs=(vspec, vspec),
        compiler_params=cparams,
    )(x_bcl, params['ln1_w'], params['ln1_b'], params['qkv_w'], params['qkv_b'],
      params['qkv_dw_w'], params['qkv_dw_b'], dw_masks)

    # ---- ReGroup ordering: argsort has no Pallas equivalent (tiny XLA glue);
    #      the gather itself happens in-kernel via a one-hot permutation matmul.
    order = _regroup_order(feats)
    perm = jax.nn.one_hot(order, C, dtype=jnp.float32)         # (C, C)

    # ---- kernel 2: attention + modulation + proj + norm2 + FFN (fused) ----
    out_bcl, p_mean = pl.pallas_call(
        k2,
        out_shape=(jax.ShapeDtypeStruct((B, C, L), jnp.float32),
                   jax.ShapeDtypeStruct((C, C), jnp.float32)),
        in_specs=[vspec] * 22,
        out_specs=(vspec, vspec),
        compiler_params=cparams,
    )(x_bcl, qkv, perm, t_row, neg_mask, dw_masks,
      params['gate_w'], params['gate_b'], params['down_w'], params['down_b'],
      params['up_w'], params['up_b'], params['proj_w'], params['proj_b'],
      params['ln2_w'], params['ln2_b'],
      params['ffn_in_w'], params['ffn_in_b'],
      params['ffn_dw_w'], params['ffn_dw_b'],
      params['ffn_out_w'], params['ffn_out_b'])

    # ---- qv_cache update (tiny, uses the in-kernel batch-mean attention) ----
    # TODO(synk): qv_cache-provided branch (Inter_CacheModulation modules +
    # adaptive_avg_pool2d of the incoming cache) is not implemented; only the
    # default forward([x, None]) path is reproduced.
    qv_cache = _calc_layer_cache(p_mean, group_sizes, C) * 0.9

    out = out_bcl.reshape(B, C, H, W)
    return out, qv_cache


# --------------------------------------------------------------------------- #
# Deterministic synthetic parameters (kernel-ready layouts; torch shapes noted)
# --------------------------------------------------------------------------- #
def init_params(key, dim, ffn_expansion_factor=2.0):
    hidden = int(dim * ffn_expansion_factor)
    keys = list(jax.random.split(key, 18))
    it = iter(keys)

    def rnd(shape, fan_in, dtype=jnp.float32):
        w = jax.random.normal(next(it), shape, jnp.float32) * (fan_in ** -0.5)
        return w.astype(dtype)

    return {
        # LayerNorm (WithBias): torch weight/bias (dim,)
        'ln1_w': jnp.ones((dim, 1), jnp.float32),
        'ln1_b': jnp.zeros((dim, 1), jnp.float32),
        'ln2_w': jnp.ones((dim, 1), jnp.float32),
        'ln2_b': jnp.zeros((dim, 1), jnp.float32),
        # Attention.temperature: torch (4, 1, 1)
        'temperature': jnp.ones((4,), jnp.float32),
        # Attention.qkv: Conv2d(dim, 3*dim, 1)  -> bf16 (3C, C) / f32 (3C, 1)
        'qkv_w': rnd((3 * dim, dim), dim, _BF16),
        'qkv_b': rnd((3 * dim, 1), dim),
        # Attention.qkv_dwconv: depthwise Conv2d 3x3 -> f32 (3C, 9) taps / (3C, 1)
        'qkv_dw_w': rnd((3 * dim, 9), 9),
        'qkv_dw_b': rnd((3 * dim, 1), 9),
        # Attention.project_out: Conv2d(dim, dim, 1)
        'proj_w': rnd((dim, dim), dim, _BF16),
        'proj_b': rnd((dim, 1), dim),
        # Intra_CacheModulation: gatingConv / down / up (Conv1d k=1)
        'gate_w': rnd((dim, dim), dim, _BF16),
        'gate_b': rnd((dim, 1), dim),
        'down_w': rnd((dim // 2, dim), dim, _BF16),
        'down_b': rnd((dim // 2, 1), dim),
        'up_w': rnd((dim, dim // 2), dim // 2, _BF16),
        'up_b': rnd((dim, 1), dim // 2),
        # FeedForward: project_in / depthwise 3x3 / project_out
        'ffn_in_w': rnd((2 * hidden, dim), dim, _BF16),
        'ffn_in_b': rnd((2 * hidden, 1), dim),
        'ffn_dw_w': rnd((2 * hidden, 9), 9),
        'ffn_dw_b': rnd((2 * hidden, 1), 9),
        'ffn_out_w': rnd((dim, hidden), hidden, _BF16),
        'ffn_out_b': rnd((dim, 1), hidden),
    }


if __name__ == "__main__":
    # TransformerBlock(dim=16, num_heads=4, ffn_expansion_factor=2.0, bias=True,
    #                  LayerNorm_type='WithBias', isAtt=True); num_heads unused in
    # the reference forward.  dim must be a multiple of 8 (group split 1:2:2:3).
    dim, ffn_expansion_factor = 16, 2.0
    B, H, W = 2, 8, 8

    key = jax.random.PRNGKey(0)
    kx, kp = jax.random.split(key)
    x = jax.random.normal(kx, (B, dim, H, W), jnp.float32)
    params = init_params(kp, dim, ffn_expansion_factor)

    fwd = jax.jit(transformer_block_forward)
    out, qv_cache = fwd(params, x)
    jax.block_until_ready(out)
    jax.block_until_ready(qv_cache)

    assert out.shape == (B, dim, H, W), out.shape
    assert qv_cache.shape == (1, dim, dim), qv_cache.shape
    assert bool(jnp.isfinite(out).all())
    assert bool(jnp.isfinite(qv_cache).all())
    print("KERNEL_OK")
</pallas_src>

<mosaic_0001>
module attributes {stable_mosaic.version = 11 : i64} {
  func.func @norm_qkv_dw_kernel(%arg0: memref<2x16x64xf32, #tpu.memory_space<vmem>>, %arg1: memref<16x1xf32, #tpu.memory_space<vmem>>, %arg2: memref<16x1xf32, #tpu.memory_space<vmem>>, %arg3: memref<48x16xbf16, #tpu.memory_space<vmem>>, %arg4: memref<48x1xf32, #tpu.memory_space<vmem>>, %arg5: memref<48x9xf32, #tpu.memory_space<vmem>>, %arg6: memref<48x1xf32, #tpu.memory_space<vmem>>, %arg7: memref<9x128xf32, #tpu.memory_space<vmem>>, %arg8: memref<48x128xf32, #tpu.memory_space<vmem>>, %arg9: memref<16x64xf32, #tpu.memory_space<vmem>>) attributes {dimension_semantics = [], scalar_prefetch = 0 : i64, scratch_operands = 0 : i64, tpu.core_type = #tpu.core_type<tc>} {
    %c0 = arith.constant 0 : index
    %c0_0 = arith.constant 0 : index
    %c0_1 = arith.constant 0 : index
    %0 = vector.load %arg0[%c0, %c0_0, %c0_1] : memref<2x16x64xf32, #tpu.memory_space<vmem>>, vector<1x16x64xf32>
    %1 = vector.shape_cast %0 : vector<1x16x64xf32> to vector<16x64xf32>
    %c1 = arith.constant 1 : index
    %c0_2 = arith.constant 0 : index
    %c0_3 = arith.constant 0 : index
    %2 = vector.load %arg0[%c1, %c0_2, %c0_3] : memref<2x16x64xf32, #tpu.memory_space<vmem>>, vector<1x16x64xf32>
    %3 = vector.shape_cast %2 : vector<1x16x64xf32> to vector<16x64xf32>
    %4 = tpu.concatenate %1, %3 in 1 : vector<16x64xf32>, vector<16x64xf32> -> vector<16x128xf32>
    %c0_4 = arith.constant 0 : index
    %c0_5 = arith.constant 0 : index
    %5 = vector.load %arg1[%c0_4, %c0_5] : memref<16x1xf32, #tpu.memory_space<vmem>>, vector<16x1xf32>
    %c0_6 = arith.constant 0 : index
    %c0_7 = arith.constant 0 : index
    %6 = vector.load %arg2[%c0_6, %c0_7] : memref<16x1xf32, #tpu.memory_space<vmem>>, vector<16x1xf32>
    %cst = arith.constant dense<0.000000e+00> : vector<128xf32>
    %7 = vector.multi_reduction <add>, %4, %cst [0] : vector<16x128xf32> to vector<128xf32>
    %8 = vector.shape_cast %7 : vector<128xf32> to vector<1x128xf32>
    %cst_8 = arith.constant 1.600000e+01 : f32
    %9 = vector.broadcast %cst_8 : f32 to vector<1x128xf32>
    %10 = arith.divf %8, %9 : vector<1x128xf32>
    %11 = vector.broadcast %10 : vector<1x128xf32> to vector<16x128xf32>
    %12 = arith.subf %4, %11 : vector<16x128xf32>
    %13 = arith.mulf %12, %12 : vector<16x128xf32>
    %cst_9 = arith.constant dense<0.000000e+00> : vector<128xf32>
    %14 = vector.multi_reduction <add>, %13, %cst_9 [0] : vector<16x128xf32> to vector<128xf32>
    %15 = vector.shape_cast %14 : vector<128xf32> to vector<1x128xf32>
    %cst_10 = arith.constant 1.600000e+01 : f32
    %16 = vector.broadcast %cst_10 : f32 to vector<1x128xf32>
    %17 = arith.divf %15, %16 : vector<1x128xf32>
    %cst_11 = arith.constant 9.99999974E-6 : f32
    %18 = vector.broadcast %cst_11 : f32 to vector<1x128xf32>
    %19 = arith.addf %17, %18 : vector<1x128xf32>
    %20 = math.rsqrt %19 : vector<1x128xf32>
    %21 = vector.broadcast %20 : vector<1x128xf32> to vector<16x128xf32>
    %22 = arith.mulf %12, %21 : vector<16x128xf32>
    %23 = vector.broadcast %5 : vector<16x1xf32> to vector<16x128xf32>
    %24 = arith.mulf %22, %23 : vector<16x128xf32>
    %25 = vector.broadcast %6 : vector<16x1xf32> to vector<16x128xf32>
    %26 = arith.addf %24, %25 : vector<16x128xf32>
    %c0_12 = arith.constant 0 : index
    %c0_13 = arith.constant 0 : index
    %27 = vector.load %arg3[%c0_12, %c0_13] : memref<48x16xbf16, #tpu.memory_space<vmem>>, vector<48x16xbf16>
    %28 = arith.truncf %26 : vector<16x128xf32> to vector<16x128xbf16>
    %cst_14 = arith.constant dense<0.000000e+00> : vector<48x128xf32>
    %29 = tpu.matmul %27, %28, %cst_14 {dimension_numbers = #tpu.dot_dimension_numbers<[1], [0], [0], [1], [0, 0, 1, 1], [], []>} : vector<48x16xbf16>, vector<16x128xbf16>, vector<48x128xf32> -> vector<48x128xf32>
    %c0_15 = arith.constant 0 : index
    %c0_16 = arith.constant 0 : index
    %30 = vector.load %arg4[%c0_15, %c0_16] : memref<48x1xf32, #tpu.memory_space<vmem>>, vector<48x1xf32>
    %31 = vector.broadcast %30 : vector<48x1xf32> to vector<48x128xf32>
    %32 = arith.addf %29, %31 : vector<48x128xf32>
    %c0_17 = arith.constant 0 : index
    %c0_18 = arith.constant 0 : index
    %33 = vector.load %arg5[%c0_17, %c0_18] : memref<48x9xf32, #tpu.memory_space<vmem>>, vector<48x9xf32>
    %c0_19 = arith.constant 0 : index
    %c0_20 = arith.constant 0 : index
    %34 = vector.load %arg6[%c0_19, %c0_20] : memref<48x1xf32, #tpu.memory_space<vmem>>, vector<48x1xf32>
    %c0_21 = arith.constant 0 : index
    %c0_22 = arith.constant 0 : index
    %35 = vector.load %arg7[%c0_21, %c0_22] : memref<9x128xf32, #tpu.memory_space<vmem>>, vector<9x128xf32>
    %cst_23 = arith.constant 0.000000e+00 : f32
    %36 = vector.broadcast %cst_23 : f32 to vector<48x128xf32>
    %c9_i32 = arith.constant 9 : i32
    %37 = tpu.dynamic_rotate %32 by %c9_i32 dim 1 : vector<48x128xf32>, i32 -> vector<48x128xf32>
    %38 = vector.extract_strided_slice %35 {offsets = [0, 0], sizes = [1, 128], strides = [1, 1]} : vector<9x128xf32> to vector<1x128xf32>
    %39 = vector.broadcast %38 : vector<1x128xf32> to vector<48x128xf32>
    %40 = arith.mulf %37, %39 : vector<48x128xf32>
    %41 = vector.extract_strided_slice %33 {offsets = [0, 0], sizes = [48, 1], strides = [1, 1]} : vector<48x9xf32> to vector<48x1xf32>
    %42 = vector.broadcast %41 : vector<48x1xf32> to vector<48x128xf32>
    %43 = arith.mulf %40, %42 : vector<48x128xf32>
    %44 = arith.addf %36, %43 : vector<48x128xf32>
    %c8_i32 = arith.constant 8 : i32
    %45 = tpu.dynamic_rotate %32 by %c8_i32 dim 1 : vector<48x128xf32>, i32 -> vector<48x128xf32>
    %46 = vector.extract_strided_slice %35 {offsets = [1, 0], sizes = [1, 128], strides = [1, 1]} : vector<9x128xf32> to vector<1x128xf32>
    %47 = vector.broadcast %46 : vector<1x128xf32> to vector<48x128xf32>
    %48 = arith.mulf %45, %47 : vector<48x128xf32>
    %49 = vector.extract_strided_slice %33 {offsets = [0, 1], sizes = [48, 1], strides = [1, 1]} : vector<48x9xf32> to vector<48x1xf32>
    %50 = vector.broadcast %49 : vector<48x1xf32> to vector<48x128xf32>
    %51 = arith.mulf %48, %50 : vector<48x128xf32>
    %52 = arith.addf %44, %51 : vector<48x128xf32>
    %c7_i32 = arith.constant 7 : i32
    %53 = tpu.dynamic_rotate %32 by %c7_i32 dim 1 : vector<48x128xf32>, i32 -> vector<48x128xf32>
    %54 = vector.extract_strided_slice %35 {offsets = [2, 0], sizes = [1, 128], strides = [1, 1]} : vector<9x128xf32> to vector<1x128xf32>
    %55 = vector.broadcast %54 : vector<1x128xf32> to vector<48x128xf32>
    %56 = arith.mulf %53, %55 : vector<48x128xf32>
    %57 = vector.extract_strided_slice %33 {offsets = [0, 2], sizes = [48, 1], strides = [1, 1]} : vector<48x9xf32> to vector<48x1xf32>
    %58 = vector.broadcast %57 : vector<48x1xf32> to vector<48x128xf32>
    %59 = arith.mulf %56, %58 : vector<48x128xf32>
    %60 = arith.addf %52, %59 : vector<48x128xf32>
    %c1_i32 = arith.constant 1 : i32
    %61 = tpu.dynamic_rotate %32 by %c1_i32 dim 1 : vector<48x128xf32>, i32 -> vector<48x128xf32>
    %62 = vector.extract_strided_slice %35 {offsets = [3, 0], sizes = [1, 128], strides = [1, 1]} : vector<9x128xf32> to vector<1x128xf32>
    %63 = vector.broadcast %62 : vector<1x128xf32> to vector<48x128xf32>
    %64 = arith.mulf %61, %63 : vector<48x128xf32>
    %65 = vector.extract_strided_slice %33 {offsets = [0, 3], sizes = [48, 1], strides = [1, 1]} : vector<48x9xf32> to vector<48x1xf32>
    %66 = vector.broadcast %65 : vector<48x1xf32> to vector<48x128xf32>
    %67 = arith.mulf %64, %66 : vector<48x128xf32>
    %68 = arith.addf %60, %67 : vector<48x128xf32>
    %69 = vector.extract_strided_slice %35 {offsets = [4, 0], sizes = [1, 128], strides = [1, 1]} : vector<9x128xf32> to vector<1x128xf32>
    %70 = vector.broadcast %69 : vector<1x128xf32> to vector<48x128xf32>
    %71 = arith.mulf %32, %70 : vector<48x128xf32>
    %72 = vector.extract_strided_slice %33 {offsets = [0, 4], sizes = [48, 1], strides = [1, 1]} : vector<48x9xf32> to vector<48x1xf32>
    %73 = vector.broadcast %72 : vector<48x1xf32> to vector<48x128xf32>
    %74 = arith.mulf %71, %73 : vector<48x128xf32>
    %75 = arith.addf %68, %74 : vector<48x128xf32>
    %c127_i32 = arith.constant 127 : i32
    %76 = tpu.dynamic_rotate %32 by %c127_i32 dim 1 : vector<48x128xf32>, i32 -> vector<48x128xf32>
    %77 = vector.extract_strided_slice %35 {offsets = [5, 0], sizes = [1, 128], strides = [1, 1]} : vector<9x128xf32> to vector<1x128xf32>
    %78 = vector.broadcast %77 : vector<1x128xf32> to vector<48x128xf32>
    %79 = arith.mulf %76, %78 : vector<48x128xf32>
    %80 = vector.extract_strided_slice %33 {offsets = [0, 5], sizes = [48, 1], strides = [1, 1]} : vector<48x9xf32> to vector<48x1xf32>
    %81 = vector.broadcast %80 : vector<48x1xf32> to vector<48x128xf32>
    %82 = arith.mulf %79, %81 : vector<48x128xf32>
    %83 = arith.addf %75, %82 : vector<48x128xf32>
    %c121_i32 = arith.constant 121 : i32
    %84 = tpu.dynamic_rotate %32 by %c121_i32 dim 1 : vector<48x128xf32>, i32 -> vector<48x128xf32>
    %85 = vector.extract_strided_slice %35 {offsets = [6, 0], sizes = [1, 128], strides = [1, 1]} : vector<9x128xf32> to vector<1x128xf32>
    %86 = vector.broadcast %85 : vector<1x128xf32> to vector<48x128xf32>
    %87 = arith.mulf %84, %86 : vector<48x128xf32>
    %88 = vector.extract_strided_slice %33 {offsets = [0, 6], sizes = [48, 1], strides = [1, 1]} : vector<48x9xf32> to vector<48x1xf32>
    %89 = vector.broadcast %88 : vector<48x1xf32> to vector<48x128xf32>
    %90 = arith.mulf %87, %89 : vector<48x128xf32>
    %91 = arith.addf %83, %90 : vector<48x128xf32>
    %c120_i32 = arith.constant 120 : i32
    %92 = tpu.dynamic_rotate %32 by %c120_i32 dim 1 : vector<48x128xf32>, i32 -> vector<48x128xf32>
    %93 = vector.extract_strided_slice %35 {offsets = [7, 0], sizes = [1, 128], strides = [1, 1]} : vector<9x128xf32> to vector<1x128xf32>
    %94 = vector.broadcast %93 : vector<1x128xf32> to vector<48x128xf32>
    %95 = arith.mulf %92, %94 : vector<48x128xf32>
    %96 = vector.extract_strided_slice %33 {offsets = [0, 7], sizes = [48, 1], strides = [1, 1]} : vector<48x9xf32> to vector<48x1xf32>
    %97 = vector.broadcast %96 : vector<48x1xf32> to vector<48x128xf32>
    %98 = arith.mulf %95, %97 : vector<48x128xf32>
    %99 = arith.addf %91, %98 : vector<48x128xf32>
    %c119_i32 = arith.constant 119 : i32
    %100 = tpu.dynamic_rotate %32 by %c119_i32 dim 1 : vector<48x128xf32>, i32 -> vector<48x128xf32>
    %101 = vector.extract_strided_slice %35 {offsets = [8, 0], sizes = [1, 128], strides = [1, 1]} : vector<9x128xf32> to vector<1x128xf32>
    %102 = vector.broadcast %101 : vector<1x128xf32> to vector<48x128xf32>
    %103 = arith.mulf %100, %102 : vector<48x128xf32>
    %104 = vector.extract_strided_slice %33 {offsets = [0, 8], sizes = [48, 1], strides = [1, 1]} : vector<48x9xf32> to vector<48x1xf32>
    %105 = vector.broadcast %104 : vector<48x1xf32> to vector<48x128xf32>
    %106 = arith.mulf %103, %105 : vector<48x128xf32>
    %107 = arith.addf %99, %106 : vector<48x128xf32>
    %108 = vector.broadcast %34 : vector<48x1xf32> to vector<48x128xf32>
    %109 = arith.addf %107, %108 : vector<48x128xf32>
    %c0_24 = arith.constant 0 : index
    %c0_25 = arith.constant 0 : index
    %110 = vector.load %arg8[%c0_24, %c0_25] : memref<48x128xf32, #tpu.memory_space<vmem>>, vector<48x128xf32>
    tpu.vector_store %arg8[%c0_24, %c0_25], %109 {strides = array<i32>} : memref<48x128xf32, #tpu.memory_space<vmem>>, vector<48x128xf32>,
    %111 = vector.extract_strided_slice %109 {offsets = [0, 0], sizes = [16, 128], strides = [1, 1]} : vector<48x128xf32> to vector<16x128xf32>
    %cst_26 = arith.constant 0.000000e+00 : f32
    %112 = vector.broadcast %cst_26 : f32 to vector<16x64xf32>
    %113 = vector.extract_strided_slice %111 {offsets = [0, 0], sizes = [16, 64], strides = [1, 1]} : vector<16x128xf32> to vector<16x64xf32>
    %114 = arith.addf %112, %113 : vector<16x64xf32>
    %115 = vector.extract_strided_slice %111 {offsets = [0, 64], sizes = [16, 64], strides = [1, 1]} : vector<16x128xf32> to vector<16x64xf32>
    %116 = arith.addf %114, %115 : vector<16x64xf32>
    %cst_27 = arith.constant 5.000000e-01 : f32
    %117 = vector.broadcast %cst_27 : f32 to vector<16x64xf32>
    %118 = arith.mulf %116, %117 : vector<16x64xf32>
    %c0_28 = arith.constant 0 : index
    %c0_29 = arith.constant 0 : index
    %119 = vector.load %arg9[%c0_28, %c0_29] : memref<16x64xf32, #tpu.memory_space<vmem>>, vector<16x64xf32>
    tpu.vector_store %arg9[%c0_28, %c0_29], %118 {strides = array<i32>} : memref<16x64xf32, #tpu.memory_space<vmem>>, vector<16x64xf32>,
    return
  }
}

module attributes {stable_mosaic.version = 11 : i64} {
  func.func @attn_mod_ffn_kernel(%arg0: memref<2x16x64xf32, #tpu.memory_space<vmem>>, %arg1: memref<48x128xf32, #tpu.memory_space<vmem>>, %arg2: memref<16x16xf32, #tpu.memory_space<vmem>>, %arg3: memref<16x1xf32, #tpu.memory_space<vmem>>, %arg4: memref<16x16xf32, #tpu.memory_space<vmem>>, %arg5: memref<9x128xf32, #tpu.memory_space<vmem>>, %arg6: memref<16x16xbf16, #tpu.memory_space<vmem>>, %arg7: memref<16x1xf32, #tpu.memory_space<vmem>>, %arg8: memref<8x16xbf16, #tpu.memory_space<vmem>>, %arg9: memref<8x1xf32, #tpu.memory_space<vmem>>, %arg10: memref<16x8xbf16, #tpu.memory_space<vmem>>, %arg11: memref<16x1xf32, #tpu.memory_space<vmem>>, %arg12: memref<16x16xbf16, #tpu.memory_space<vmem>>, %arg13: memref<16x1xf32, #tpu.memory_space<vmem>>, %arg14: memref<16x1xf32, #tpu.memory_space<vmem>>, %arg15: memref<16x1xf32, #tpu.memory_space<vmem>>, %arg16: memref<64x16xbf16, #tpu.memory_space<vmem>>, %arg17: memref<64x1xf32, #tpu.memory_space<vmem>>, %arg18: memref<64x9xf32, #tpu.memory_space<vmem>>, %arg19: memref<64x1xf32, #tpu.memory_space<vmem>>, %arg20: memref<16x32xbf16, #tpu.memory_space<vmem>>, %arg21: memref<16x1xf32, #tpu.memory_space<vmem>>, %arg22: memref<2x16x64xf32, #tpu.memory_space<vmem>>, %arg23: memref<16x16xf32, #tpu.memory_space<vmem>>) attributes {dimension_semantics = [], scalar_prefetch = 0 : i64, scratch_operands = 0 : i64, tpu.core_type = #tpu.core_type<tc>} {
    %c0 = arith.constant 0 : index
    %c0_0 = arith.constant 0 : index
    %c0_1 = arith.constant 0 : index
    %0 = vector.load %arg0[%c0, %c0_0, %c0_1] : memref<2x16x64xf32, #tpu.memory_space<vmem>>, vector<1x16x64xf32>
    %1 = vector.shape_cast %0 : vector<1x16x64xf32> to vector<16x64xf32>
    %c1 = arith.constant 1 : index
    %c0_2 = arith.constant 0 : index
    %c0_3 = arith.constant 0 : index
    %2 = vector.load %arg0[%c1, %c0_2, %c0_3] : memref<2x16x64xf32, #tpu.memory_space<vmem>>, vector<1x16x64xf32>
    %3 = vector.shape_cast %2 : vector<1x16x64xf32> to vector<16x64xf32>
    %4 = tpu.concatenate %1, %3 in 1 : vector<16x64xf32>, vector<16x64xf32> -> vector<16x128xf32>
    %c0_4 = arith.constant 0 : index
    %c0_5 = arith.constant 0 : index
    %5 = vector.load %arg1[%c0_4, %c0_5] : memref<48x128xf32, #tpu.memory_space<vmem>>, vector<48x128xf32>
    %c0_6 = arith.constant 0 : index
    %c0_7 = arith.constant 0 : index
    %6 = vector.load %arg2[%c0_6, %c0_7] : memref<16x16xf32, #tpu.memory_space<vmem>>, vector<16x16xf32>
    %7 = vector.extract_strided_slice %5 {offsets = [0, 0], sizes = [16, 128], strides = [1, 1]} : vector<48x128xf32> to vector<16x128xf32>
    %cst = arith.constant dense<0.000000e+00> : vector<16x128xf32>
    %8 = tpu.matmul %6, %7, %cst {dimension_numbers = #tpu.dot_dimension_numbers<[1], [0], [0], [1], [0, 0, 1, 1], [], []>} : vector<16x16xf32>, vector<16x128xf32>, vector<16x128xf32> -> vector<16x128xf32>
    %9 = vector.extract_strided_slice %5 {offsets = [16, 0], sizes = [16, 128], strides = [1, 1]} : vector<48x128xf32> to vector<16x128xf32>
    %cst_8 = arith.constant dense<0.000000e+00> : vector<16x128xf32>
    %10 = tpu.matmul %6, %9, %cst_8 {dimension_numbers = #tpu.dot_dimension_numbers<[1], [0], [0], [1], [0, 0, 1, 1], [], []>} : vector<16x16xf32>, vector<16x128xf32>, vector<16x128xf32> -> vector<16x128xf32>
    %11 = vector.extract_strided_slice %5 {offsets = [32, 0], sizes = [16, 128], strides = [1, 1]} : vector<48x128xf32> to vector<16x128xf32>
    %cst_9 = arith.constant dense<0.000000e+00> : vector<16x128xf32>
    %12 = tpu.matmul %6, %11, %cst_9 {dimension_numbers = #tpu.dot_dimension_numbers<[1], [0], [0], [1], [0, 0, 1, 1], [], []>} : vector<16x16xf32>, vector<16x128xf32>, vector<16x128xf32> -> vector<16x128xf32>
    %c0_10 = arith.constant 0 : index
    %c0_11 = arith.constant 0 : index
    %13 = vector.load %arg3[%c0_10, %c0_11] : memref<16x1xf32, #tpu.memory_space<vmem>>, vector<16x1xf32>
    %c0_12 = arith.constant 0 : index
    %c0_13 = arith.constant 0 : index
    %14 = vector.load %arg4[%c0_12, %c0_13] : memref<16x16xf32, #tpu.memory_space<vmem>>, vector<16x16xf32>
    %cst_14 = arith.constant 0.000000e+00 : f32
    %15 = vector.broadcast %cst_14 : f32 to vector<16x16xf32>
    %16 = vector.extract_strided_slice %8 {offsets = [0, 0], sizes = [16, 64], strides = [1, 1]} : vector<16x128xf32> to vector<16x64xf32>
    %17 = vector.extract_strided_slice %10 {offsets = [0, 0], sizes = [16, 64], strides = [1, 1]} : vector<16x128xf32> to vector<16x64xf32>
    %18 = vector.extract_strided_slice %12 {offsets = [0, 0], sizes = [16, 64], strides = [1, 1]} : vector<16x128xf32> to vector<16x64xf32>
    %19 = arith.mulf %16, %16 : vector<16x64xf32>
    %cst_15 = arith.constant dense<0.000000e+00> : vector<16xf32>
    %20 = vector.multi_reduction <add>, %19, %cst_15 [1] : vector<16x64xf32> to vector<16xf32>
    %21 = vector.shape_cast %20 : vector<16xf32> to vector<16x1xf32>
    %cst_16 = arith.constant 1.000000e-24 : f32
    %22 = vector.broadcast %cst_16 : f32 to vector<16x1xf32>
    %23 = arith.maximumf %21, %22 : vector<16x1xf32>
    %24 = math.rsqrt %23 : vector<16x1xf32>
    %25 = vector.broadcast %24 : vector<16x1xf32> to vector<16x64xf32>
    %26 = arith.mulf %16, %25 : vector<16x64xf32>
    %27 = arith.mulf %17, %17 : vector<16x64xf32>
    %cst_17 = arith.constant dense<0.000000e+00> : vector<16xf32>
    %28 = vector.multi_reduction <add>, %27, %cst_17 [1] : vector<16x64xf32> to vector<16xf32>
    %29 = vector.shape_cast %28 : vector<16xf32> to vector<16x1xf32>
    %cst_18 = arith.constant 1.000000e-24 : f32
    %30 = vector.broadcast %cst_18 : f32 to vector<16x1xf32>
    %31 = arith.maximumf %29, %30 : vector<16x1xf32>
    %32 = math.rsqrt %31 : vector<16x1xf32>
    %33 = vector.broadcast %32 : vector<16x1xf32> to vector<16x64xf32>
    %34 = arith.mulf %17, %33 : vector<16x64xf32>
    %35 = arith.addf %26, %34 : vector<16x64xf32>
    %36 = arith.truncf %26 : vector<16x64xf32> to vector<16x64xbf16>
    %37 = arith.truncf %34 : vector<16x64xf32> to vector<16x64xbf16>
    %cst_19 = arith.constant dense<0.000000e+00> : vector<16x16xf32>
    %38 = tpu.matmul %36, %37, %cst_19 {dimension_numbers = #tpu.dot_dimension_numbers<[1], [1], [0], [0], [0, 0, 1, 0], [], []>} : vector<16x64xbf16>, vector<16x64xbf16>, vector<16x16xf32> -> vector<16x16xf32>
    %39 = vector.broadcast %13 : vector<16x1xf32> to vector<16x16xf32>
    %40 = arith.mulf %38, %39 : vector<16x16xf32>
    %41 = arith.addf %40, %14 : vector<16x16xf32>
    %cst_20 = arith.constant dense<0xFF800000> : vector<16xf32>
    %42 = vector.multi_reduction <maximumf>, %41, %cst_20 [1] : vector<16x16xf32> to vector<16xf32>
    %43 = vector.shape_cast %42 : vector<16xf32> to vector<16x1xf32>
    %44 = vector.broadcast %43 : vector<16x1xf32> to vector<16x16xf32>
    %45 = arith.subf %41, %44 : vector<16x16xf32>
    %46 = math.exp %45 : vector<16x16xf32>
    %cst_21 = arith.constant dense<0.000000e+00> : vector<16xf32>
    %47 = vector.multi_reduction <add>, %46, %cst_21 [1] : vector<16x16xf32> to vector<16xf32>
    %48 = vector.shape_cast %47 : vector<16xf32> to vector<16x1xf32>
    %49 = tpu.reciprocal %48 {approx = true} : vector<16x1xf32> -> vector<16x1xf32>
    %50 = vector.broadcast %49 : vector<16x1xf32> to vector<16x16xf32>
    %51 = arith.mulf %46, %50 : vector<16x16xf32>
    %52 = arith.addf %15, %51 : vector<16x16xf32>
    %53 = arith.truncf %51 : vector<16x16xf32> to vector<16x16xbf16>
    %54 = arith.truncf %18 : vector<16x64xf32> to vector<16x64xbf16>
    %cst_22 = arith.constant dense<0.000000e+00> : vector<16x64xf32>
    %55 = tpu.matmul %53, %54, %cst_22 {dimension_numbers = #tpu.dot_dimension_numbers<[1], [0], [0], [1], [0, 0, 1, 1], [], []>} : vector<16x16xbf16>, vector<16x64xbf16>, vector<16x64xf32> -> vector<16x64xf32>
    %56 = vector.extract_strided_slice %8 {offsets = [0, 64], sizes = [16, 64], strides = [1, 1]} : vector<16x128xf32> to vector<16x64xf32>
    %57 = vector.extract_strided_slice %10 {offsets = [0, 64], sizes = [16, 64], strides = [1, 1]} : vector<16x128xf32> to vector<16x64xf32>
    %58 = vector.extract_strided_slice %12 {offsets = [0, 64], sizes = [16, 64], strides = [1, 1]} : vector<16x128xf32> to vector<16x64xf32>
    %59 = arith.mulf %56, %56 : vector<16x64xf32>
    %cst_23 = arith.constant dense<0.000000e+00> : vector<16xf32>
    %60 = vector.multi_reduction <add>, %59, %cst_23 [1] : vector<16x64xf32> to vector<16xf32>
    %61 = vector.shape_cast %60 : vector<16xf32> to vector<16x1xf32>
    %cst_24 = arith.constant 1.000000e-24 : f32
    %62 = vector.broadcast %cst_24 : f32 to vector<16x1xf32>
    %63 = arith.maximumf %61, %62 : vector<16x1xf32>
    %64 = math.rsqrt %63 : vector<16x1xf32>
    %65 = vector.broadcast %64 : vector<16x1xf32> to vector<16x64xf32>
    %66 = arith.mulf %56, %65 : vector<16x64xf32>
    %67 = arith.mulf %57, %57 : vector<16x64xf32>
    %cst_25 = arith.constant dense<0.000000e+00> : vector<16xf32>
    %68 = vector.multi_reduction <add>, %67, %cst_25 [1] : vector<16x64xf32> to vector<16xf32>
    %69 = vector.shape_cast %68 : vector<16xf32> to vector<16x1xf32>
    %cst_26 = arith.constant 1.000000e-24 : f32
    %70 = vector.broadcast %cst_26 : f32 to vector<16x1xf32>
    %71 = arith.maximumf %69, %70 : vector<16x1xf32>
    %72 = math.rsqrt %71 : vector<16x1xf32>
    %73 = vector.broadcast %72 : vector<16x1xf32> to vector<16x64xf32>
    %74 = arith.mulf %57, %73 : vector<16x64xf32>
    %75 = arith.addf %66, %74 : vector<16x64xf32>
    %76 = arith.truncf %66 : vector<16x64xf32> to vector<16x64xbf16>
    %77 = arith.truncf %74 : vector<16x64xf32> to vector<16x64xbf16>
    %cst_27 = arith.constant dense<0.000000e+00> : vector<16x16xf32>
    %78 = tpu.matmul %76, %77, %cst_27 {dimension_numbers = #tpu.dot_dimension_numbers<[1], [1], [0], [0], [0, 0, 1, 0], [], []>} : vector<16x64xbf16>, vector<16x64xbf16>, vector<16x16xf32> -> vector<16x16xf32>
    %79 = vector.broadcast %13 : vector<16x1xf32> to vector<16x16xf32>
    %80 = arith.mulf %78, %79 : vector<16x16xf32>
    %81 = arith.addf %80, %14 : vector<16x16xf32>
    %cst_28 = arith.constant dense<0xFF800000> : vector<16xf32>
    %82 = vector.multi_reduction <maximumf>, %81, %cst_28 [1] : vector<16x16xf32> to vector<16xf32>
    %83 = vector.shape_cast %82 : vector<16xf32> to vector<16x1xf32>
    %84 = vector.broadcast %83 : vector<16x1xf32> to vector<16x16xf32>
    %85 = arith.subf %81, %84 : vector<16x16xf32>
    %86 = math.exp %85 : vector<16x16xf32>
    %cst_29 = arith.constant dense<0.000000e+00> : vector<16xf32>
    %87 = vector.multi_reduction <add>, %86, %cst_29 [1] : vector<16x16xf32> to vector<16xf32>
    %88 = vector.shape_cast %87 : vector<16xf32> to vector<16x1xf32>
    %89 = tpu.reciprocal %88 {approx = true} : vector<16x1xf32> -> vector<16x1xf32>
    %90 = vector.broadcast %89 : vector<16x1xf32> to vector<16x16xf32>
    %91 = arith.mulf %86, %90 : vector<16x16xf32>
    %92 = arith.addf %52, %91 : vector<16x16xf32>
    %93 = arith.truncf %91 : vector<16x16xf32> to vector<16x16xbf16>
    %94 = arith.truncf %58 : vector<16x64xf32> to vector<16x64xbf16>
    %cst_30 = arith.constant dense<0.000000e+00> : vector<16x64xf32>
    %95 = tpu.matmul %93, %94, %cst_30 {dimension_numbers = #tpu.dot_dimension_numbers<[1], [0], [0], [1], [0, 0, 1, 1], [], []>} : vector<16x16xbf16>, vector<16x64xbf16>, vector<16x64xf32> -> vector<16x64xf32>
    %cst_31 = arith.constant 5.000000e-01 : f32
    %96 = vector.broadcast %cst_31 : f32 to vector<16x16xf32>
    %97 = arith.mulf %92, %96 : vector<16x16xf32>
    %c0_32 = arith.constant 0 : index
    %c0_33 = arith.constant 0 : index
    %98 = vector.load %arg23[%c0_32, %c0_33] : memref<16x16xf32, #tpu.memory_space<vmem>>, vector<16x16xf32>
    tpu.vector_store %arg23[%c0_32, %c0_33], %97 {strides = array<i32>} : memref<16x16xf32, #tpu.memory_space<vmem>>, vector<16x16xf32>,
    %99 = tpu.concatenate %55, %95 in 1 : vector<16x64xf32>, vector<16x64xf32> -> vector<16x128xf32>
    %100 = tpu.concatenate %35, %75 in 1 : vector<16x64xf32>, vector<16x64xf32> -> vector<16x128xf32>
    %101 = arith.addf %99, %100 : vector<16x128xf32>
    %c0_34 = arith.constant 0 : index
    %c0_35 = arith.constant 0 : index
    %102 = vector.load %arg6[%c0_34, %c0_35] : memref<16x16xbf16, #tpu.memory_space<vmem>>, vector<16x16xbf16>
    %103 = arith.truncf %101 : vector<16x128xf32> to vector<16x128xbf16>
    %cst_36 = arith.constant dense<0.000000e+00> : vector<16x128xf32>
    %104 = tpu.matmul %102, %103, %cst_36 {dimension_numbers = #tpu.dot_dimension_numbers<[1], [0], [0], [1], [0, 0, 1, 1], [], []>} : vector<16x16xbf16>, vector<16x128xbf16>, vector<16x128xf32> -> vector<16x128xf32>
    %c0_37 = arith.constant 0 : index
    %c0_38 = arith.constant 0 : index
    %105 = vector.load %arg7[%c0_37, %c0_38] : memref<16x1xf32, #tpu.memory_space<vmem>>, vector<16x1xf32>
    %106 = vector.broadcast %105 : vector<16x1xf32> to vector<16x128xf32>
    %107 = arith.addf %104, %106 : vector<16x128xf32>
    %cst_39 = arith.constant 5.000000e-01 : f32
    %108 = vector.broadcast %cst_39 : f32 to vector<16x128xf32>
    %109 = arith.mulf %108, %107 : vector<16x128xf32>
    %cst_40 = arith.constant 1.41421354 : f32
    %110 = vector.broadcast %cst_40 : f32 to vector<16x128xf32>
    %111 = arith.divf %107, %110 : vector<16x128xf32>
    %112 = math.absf %111 : vector<16x128xf32>
    %cst_41 = arith.constant 0.327591091 : f32
    %113 = vector.broadcast %cst_41 : f32 to vector<16x128xf32>
    %114 = arith.mulf %113, %112 : vector<16x128xf32>
    %cst_42 = arith.constant 1.000000e+00 : f32
    %115 = vector.broadcast %cst_42 : f32 to vector<16x128xf32>
    %116 = arith.addf %115, %114 : vector<16x128xf32>
    %cst_43 = arith.constant 1.000000e+00 : f32
    %117 = vector.broadcast %cst_43 : f32 to vector<16x128xf32>
    %118 = arith.divf %117, %116 : vector<16x128xf32>
    %cst_44 = arith.constant 1.06140542 : f32
    %119 = vector.broadcast %cst_44 : f32 to vector<16x128xf32>
    %120 = arith.mulf %119, %118 : vector<16x128xf32>
    %cst_45 = arith.constant -1.45315206 : f32
    %121 = vector.broadcast %cst_45 : f32 to vector<16x128xf32>
    %122 = arith.addf %120, %121 : vector<16x128xf32>
    %123 = arith.mulf %122, %118 : vector<16x128xf32>
    %cst_46 = arith.constant 1.42141378 : f32
    %124 = vector.broadcast %cst_46 : f32 to vector<16x128xf32>
    %125 = arith.addf %123, %124 : vector<16x128xf32>
    %126 = arith.mulf %125, %118 : vector<16x128xf32>
    %cst_47 = arith.constant -0.284496725 : f32
    %127 = vector.broadcast %cst_47 : f32 to vector<16x128xf32>
    %128 = arith.addf %126, %127 : vector<16x128xf32>
    %129 = arith.mulf %128, %118 : vector<16x128xf32>
    %cst_48 = arith.constant 0.254829586 : f32
    %130 = vector.broadcast %cst_48 : f32 to vector<16x128xf32>
    %131 = arith.addf %129, %130 : vector<16x128xf32>
    %132 = arith.mulf %131, %118 : vector<16x128xf32>
    %cst_49 = arith.constant 0.000000e+00 : f32
    %133 = vector.broadcast %cst_49 : f32 to vector<16x128xf32>
    %134 = arith.subf %133, %112 : vector<16x128xf32>
    %135 = arith.mulf %134, %112 : vector<16x128xf32>
    %136 = math.exp %135 : vector<16x128xf32>
    %137 = arith.mulf %132, %136 : vector<16x128xf32>
    %cst_50 = arith.constant 1.000000e+00 : f32
    %138 = vector.broadcast %cst_50 : f32 to vector<16x128xf32>
    %139 = arith.subf %138, %137 : vector<16x128xf32>
    %cst_51 = arith.constant 0.000000e+00 : f32
    %140 = vector.broadcast %cst_51 : f32 to vector<16x128xf32>
    %141 = arith.cmpf olt, %111, %140 : vector<16x128xf32>
    %cst_52 = arith.constant 0.000000e+00 : f32
    %142 = vector.broadcast %cst_52 : f32 to vector<16x128xf32>
    %143 = arith.subf %142, %139 : vector<16x128xf32>
    %144 = arith.select %141, %143, %139 : vector<16x128xi1>, vector<16x128xf32>
    %cst_53 = arith.constant 1.000000e+00 : f32
    %145 = vector.broadcast %cst_53 : f32 to vector<16x128xf32>
    %146 = arith.addf %145, %144 : vector<16x128xf32>
    %147 = arith.mulf %109, %146 : vector<16x128xf32>
    %148 = arith.mulf %147, %101 : vector<16x128xf32>
    %c0_54 = arith.constant 0 : index
    %c0_55 = arith.constant 0 : index
    %149 = vector.load %arg8[%c0_54, %c0_55] : memref<8x16xbf16, #tpu.memory_space<vmem>>, vector<8x16xbf16>
    %150 = arith.truncf %148 : vector<16x128xf32> to vector<16x128xbf16>
    %cst_56 = arith.constant dense<0.000000e+00> : vector<8x128xf32>
    %151 = tpu.matmul %149, %150, %cst_56 {dimension_numbers = #tpu.dot_dimension_numbers<[1], [0], [0], [1], [0, 0, 1, 1], [], []>} : vector<8x16xbf16>, vector<16x128xbf16>, vector<8x128xf32> -> vector<8x128xf32>
    %c0_57 = arith.constant 0 : index
    %c0_58 = arith.constant 0 : index
    %152 = vector.load %arg9[%c0_57, %c0_58] : memref<8x1xf32, #tpu.memory_space<vmem>>, vector<8x1xf32>
    %153 = vector.broadcast %152 : vector<8x1xf32> to vector<8x128xf32>
    %154 = arith.addf %151, %153 : vector<8x128xf32>
    %c0_59 = arith.constant 0 : index
    %c0_60 = arith.constant 0 : index
    %155 = vector.load %arg10[%c0_59, %c0_60] : memref<16x8xbf16, #tpu.memory_space<vmem>>, vector<16x8xbf16>
    %156 = arith.truncf %154 : vector<8x128xf32> to vector<8x128xbf16>
    %cst_61 = arith.constant dense<0.000000e+00> : vector<16x128xf32>
    %157 = tpu.matmul %155, %156, %cst_61 {dimension_numbers = #tpu.dot_dimension_numbers<[1], [0], [0], [1], [0, 0, 1, 1], [], []>} : vector<16x8xbf16>, vector<8x128xbf16>, vector<16x128xf32> -> vector<16x128xf32>
    %c0_62 = arith.constant 0 : index
    %c0_63 = arith.constant 0 : index
    %158 = vector.load %arg11[%c0_62, %c0_63] : memref<16x1xf32, #tpu.memory_space<vmem>>, vector<16x1xf32>
    %159 = vector.broadcast %158 : vector<16x1xf32> to vector<16x128xf32>
    %160 = arith.addf %157, %159 : vector<16x128xf32>
    %161 = arith.addf %160, %99 : vector<16x128xf32>
    %c0_64 = arith.constant 0 : index
    %c0_65 = arith.constant 0 : index
    %162 = vector.load %arg12[%c0_64, %c0_65] : memref<16x16xbf16, #tpu.memory_space<vmem>>, vector<16x16xbf16>
    %163 = arith.truncf %161 : vector<16x128xf32> to vector<16x128xbf16>
    %cst_66 = arith.constant dense<0.000000e+00> : vector<16x128xf32>
    %164 = tpu.matmul %162, %163, %cst_66 {dimension_numbers = #tpu.dot_dimension_numbers<[1], [0], [0], [1], [0, 0, 1, 1], [], []>} : vector<16x16xbf16>, vector<16x128xbf16>, vector<16x128xf32> -> vector<16x128xf32>
    %c0_67 = arith.constant 0 : index
    %c0_68 = arith.constant 0 : index
    %165 = vector.load %arg13[%c0_67, %c0_68] : memref<16x1xf32, #tpu.memory_space<vmem>>, vector<16x1xf32>
    %166 = vector.broadcast %165 : vector<16x1xf32> to vector<16x128xf32>
    %167 = arith.addf %164, %166 : vector<16x128xf32>
    %168 = arith.addf %4, %167 : vector<16x128xf32>
    %c0_69 = arith.constant 0 : index
    %c0_70 = arith.constant 0 : index
    %169 = vector.load %arg14[%c0_69, %c0_70] : memref<16x1xf32, #tpu.memory_space<vmem>>, vector<16x1xf32>
    %c0_71 = arith.constant 0 : index
    %c0_72 = arith.constant 0 : index
    %170 = vector.load %arg15[%c0_71, %c0_72] : memref<16x1xf32, #tpu.memory_space<vmem>>, vector<16x1xf32>
    %cst_73 = arith.constant dense<0.000000e+00> : vector<128xf32>
    %171 = vector.multi_reduction <add>, %168, %cst_73 [0] : vector<16x128xf32> to vector<128xf32>
    %172 = vector.shape_cast %171 : vector<128xf32> to vector<1x128xf32>
    %cst_74 = arith.constant 1.600000e+01 : f32
    %173 = vector.broadcast %cst_74 : f32 to vector<1x128xf32>
    %174 = arith.divf %172, %173 : vector<1x128xf32>
    %175 = vector.broadcast %174 : vector<1x128xf32> to vector<16x128xf32>
    %176 = arith.subf %168, %175 : vector<16x128xf32>
    %177 = arith.mulf %176, %176 : vector<16x128xf32>
    %cst_75 = arith.constant dense<0.000000e+00> : vector<128xf32>
    %178 = vector.multi_reduction <add>, %177, %cst_75 [0] : vector<16x128xf32> to vector<128xf32>
    %179 = vector.shape_cast %178 : vector<128xf32> to vector<1x128xf32>
    %cst_76 = arith.constant 1.600000e+01 : f32
    %180 = vector.broadcast %cst_76 : f32 to vector<1x128xf32>
    %181 = arith.divf %179, %180 : vector<1x128xf32>
    %cst_77 = arith.constant 9.99999974E-6 : f32
    %182 = vector.broadcast %cst_77 : f32 to vector<1x128xf32>
    %183 = arith.addf %181, %182 : vector<1x128xf32>
    %184 = math.rsqrt %183 : vector<1x128xf32>
    %185 = vector.broadcast %184 : vector<1x128xf32> to vector<16x128xf32>
    %186 = arith.mulf %176, %185 : vector<16x128xf32>
    %187 = vector.broadcast %169 : vector<16x1xf32> to vector<16x128xf32>
    %188 = arith.mulf %186, %187 : vector<16x128xf32>
    %189 = vector.broadcast %170 : vector<16x1xf32> to vector<16x128xf32>
    %190 = arith.addf %188, %189 : vector<16x128xf32>
    %c0_78 = arith.constant 0 : index
    %c0_79 = arith.constant 0 : index
    %191 = vector.load %arg16[%c0_78, %c0_79] : memref<64x16xbf16, #tpu.memory_space<vmem>>, vector<64x16xbf16>
    %192 = arith.truncf %190 : vector<16x128xf32> to vector<16x128xbf16>
    %cst_80 = arith.constant dense<0.000000e+00> : vector<64x128xf32>
    %193 = tpu.matmul %191, %192, %cst_80 {dimension_numbers = #tpu.dot_dimension_numbers<[1], [0], [0], [1], [0, 0, 1, 1], [], []>} : vector<64x16xbf16>, vector<16x128xbf16>, vector<64x128xf32> -> vector<64x128xf32>
    %c0_81 = arith.constant 0 : index
    %c0_82 = arith.constant 0 : index
    %194 = vector.load %arg17[%c0_81, %c0_82] : memref<64x1xf32, #tpu.memory_space<vmem>>, vector<64x1xf32>
    %195 = vector.broadcast %194 : vector<64x1xf32> to vector<64x128xf32>
    %196 = arith.addf %193, %195 : vector<64x128xf32>
    %c0_83 = arith.constant 0 : index
    %c0_84 = arith.constant 0 : index
    %197 = vector.load %arg18[%c0_83, %c0_84] : memref<64x9xf32, #tpu.memory_space<vmem>>, vector<64x9xf32>
    %c0_85 = arith.constant 0 : index
    %c0_86 = arith.constant 0 : index
    %198 = vector.load %arg19[%c0_85, %c0_86] : memref<64x1xf32, #tpu.memory_space<vmem>>, vector<64x1xf32>
    %c0_87 = arith.constant 0 : index
    %c0_88 = arith.constant 0 : index
    %199 = vector.load %arg5[%c0_87, %c0_88] : memref<9x128xf32, #tpu.memory_space<vmem>>, vector<9x128xf32>
    %cst_89 = arith.constant 0.000000e+00 : f32
    %200 = vector.broadcast %cst_89 : f32 to vector<64x128xf32>
    %c9_i32 = arith.constant 9 : i32
    %201 = tpu.dynamic_rotate %196 by %c9_i32 dim 1 : vector<64x128xf32>, i32 -> vector<64x128xf32>
    %202 = vector.extract_strided_slice %199 {offsets = [0, 0], sizes = [1, 128], strides = [1, 1]} : vector<9x128xf32> to vector<1x128xf32>
    %203 = vector.broadcast %202 : vector<1x128xf32> to vector<64x128xf32>
    %204 = arith.mulf %201, %203 : vector<64x128xf32>
    %205 = vector.extract_strided_slice %197 {offsets = [0, 0], sizes = [64, 1], strides = [1, 1]} : vector<64x9xf32> to vector<64x1xf32>
    %206 = vector.broadcast %205 : vector<64x1xf32> to vector<64x128xf32>
    %207 = arith.mulf %204, %206 : vector<64x128xf32>
    %208 = arith.addf %200, %207 : vector<64x128xf32>
    %c8_i32 = arith.constant 8 : i32
    %209 = tpu.dynamic_rotate %196 by %c8_i32 dim 1 : vector<64x128xf32>, i32 -> vector<64x128xf32>
    %210 = vector.extract_strided_slice %199 {offsets = [1, 0], sizes = [1, 128], strides = [1, 1]} : vector<9x128xf32> to vector<1x128xf32>
    %211 = vector.broadcast %210 : vector<1x128xf32> to vector<64x128xf32>
    %212 = arith.mulf %209, %211 : vector<64x128xf32>
    %213 = vector.extract_strided_slice %197 {offsets = [0, 1], sizes = [64, 1], strides = [1, 1]} : vector<64x9xf32> to vector<64x1xf32>
    %214 = vector.broadcast %213 : vector<64x1xf32> to vector<64x128xf32>
    %215 = arith.mulf %212, %214 : vector<64x128xf32>
    %216 = arith.addf %208, %215 : vector<64x128xf32>
    %c7_i32 = arith.constant 7 : i32
    %217 = tpu.dynamic_rotate %196 by %c7_i32 dim 1 : vector<64x128xf32>, i32 -> vector<64x128xf32>
    %218 = vector.extract_strided_slice %199 {offsets = [2, 0], sizes = [1, 128], strides = [1, 1]} : vector<9x128xf32> to vector<1x128xf32>
    %219 = vector.broadcast %218 : vector<1x128xf32> to vector<64x128xf32>
    %220 = arith.mulf %217, %219 : vector<64x128xf32>
    %221 = vector.extract_strided_slice %197 {offsets = [0, 2], sizes = [64, 1], strides = [1, 1]} : vector<64x9xf32> to vector<64x1xf32>
    %222 = vector.broadcast %221 : vector<64x1xf32> to vector<64x128xf32>
    %223 = arith.mulf %220, %222 : vector<64x128xf32>
    %224 = arith.addf %216, %223 : vector<64x128xf32>
    %c1_i32 = arith.constant 1 : i32
    %225 = tpu.dynamic_rotate %196 by %c1_i32 dim 1 : vector<64x128xf32>, i32 -> vector<64x128xf32>
    %226 = vector.extract_strided_slice %199 {offsets = [3, 0], sizes = [1, 128], strides = [1, 1]} : vector<9x128xf32> to vector<1x128xf32>
    %227 = vector.broadcast %226 : vector<1x128xf32> to vector<64x128xf32>
    %228 = arith.mulf %225, %227 : vector<64x128xf32>
    %229 = vector.extract_strided_slice %197 {offsets = [0, 3], sizes = [64, 1], strides = [1, 1]} : vector<64x9xf32> to vector<64x1xf32>
    %230 = vector.broadcast %229 : vector<64x1xf32> to vector<64x128xf32>
    %231 = arith.mulf %228, %230 : vector<64x128xf32>
    %232 = arith.addf %224, %231 : vector<64x128xf32>
    %233 = vector.extract_strided_slice %199 {offsets = [4, 0], sizes = [1, 128], strides = [1, 1]} : vector<9x128xf32> to vector<1x128xf32>
    %234 = vector.broadcast %233 : vector<1x128xf32> to vector<64x128xf32>
    %235 = arith.mulf %196, %234 : vector<64x128xf32>
    %236 = vector.extract_strided_slice %197 {offsets = [0, 4], sizes = [64, 1], strides = [1, 1]} : vector<64x9xf32> to vector<64x1xf32>
    %237 = vector.broadcast %236 : vector<64x1xf32> to vector<64x128xf32>
    %238 = arith.mulf %235, %237 : vector<64x128xf32>
    %239 = arith.addf %232, %238 : vector<64x128xf32>
    %c127_i32 = arith.constant 127 : i32
    %240 = tpu.dynamic_rotate %196 by %c127_i32 dim 1 : vector<64x128xf32>, i32 -> vector<64x128xf32>
    %241 = vector.extract_strided_slice %199 {offsets = [5, 0], sizes = [1, 128], strides = [1, 1]} : vector<9x128xf32> to vector<1x128xf32>
    %242 = vector.broadcast %241 : vector<1x128xf32> to vector<64x128xf32>
    %243 = arith.mulf %240, %242 : vector<64x128xf32>
    %244 = vector.extract_strided_slice %197 {offsets = [0, 5], sizes = [64, 1], strides = [1, 1]} : vector<64x9xf32> to vector<64x1xf32>
    %245 = vector.broadcast %244 : vector<64x1xf32> to vector<64x128xf32>
    %246 = arith.mulf %243, %245 : vector<64x128xf32>
    %247 = arith.addf %239, %246 : vector<64x128xf32>
    %c121_i32 = arith.constant 121 : i32
    %248 = tpu.dynamic_rotate %196 by %c121_i32 dim 1 : vector<64x128xf32>, i32 -> vector<64x128xf32>
    %249 = vector.extract_strided_slice %199 {offsets = [6, 0], sizes = [1, 128], strides = [1, 1]} : vector<9x128xf32> to vector<1x128xf32>
    %250 = vector.broadcast %249 : vector<1x128xf32> to vector<64x128xf32>
    %251 = arith.mulf %248, %250 : vector<64x128xf32>
    %252 = vector.extract_strided_slice %197 {offsets = [0, 6], sizes = [64, 1], strides = [1, 1]} : vector<64x9xf32> to vector<64x1xf32>
    %253 = vector.broadcast %252 : vector<64x1xf32> to vector<64x128xf32>
    %254 = arith.mulf %251, %253 : vector<64x128xf32>
    %255 = arith.addf %247, %254 : vector<64x128xf32>
    %c120_i32 = arith.constant 120 : i32
    %256 = tpu.dynamic_rotate %196 by %c120_i32 dim 1 : vector<64x128xf32>, i32 -> vector<64x128xf32>
    %257 = vector.extract_strided_slice %199 {offsets = [7, 0], sizes = [1, 128], strides = [1, 1]} : vector<9x128xf32> to vector<1x128xf32>
    %258 = vector.broadcast %257 : vector<1x128xf32> to vector<64x128xf32>
    %259 = arith.mulf %256, %258 : vector<64x128xf32>
    %260 = vector.extract_strided_slice %197 {offsets = [0, 7], sizes = [64, 1], strides = [1, 1]} : vector<64x9xf32> to vector<64x1xf32>
    %261 = vector.broadcast %260 : vector<64x1xf32> to vector<64x128xf32>
    %262 = arith.mulf %259, %261 : vector<64x128xf32>
    %263 = arith.addf %255, %262 : vector<64x128xf32>
    %c119_i32 = arith.constant 119 : i32
    %264 = tpu.dynamic_rotate %196 by %c119_i32 dim 1 : vector<64x128xf32>, i32 -> vector<64x128xf32>
    %265 = vector.extract_strided_slice %199 {offsets = [8, 0], sizes = [1, 128], strides = [1, 1]} : vector<9x128xf32> to vector<1x128xf32>
    %266 = vector.broadcast %265 : vector<1x128xf32> to vector<64x128xf32>
    %267 = arith.mulf %264, %266 : vector<64x128xf32>
    %268 = vector.extract_strided_slice %197 {offsets = [0, 8], sizes = [64, 1], strides = [1, 1]} : vector<64x9xf32> to vector<64x1xf32>
    %269 = vector.broadcast %268 : vector<64x1xf32> to vector<64x128xf32>
    %270 = arith.mulf %267, %269 : vector<64x128xf32>
    %271 = arith.addf %263, %270 : vector<64x128xf32>
    %272 = vector.broadcast %198 : vector<64x1xf32> to vector<64x128xf32>
    %273 = arith.addf %271, %272 : vector<64x128xf32>
    %274 = vector.extract_strided_slice %273 {offsets = [0, 0], sizes = [32, 128], strides = [1, 1]} : vector<64x128xf32> to vector<32x128xf32>
    %cst_90 = arith.constant 5.000000e-01 : f32
    %275 = vector.broadcast %cst_90 : f32 to vector<32x128xf32>
    %276 = arith.mulf %275, %274 : vector<32x128xf32>
    %cst_91 = arith.constant 1.41421354 : f32
    %277 = vector.broadcast %cst_91 : f32 to vector<32x128xf32>
    %278 = arith.divf %274, %277 : vector<32x128xf32>
    %279 = math.absf %278 : vector<32x128xf32>
    %cst_92 = arith.constant 0.327591091 : f32
    %280 = vector.broadcast %cst_92 : f32 to vector<32x128xf32>
    %281 = arith.mulf %280, %279 : vector<32x128xf32>
    %cst_93 = arith.constant 1.000000e+00 : f32
    %282 = vector.broadcast %cst_93 : f32 to vector<32x128xf32>
    %283 = arith.addf %282, %281 : vector<32x128xf32>
    %cst_94 = arith.constant 1.000000e+00 : f32
    %284 = vector.broadcast %cst_94 : f32 to vector<32x128xf32>
    %285 = arith.divf %284, %283 : vector<32x128xf32>
    %cst_95 = arith.constant 1.06140542 : f32
    %286 = vector.broadcast %cst_95 : f32 to vector<32x128xf32>
    %287 = arith.mulf %286, %285 : vector<32x128xf32>
    %cst_96 = arith.constant -1.45315206 : f32
    %288 = vector.broadcast %cst_96 : f32 to vector<32x128xf32>
    %289 = arith.addf %287, %288 : vector<32x128xf32>
    %290 = arith.mulf %289, %285 : vector<32x128xf32>
    %cst_97 = arith.constant 1.42141378 : f32
    %291 = vector.broadcast %cst_97 : f32 to vector<32x128xf32>
    %292 = arith.addf %290, %291 : vector<32x128xf32>
    %293 = arith.mulf %292, %285 : vector<32x128xf32>
    %cst_98 = arith.constant -0.284496725 : f32
    %294 = vector.broadcast %cst_98 : f32 to vector<32x128xf32>
    %295 = arith.addf %293, %294 : vector<32x128xf32>
    %296 = arith.mulf %295, %285 : vector<32x128xf32>
    %cst_99 = arith.constant 0.254829586 : f32
    %297 = vector.broadcast %cst_99 : f32 to vector<32x128xf32>
    %298 = arith.addf %296, %297 : vector<32x128xf32>
    %299 = arith.mulf %298, %285 : vector<32x128xf32>
    %cst_100 = arith.constant 0.000000e+00 : f32
    %300 = vector.broadcast %cst_100 : f32 to vector<32x128xf32>
    %301 = arith.subf %300, %279 : vector<32x128xf32>
    %302 = arith.mulf %301, %279 : vector<32x128xf32>
    %303 = math.exp %302 : vector<32x128xf32>
    %304 = arith.mulf %299, %303 : vector<32x128xf32>
    %cst_101 = arith.constant 1.000000e+00 : f32
    %305 = vector.broadcast %cst_101 : f32 to vector<32x128xf32>
    %306 = arith.subf %305, %304 : vector<32x128xf32>
    %cst_102 = arith.constant 0.000000e+00 : f32
    %307 = vector.broadcast %cst_102 : f32 to vector<32x128xf32>
    %308 = arith.cmpf olt, %278, %307 : vector<32x128xf32>
    %cst_103 = arith.constant 0.000000e+00 : f32
    %309 = vector.broadcast %cst_103 : f32 to vector<32x128xf32>
    %310 = arith.subf %309, %306 : vector<32x128xf32>
    %311 = arith.select %308, %310, %306 : vector<32x128xi1>, vector<32x128xf32>
    %cst_104 = arith.constant 1.000000e+00 : f32
    %312 = vector.broadcast %cst_104 : f32 to vector<32x128xf32>
    %313 = arith.addf %312, %311 : vector<32x128xf32>
    %314 = arith.mulf %276, %313 : vector<32x128xf32>
    %315 = vector.extract_strided_slice %273 {offsets = [32, 0], sizes = [32, 128], strides = [1, 1]} : vector<64x128xf32> to vector<32x128xf32>
    %316 = arith.mulf %314, %315 : vector<32x128xf32>
    %c0_105 = arith.constant 0 : index
    %c0_106 = arith.constant 0 : index
    %317 = vector.load %arg20[%c0_105, %c0_106] : memref<16x32xbf16, #tpu.memory_space<vmem>>, vector<16x32xbf16>
    %318 = arith.truncf %316 : vector<32x128xf32> to vector<32x128xbf16>
    %cst_107 = arith.constant dense<0.000000e+00> : vector<16x128xf32>
    %319 = tpu.matmul %317, %318, %cst_107 {dimension_numbers = #tpu.dot_dimension_numbers<[1], [0], [0], [1], [0, 0, 1, 1], [], []>} : vector<16x32xbf16>, vector<32x128xbf16>, vector<16x128xf32> -> vector<16x128xf32>
    %c0_108 = arith.constant 0 : index
    %c0_109 = arith.constant 0 : index
    %320 = vector.load %arg21[%c0_108, %c0_109] : memref<16x1xf32, #tpu.memory_space<vmem>>, vector<16x1xf32>
    %321 = vector.broadcast %320 : vector<16x1xf32> to vector<16x128xf32>
    %322 = arith.addf %319, %321 : vector<16x128xf32>
    %323 = arith.addf %168, %322 : vector<16x128xf32>
    %324 = vector.extract_strided_slice %323 {offsets = [0, 0], sizes = [16, 64], strides = [1, 1]} : vector<16x128xf32> to vector<16x64xf32>
    %c0_110 = arith.constant 0 : index
    %c0_111 = arith.constant 0 : index
    %c0_112 = arith.constant 0 : index
    %325 = vector.load %arg22[%c0_110, %c0_111, %c0_112] : memref<2x16x64xf32, #tpu.memory_space<vmem>>, vector<1x16x64xf32>
    %326 = vector.shape_cast %325 : vector<1x16x64xf32> to vector<16x64xf32>
    %327 = vector.shape_cast %324 : vector<16x64xf32> to vector<1x16x64xf32>
    tpu.vector_store %arg22[%c0_110, %c0_111, %c0_112], %327 {strides = array<i32>} : memref<2x16x64xf32, #tpu.memory_space<vmem>>, vector<1x16x64xf32>,
    %328 = vector.extract_strided_slice %323 {offsets = [0, 64], sizes = [16, 64], strides = [1, 1]} : vector<16x128xf32> to vector<16x64xf32>
    %c1_113 = arith.constant 1 : index
    %c0_114 = arith.constant 0 : index
    %c0_115 = arith.constant 0 : index
    %329 = vector.load %arg22[%c1_113, %c0_114, %c0_115] : memref<2x16x64xf32, #tpu.memory_space<vmem>>, vector<1x16x64xf32>
    %330 = vector.shape_cast %329 : vector<1x16x64xf32> to vector<16x64xf32>
    %331 = vector.shape_cast %328 : vector<16x64xf32> to vector<1x16x64xf32>
    tpu.vector_store %arg22[%c1_113, %c0_114, %c0_115], %331 {strides = array<i32>} : memref<2x16x64xf32, #tpu.memory_space<vmem>>, vector<1x16x64xf32>,
    return
  }
}

</mosaic_0001>

<llo_original>
// kernel: transformer_block_forward.2
$region0: #{transformer_block_forward.2}
  #allocation0 [shape = 'u32[]', space=smem, size = 0x4, offset = 0x4, fixed_abs, tag = 'smem constant byte address 0x4 - core index']
  #allocation1 [shape = 'u32[72,128]{1,0:T(1,128)}', space=vmem, size = 0x9000, scoped, tag = 'internal scratch']
  %s0 = inlined_call_operand.vmem [shape: f32[2,16,64], index: 0, kind: input, shape index: {}]
  %s1 = inlined_call_operand.vmem [shape: f32[16,1], index: 1, kind: input, shape index: {}]
  %s2 = inlined_call_operand.vmem [shape: f32[16,1], index: 2, kind: input, shape index: {}]
  %s3 = inlined_call_operand.vmem [shape: bf16[48,16], index: 3, kind: input, shape index: {}]
  %s4 = inlined_call_operand.vmem [shape: f32[48,1], index: 4, kind: input, shape index: {}]
  %s5 = inlined_call_operand.vmem [shape: f32[48,9], index: 5, kind: input, shape index: {}]
  %s6 = inlined_call_operand.vmem [shape: f32[48,1], index: 6, kind: input, shape index: {}]
  %s7 = inlined_call_operand.vmem [shape: f32[9,128], index: 7, kind: input, shape index: {}]
  %s8 = inlined_call_operand.vmem [shape: f32[48,128], index: 8, kind: output, shape index: {0}]
  %s9 = inlined_call_operand.vmem [shape: f32[16,64], index: 9, kind: output, shape index: {1}]
  %10 = xla_tuple %s8, %s9
  %s11 = sld [smem:[#allocation0]]
  $region50: #{transformer_block_forward.2} parent=0
    _
  %s13 = ssub.s32 1, %s11
  %s14 = scalar_select 0, %s13, %s11
  // Predicated region
  $region2: #{transformer_block_forward.2} parent=0 // pred_check
    _
  $region3: #{transformer_block_forward.2} parent=0 // pred_check_branch
    %16 = sbr.rel (0) target = $region5
  $region4: #{transformer_block_forward.2} parent=0 // pred_region
    _
  $region5: #{transformer_block_forward.2} parent=0 // pred_fallthru
    _
  // Predicated region
  $region6: #{transformer_block_forward.2} parent=0 // pred_check
    _
  $region7: #{transformer_block_forward.2} parent=0 // pred_check_branch
    %18 = sbr.rel (0) target = $region9
  $region8: #{transformer_block_forward.2} parent=0 // pred_region
    _
  $region9: #{transformer_block_forward.2} parent=0 // pred_fallthru
    _
  // Predicated region
  $region10: #{transformer_block_forward.2} parent=0 // pred_check
    _
  $region11: #{transformer_block_forward.2} parent=0 // pred_check_branch
    %20 = sbr.rel (0) target = $region13
  $region12: #{transformer_block_forward.2} parent=0 // pred_region
    _
  $region13: #{transformer_block_forward.2} parent=0 // pred_fallthru
    _
  // Predicated region
  $region14: #{transformer_block_forward.2} parent=0 // pred_check
    _
  $region15: #{transformer_block_forward.2} parent=0 // pred_check_branch
    %22 = sbr.rel (0) target = $region17
  $region16: #{transformer_block_forward.2} parent=0 // pred_region
    _
  $region17: #{transformer_block_forward.2} parent=0 // pred_fallthru
    _
  // Predicated region
  $region18: #{transformer_block_forward.2} parent=0 // pred_check
    _
  $region19: #{transformer_block_forward.2} parent=0 // pred_check_branch
    %24 = sbr.rel (0) target = $region21
  $region20: #{transformer_block_forward.2} parent=0 // pred_region
    _
  $region21: #{transformer_block_forward.2} parent=0 // pred_fallthru
    _
  // Predicated region
  $region22: #{transformer_block_forward.2} parent=0 // pred_check
    _
  $region23: #{transformer_block_forward.2} parent=0 // pred_check_branch
    %26 = sbr.rel (0) target = $region25
  $region24: #{transformer_block_forward.2} parent=0 // pred_region
    _
  $region25: #{transformer_block_forward.2} parent=0 // pred_fallthru
    _
  // Predicated region
  $region26: #{transformer_block_forward.2} parent=0 // pred_check
    _
  $region27: #{transformer_block_forward.2} parent=0 // pred_check_branch
    %28 = sbr.rel (0) target = $region29
  $region28: #{transformer_block_forward.2} parent=0 // pred_region
    _
  $region29: #{transformer_block_forward.2} parent=0 // pred_fallthru
    _
  // Predicated region
  $region30: #{transformer_block_forward.2} parent=0 // pred_check
    _
  $region31: #{transformer_block_forward.2} parent=0 // pred_check_branch
    %30 = sbr.rel (0) target = $region33
  $region32: #{transformer_block_forward.2} parent=0 // pred_region
    _
  $region33: #{transformer_block_forward.2} parent=0 // pred_fallthru
    _
  %v32 = vld [vmem:[%s0] sm:$0xff]
  %v33 = vld [vmem:[%s0 + $0x8] sm:$0xff]
  %s34 = scalar_lea.vmem %s0, 16
  %v35 = vld [vmem:[%s34] sm:$0xff]
  %v36 = vld [vmem:[%s34 + $0x8] sm:$0xff]
  %39 = vrot.lane.b32.xlu0 %v35, 64
  %v40 = vpop.permute.xlu0 %39
  %41 = vrot.lane.b32.xlu0 %v36, 64
  %v42 = vpop.permute.xlu0 %41
  %vm45 = vcmask 523264
  %v46 = vsel %vm45, %v32, %v40
  %v47 = vsel %vm45, %v33, %v42
  %v48 = vld [vmem:[%s1] sm:$0xff]
  %v49 = vld [vmem:[%s1 + $0x8] sm:$0xff]
  %v50 = vld [vmem:[%s2] sm:$0xff]
  %v51 = vld [vmem:[%s2 + $0x8] sm:$0xff]
  %v52 = vadd.f32 %v46, %v47
  %v53 = vrot.slane %v52, 4
  %v54 = vadd.f32 %v52, %v53
  %v55 = vrot.slane %v54, 2
  %v56 = vadd.f32 %v54, %v55
  %v57 = vrot.slane %v56, 1
  %v58 = vadd.f32 %v56, %v57
  %v59 = vrcp.pop 16.0
  %v60 = vmul.f32 16.0, %v59
  %v61 = vsub.f32 1.0, %v60
  %v62 = vmul.f32 %v59, %v61
  %v63 = vadd.f32 %v59, %v62
  %vm64 = vweird.f32 %v59
  %v65 = vsel %vm64, %v59, %v63
  %v66 = vmul.f32 %v58, %v65
  %v67 = vsub.f32 %v46, %v66
  %v68 = vsub.f32 %v47, %v66
  %v69 = vmul.f32 %v67, %v67
  %v70 = vmul.f32 %v68, %v68
  %v71 = vadd.f32 %v69, %v70
  %v72 = vrot.slane %v71, 4
  %v73 = vadd.f32 %v71, %v72
  %v74 = vrot.slane %v73, 2
  %v75 = vadd.f32 %v73, %v74
  %v76 = vrot.slane %v75, 1
  %v77 = vadd.f32 %v75, %v76
  %v78 = vmul.f32 %v77, %v65
  %v79 = vadd.f32 %v78, 1e-05
  %v80 = vrsqrt.pop %v79
  %v81 = vmul.f32 %v80, %v79
  %v82 = vmul.f32 %v81, %v80
  %v83 = vmul.f32 0.5, %v82
  %v84 = vsub.f32 1.5, %v83
  %v85 = vmul.f32 %v80, %v84
  %vm86 = vweird.f32 %v79
  %vm87 = vweird.f32 %v80
  %vm88 = vmor %vm86, %vm87
  %v89 = vsel %vm88, %v80, %v85
  %v90 = vmul.f32 %v67, %v89
  %v91 = vmul.f32 %v68, %v89
  %93 = vset.pattern.permute.xlu0 0
  %94 = vperm.xlu0 %93, %v48
  %v95 = vpop.permute.xlu0 %94
  %98 = vset.pattern.permute.xlu0 0
  %99 = vperm.xlu0 %98, %v49
  %v100 = vpop.permute.xlu0 %99
  %v102 = vmul.f32 %v90, %v95
  %v103 = vmul.f32 %v91, %v100
  %105 = vset.pattern.permute.xlu0 0
  %106 = vperm.xlu0 %105, %v50
  %v107 = vpop.permute.xlu0 %106
  %110 = vset.pattern.permute.xlu0 0
  %111 = vperm.xlu0 %110, %v51
  %v112 = vpop.permute.xlu0 %111
  %v114 = vadd.f32 %v102, %v107
  %v115 = vadd.f32 %v103, %v112
  %v116 = vld [vmem:[%s3] sm:$0xf]
  %v117 = vld [vmem:[%s3 + $0x4] sm:$0xf]
  %v118 = vld [vmem:[%s3 + $0x8] sm:$0xf]
  %v119 = vld [vmem:[%s3 + $0xc] sm:$0xf]
  %v120 = vld [vmem:[%s3 + $0x10] sm:$0xf]
  %v121 = vld [vmem:[%s3 + $0x14] sm:$0xf]
  %v122 = vpack.c.bf16 %v115, %v114
  %v123 = vld [vmem:[%s4] sm:$0xff]
  %v124 = vld [vmem:[%s4 + $0x8] sm:$0xff]
  %v125 = vld [vmem:[%s4 + $0x10] sm:$0xff]
  %v126 = vld [vmem:[%s4 + $0x18] sm:$0xff]
  %v127 = vld [vmem:[%s4 + $0x20] sm:$0xff]
  %v128 = vld [vmem:[%s4 + $0x28] sm:$0xff]
  %130 = vset.pattern.permute.xlu0 0
  %131 = vperm.xlu0 %130, %v123
  %v132 = vpop.permute.xlu0 %131
  %135 = vset.pattern.permute.xlu0 0
  %136 = vperm.xlu0 %135, %v124
  %v137 = vpop.permute.xlu0 %136
  %140 = vset.pattern.permute.xlu0 0
  %141 = vperm.xlu0 %140, %v125
  %v142 = vpop.permute.xlu0 %141
  %145 = vset.pattern.permute.xlu0 0
  %146 = vperm.xlu0 %145, %v126
  %v147 = vpop.permute.xlu0 %146
  %150 = vset.pattern.permute.xlu0 0
  %151 = vperm.xlu0 %150, %v127
  %v152 = vpop.permute.xlu0 %151
  %155 = vset.pattern.permute.xlu0 0
  %156 = vperm.xlu0 %155, %v128
  %v157 = vpop.permute.xlu0 %156
  %v165 = vunpack.c.l.b16 %v116
  %v166 = vunpack.c.l.b16 %v117
  %v167 = vunpack.c.l.b16 %v118
  %v168 = vunpack.c.l.b16 %v119
  %v169 = vunpack.c.l.b16 %v120
  %v170 = vunpack.c.l.b16 %v121
  %v171 = vpack.c.b16 %v166, %v165
  %v172 = vpack.c.b16 %v168, %v167
  %v173 = vpack.c.b16 %v170, %v169
  %vm174 = vcmask 130048
  %v176 = vsel %vm174, %v171, 0
  %v179 = vsel %vm174, %v172, 0
  %v182 = vsel %vm174, %v173, 0
  %184 = vmatpush.bf16.msra.mxu0 0
  %185 = vmatpush.bf16.msra.mxu0 0
  %186 = vmatpush.bf16.msra.mxu0 0
  %187 = vmatpush.bf16.msra.mxu0 0
  %188 = vmatpush.bf16.msra.mxu0 0
  %189 = vmatpush.bf16.msra.mxu0 0
  %190 = vmatpush.bf16.msra.mxu0 0
  %191 = vmatpush.bf16.msra.mxu0 %v122
  %192 = vmatmul.bf16.gmra.mxu0 %v176
  %v193 = vpop.f32.mrf.mxu0
  %v194 = vadd.f32 %v132, %v193
  %v195 = vpop.f32.mrf.mxu0
  %v196 = vadd.f32 %v137, %v195
  %197 = vmatmul.bf16.gmra.mxu0 %v179
  %v198 = vpop.f32.mrf.mxu0
  %v199 = vadd.f32 %v142, %v198
  %v200 = vpop.f32.mrf.mxu0
  %v201 = vadd.f32 %v147, %v200
  %202 = vmatmul.bf16.gmra.mxu0 %v182
  %v203 = vpop.f32.mrf.mxu0
  %v204 = vadd.f32 %v152, %v203
  %v205 = vpop.f32.mrf.mxu0
  %v206 = vadd.f32 %v157, %v205
  %207 = vdwg.mxu0
  %v208 = vld [vmem:[%s5] sm:$0xff]
  %v209 = vld [vmem:[%s5 + $0x8] sm:$0xff]
  %v210 = vld [vmem:[%s5 + $0x10] sm:$0xff]
  %v211 = vld [vmem:[%s5 + $0x18] sm:$0xff]
  %v212 = vld [vmem:[%s5 + $0x20] sm:$0xff]
  %v213 = vld [vmem:[%s5 + $0x28] sm:$0xff]
  %v214 = vld [vmem:[%s6] sm:$0xff]
  %v215 = vld [vmem:[%s6 + $0x8] sm:$0xff]
  %v216 = vld [vmem:[%s6 + $0x10] sm:$0xff]
  %v217 = vld [vmem:[%s6 + $0x18] sm:$0xff]
  %v218 = vld [vmem:[%s6 + $0x20] sm:$0xff]
  %v219 = vld [vmem:[%s6 + $0x28] sm:$0xff]
  %v220 = vld [vmem:[%s7] sm:$0xff]
  %v221 = vld [vmem:[%s7 + $0x8] sm:$0x1]
  %222 = vrot.lane.b32.xlu0 %v194, 9
  %v223 = vpop.permute.xlu0 %222
  %224 = vrot.lane.b32.xlu0 %v196, 9
  %v225 = vpop.permute.xlu0 %224
  %226 = vrot.lane.b32.xlu0 %v199, 9
  %v227 = vpop.permute.xlu0 %226
  %228 = vrot.lane.b32.xlu0 %v201, 9
  %v229 = vpop.permute.xlu0 %228
  %230 = vrot.lane.b32.xlu0 %v204, 9
  %v231 = vpop.permute.xlu0 %230
  %232 = vrot.lane.b32.xlu0 %v206, 9
  %v233 = vpop.permute.xlu0 %232
  %v234 = vperm.slane %v220, 0
  %v235 = vmul.f32 %v223, %v234
  %v236 = vmul.f32 %v225, %v234
  %v237 = vmul.f32 %v227, %v234
  %v238 = vmul.f32 %v229, %v234
  %v239 = vmul.f32 %v231, %v234
  %v240 = vmul.f32 %v233, %v234
  %242 = vset.pattern.permute.xlu0 0
  %243 = vperm.xlu0 %242, %v208
  %v244 = vpop.permute.xlu0 %243
  %247 = vset.pattern.permute.xlu0 0
  %248 = vperm.xlu0 %247, %v209
  %v249 = vpop.permute.xlu0 %248
  %252 = vset.pattern.permute.xlu0 0
  %253 = vperm.xlu0 %252, %v210
  %v254 = vpop.permute.xlu0 %253
  %257 = vset.pattern.permute.xlu0 0
  %258 = vperm.xlu0 %257, %v211
  %v259 = vpop.permute.xlu0 %258
  %262 = vset.pattern.permute.xlu0 0
  %263 = vperm.xlu0 %262, %v212
  %v264 = vpop.permute.xlu0 %263
  %267 = vset.pattern.permute.xlu0 0
  %268 = vperm.xlu0 %267, %v213
  %v269 = vpop.permute.xlu0 %268
  %v271 = vmul.f32 %v235, %v244
  %v272 = vmul.f32 %v236, %v249
  %v273 = vmul.f32 %v237, %v254
  %v274 = vmul.f32 %v238, %v259
  %v275 = vmul.f32 %v239, %v264
  %v276 = vmul.f32 %v240, %v269
  %v277 = vadd.f32 %v271, 0.0
  %v278 = vadd.f32 %v272, 0.0
  %v279 = vadd.f32 %v273, 0.0
  %v280 = vadd.f32 %v274, 0.0
  %v281 = vadd.f32 %v275, 0.0
  %v282 = vadd.f32 %v276, 0.0
  %283 = vrot.lane.b32.xlu0 %v194, 8
  %v284 = vpop.permute.xlu0 %283
  %285 = vrot.lane.b32.xlu0 %v196, 8
  %v286 = vpop.permute.xlu0 %285
  %287 = vrot.lane.b32.xlu0 %v199, 8
  %v288 = vpop.permute.xlu0 %287
  %289 = vrot.lane.b32.xlu0 %v201, 8
  %v290 = vpop.permute.xlu0 %289
  %291 = vrot.lane.b32.xlu0 %v204, 8
  %v292 = vpop.permute.xlu0 %291
  %293 = vrot.lane.b32.xlu0 %v206, 8
  %v294 = vpop.permute.xlu0 %293
  %v295 = vperm.slane %v220, 1
  %v296 = vmul.f32 %v284, %v295
  %v297 = vmul.f32 %v286, %v295
  %v298 = vmul.f32 %v288, %v295
  %v299 = vmul.f32 %v290, %v295
  %v300 = vmul.f32 %v292, %v295
  %v301 = vmul.f32 %v294, %v295
  %302 = vset.pattern.permute.xlu0 1
  %303 = vperm.xlu0 %302, %v208
  %v304 = vpop.permute.xlu0 %303
  %306 = vset.pattern.permute.xlu0 1
  %307 = vperm.xlu0 %306, %v209
  %v308 = vpop.permute.xlu0 %307
  %310 = vset.pattern.permute.xlu0 1
  %311 = vperm.xlu0 %310, %v210
  %v312 = vpop.permute.xlu0 %311
  %314 = vset.pattern.permute.xlu0 1
  %315 = vperm.xlu0 %314, %v211
  %v316 = vpop.permute.xlu0 %315
  %318 = vset.pattern.permute.xlu0 1
  %319 = vperm.xlu0 %318, %v212
  %v320 = vpop.permute.xlu0 %319
  %322 = vset.pattern.permute.xlu0 1
  %323 = vperm.xlu0 %322, %v213
  %v324 = vpop.permute.xlu0 %323
  %v326 = vmul.f32 %v296, %v304
  %v327 = vmul.f32 %v297, %v308
  %v328 = vmul.f32 %v298, %v312
  %v329 = vmul.f32 %v299, %v316
  %v330 = vmul.f32 %v300, %v320
  %v331 = vmul.f32 %v301, %v324
  %v332 = vadd.f32 %v277, %v326
  %v333 = vadd.f32 %v278, %v327
  %v334 = vadd.f32 %v279, %v328
  %v335 = vadd.f32 %v280, %v329
  %v336 = vadd.f32 %v281, %v330
  %v337 = vadd.f32 %v282, %v331
  %338 = vrot.lane.b32.xlu0 %v194, 7
  %v339 = vpop.permute.xlu0 %338
  %340 = vrot.lane.b32.xlu0 %v196, 7
  %v341 = vpop.permute.xlu0 %340
  %342 = vrot.lane.b32.xlu0 %v199, 7
  %v343 = vpop.permute.xlu0 %342
  %344 = vrot.lane.b32.xlu0 %v201, 7
  %v345 = vpop.permute.xlu0 %344
  %346 = vrot.lane.b32.xlu0 %v204, 7
  %v347 = vpop.permute.xlu0 %346
  %348 = vrot.lane.b32.xlu0 %v206, 7
  %v349 = vpop.permute.xlu0 %348
  %v350 = vperm.slane %v220, 2
  %v351 = vmul.f32 %v339, %v350
  %v352 = vmul.f32 %v341, %v350
  %v353 = vmul.f32 %v343, %v350
  %v354 = vmul.f32 %v345, %v350
  %v355 = vmul.f32 %v347, %v350
  %v356 = vmul.f32 %v349, %v350
  %357 = vset.pattern.permute.xlu0 2
  %358 = vperm.xlu0 %357, %v208
  %v359 = vpop.permute.xlu0 %358
  %361 = vset.pattern.permute.xlu0 2
  %362 = vperm.xlu0 %361, %v209
  %v363 = vpop.permute.xlu0 %362
  %365 = vset.pattern.permute.xlu0 2
  %366 = vperm.xlu0 %365, %v210
  %v367 = vpop.permute.xlu0 %366
  %369 = vset.pattern.permute.xlu0 2
  %370 = vperm.xlu0 %369, %v211
  %v371 = vpop.permute.xlu0 %370
  %373 = vset.pattern.permute.xlu0 2
  %374 = vperm.xlu0 %373, %v212
  %v375 = vpop.permute.xlu0 %374
  %377 = vset.pattern.permute.xlu0 2
  %378 = vperm.xlu0 %377, %v213
  %v379 = vpop.permute.xlu0 %378
  %v381 = vmul.f32 %v351, %v359
  %v382 = vmul.f32 %v352, %v363
  %v383 = vmul.f32 %v353, %v367
  %v384 = vmul.f32 %v354, %v371
  %v385 = vmul.f32 %v355, %v375
  %v386 = vmul.f32 %v356, %v379
  %v387 = vadd.f32 %v332, %v381
  %v388 = vadd.f32 %v333, %v382
  %v389 = vadd.f32 %v334, %v383
  %v390 = vadd.f32 %v335, %v384
  %v391 = vadd.f32 %v336, %v385
  %v392 = vadd.f32 %v337, %v386
  %393 = vrot.lane.b32.xlu0 %v194, 1
  %v394 = vpop.permute.xlu0 %393
  %395 = vrot.lane.b32.xlu0 %v196, 1
  %v396 = vpop.permute.xlu0 %395
  %397 = vrot.lane.b32.xlu0 %v199, 1
  %v398 = vpop.permute.xlu0 %397
  %399 = vrot.lane.b32.xlu0 %v201, 1
  %v400 = vpop.permute.xlu0 %399
  %401 = vrot.lane.b32.xlu0 %v204, 1
  %v402 = vpop.permute.xlu0 %401
  %403 = vrot.lane.b32.xlu0 %v206, 1
  %v404 = vpop.permute.xlu0 %403
  %v405 = vperm.slane %v220, 3
  %v406 = vmul.f32 %v394, %v405
  %v407 = vmul.f32 %v396, %v405
  %v408 = vmul.f32 %v398, %v405
  %v409 = vmul.f32 %v400, %v405
  %v410 = vmul.f32 %v402, %v405
  %v411 = vmul.f32 %v404, %v405
  %412 = vset.pattern.permute.xlu0 3
  %413 = vperm.xlu0 %412, %v208
  %v414 = vpop.permute.xlu0 %413
  %416 = vset.pattern.permute.xlu0 3
  %417 = vperm.xlu0 %416, %v209
  %v418 = vpop.permute.xlu0 %417
  %420 = vset.pattern.permute.xlu0 3
  %421 = vperm.xlu0 %420, %v210
  %v422 = vpop.permute.xlu0 %421
  %424 = vset.pattern.permute.xlu0 3
  %425 = vperm.xlu0 %424, %v211
  %v426 = vpop.permute.xlu0 %425
  %428 = vset.pattern.permute.xlu0 3
  %429 = vperm.xlu0 %428, %v212
  %v430 = vpop.permute.xlu0 %429
  %432 = vset.pattern.permute.xlu0 3
  %433 = vperm.xlu0 %432, %v213
  %v434 = vpop.permute.xlu0 %433
  %v436 = vmul.f32 %v406, %v414
  %v437 = vmul.f32 %v407, %v418
  %v438 = vmul.f32 %v408, %v422
  %v439 = vmul.f32 %v409, %v426
  %v440 = vmul.f32 %v410, %v430
  %v441 = vmul.f32 %v411, %v434
  %v442 = vadd.f32 %v387, %v436
  %v443 = vadd.f32 %v388, %v437
  %v444 = vadd.f32 %v389, %v438
  %v445 = vadd.f32 %v390, %v439
  %v446 = vadd.f32 %v391, %v440
  %v447 = vadd.f32 %v392, %v441
  %v448 = vperm.slane %v220, 4
  %v449 = vmul.f32 %v194, %v448
  %v450 = vmul.f32 %v196, %v448
  %v451 = vmul.f32 %v199, %v448
  %v452 = vmul.f32 %v201, %v448
  %v453 = vmul.f32 %v204, %v448
  %v454 = vmul.f32 %v206, %v448
  %455 = vset.pattern.permute.xlu0 4
  %456 = vperm.xlu0 %455, %v208
  %v457 = vpop.permute.xlu0 %456
  %459 = vset.pattern.permute.xlu0 4
  %460 = vperm.xlu0 %459, %v209
  %v461 = vpop.permute.xlu0 %460
  %463 = vset.pattern.permute.xlu0 4
  %464 = vperm.xlu0 %463, %v210
  %v465 = vpop.permute.xlu0 %464
  %467 = vset.pattern.permute.xlu0 4
  %468 = vperm.xlu0 %467, %v211
  %v469 = vpop.permute.xlu0 %468
  %471 = vset.pattern.permute.xlu0 4
  %472 = vperm.xlu0 %471, %v212
  %v473 = vpop.permute.xlu0 %472
  %475 = vset.pattern.permute.xlu0 4
  %476 = vperm.xlu0 %475, %v213
  %v477 = vpop.permute.xlu0 %476
  %v479 = vmul.f32 %v449, %v457
  %v480 = vmul.f32 %v450, %v461
  %v481 = vmul.f32 %v451, %v465
  %v482 = vmul.f32 %v452, %v469
  %v483 = vmul.f32 %v453, %v473
  %v484 = vmul.f32 %v454, %v477
  %v485 = vadd.f32 %v442, %v479
  %v486 = vadd.f32 %v443, %v480
  %v487 = vadd.f32 %v444, %v481
  %v488 = vadd.f32 %v445, %v482
  %v489 = vadd.f32 %v446, %v483
  %v490 = vadd.f32 %v447, %v484
  %491 = vrot.lane.b32.xlu0 %v194, 127
  %v492 = vpop.permute.xlu0 %491
  %493 = vrot.lane.b32.xlu0 %v196, 127
  %v494 = vpop.permute.xlu0 %493
  %495 = vrot.lane.b32.xlu0 %v199, 127
  %v496 = vpop.permute.xlu0 %495
  %497 = vrot.lane.b32.xlu0 %v201, 127
  %v498 = vpop.permute.xlu0 %497
  %499 = vrot.lane.b32.xlu0 %v204, 127
  %v500 = vpop.permute.xlu0 %499
  %501 = vrot.lane.b32.xlu0 %v206, 127
  %v502 = vpop.permute.xlu0 %501
  %v503 = vperm.slane %v220, 5
  %v504 = vmul.f32 %v492, %v503
  %v505 = vmul.f32 %v494, %v503
  %v506 = vmul.f32 %v496, %v503
  %v507 = vmul.f32 %v498, %v503
  %v508 = vmul.f32 %v500, %v503
  %v509 = vmul.f32 %v502, %v503
  %510 = vset.pattern.permute.xlu0 5
  %511 = vperm.xlu0 %510, %v208
  %v512 = vpop.permute.xlu0 %511
  %514 = vset.pattern.permute.xlu0 5
  %515 = vperm.xlu0 %514, %v209
  %v516 = vpop.permute.xlu0 %515
  %518 = vset.pattern.permute.xlu0 5
  %519 = vperm.xlu0 %518, %v210
  %v520 = vpop.permute.xlu0 %519
  %522 = vset.pattern.permute.xlu0 5
  %523 = vperm.xlu0 %522, %v211
  %v524 = vpop.permute.xlu0 %523
  %526 = vset.pattern.permute.xlu0 5
  %527 = vperm.xlu0 %526, %v212
  %v528 = vpop.permute.xlu0 %527
  %530 = vset.pattern.permute.xlu0 5
  %531 = vperm.xlu0 %530, %v213
  %v532 = vpop.permute.xlu0 %531
  %v534 = vmul.f32 %v504, %v512
  %v535 = vmul.f32 %v505, %v516
  %v536 = vmul.f32 %v506, %v520
  %v537 = vmul.f32 %v507, %v524
  %v538 = vmul.f32 %v508, %v528
  %v539 = vmul.f32 %v509, %v532
  %v540 = vadd.f32 %v485, %v534
  %v541 = vadd.f32 %v486, %v535
  %v542 = vadd.f32 %v487, %v536
  %v543 = vadd.f32 %v488, %v537
  %v544 = vadd.f32 %v489, %v538
  %v545 = vadd.f32 %v490, %v539
  %546 = vrot.lane.b32.xlu0 %v194, 121
  %v547 = vpop.permute.xlu0 %546
  %548 = vrot.lane.b32.xlu0 %v196, 121
  %v549 = vpop.permute.xlu0 %548
  %550 = vrot.lane.b32.xlu0 %v199, 121
  %v551 = vpop.permute.xlu0 %550
  %552 = vrot.lane.b32.xlu0 %v201, 121
  %v553 = vpop.permute.xlu0 %552
  %554 = vrot.lane.b32.xlu0 %v204, 121
  %v555 = vpop.permute.xlu0 %554
  %556 = vrot.lane.b32.xlu0 %v206, 121
  %v557 = vpop.permute.xlu0 %556
  %v558 = vperm.slane %v220, 6
  %v559 = vmul.f32 %v547, %v558
  %v560 = vmul.f32 %v549, %v558
  %v561 = vmul.f32 %v551, %v558
  %v562 = vmul.f32 %v553, %v558
  %v563 = vmul.f32 %v555, %v558
  %v564 = vmul.f32 %v557, %v558
  %565 = vset.pattern.permute.xlu0 6
  %566 = vperm.xlu0 %565, %v208
  %v567 = vpop.permute.xlu0 %566
  %569 = vset.pattern.permute.xlu0 6
  %570 = vperm.xlu0 %569, %v209
  %v571 = vpop.permute.xlu0 %570
  %573 = vset.pattern.permute.xlu0 6
  %574 = vperm.xlu0 %573, %v210
  %v575 = vpop.permute.xlu0 %574
  %577 = vset.pattern.permute.xlu0 6
  %578 = vperm.xlu0 %577, %v211
  %v579 = vpop.permute.xlu0 %578
  %581 = vset.pattern.permute.xlu0 6
  %582 = vperm.xlu0 %581, %v212
  %v583 = vpop.permute.xlu0 %582
  %585 = vset.pattern.permute.xlu0 6
  %586 = vperm.xlu0 %585, %v213
  %v587 = vpop.permute.xlu0 %586
  %v589 = vmul.f32 %v559, %v567
  %v590 = vmul.f32 %v560, %v571
  %v591 = vmul.f32 %v561, %v575
  %v592 = vmul.f32 %v562, %v579
  %v593 = vmul.f32 %v563, %v583
  %v594 = vmul.f32 %v564, %v587
  %v595 = vadd.f32 %v540, %v589
  %v596 = vadd.f32 %v541, %v590
  %v597 = vadd.f32 %v542, %v591
  %v598 = vadd.f32 %v543, %v592
  %v599 = vadd.f32 %v544, %v593
  %v600 = vadd.f32 %v545, %v594
  %601 = vrot.lane.b32.xlu0 %v194, 120
  %v602 = vpop.permute.xlu0 %601
  %603 = vrot.lane.b32.xlu0 %v196, 120
  %v604 = vpop.permute.xlu0 %603
  %605 = vrot.lane.b32.xlu0 %v199, 120
  %v606 = vpop.permute.xlu0 %605
  %607 = vrot.lane.b32.xlu0 %v201, 120
  %v608 = vpop.permute.xlu0 %607
  %609 = vrot.lane.b32.xlu0 %v204, 120
  %v610 = vpop.permute.xlu0 %609
  %611 = vrot.lane.b32.xlu0 %v206, 120
  %v612 = vpop.permute.xlu0 %611
  %v613 = vperm.slane %v220, 7
  %v614 = vmul.f32 %v602, %v613
  %v615 = vmul.f32 %v604, %v613
  %v616 = vmul.f32 %v606, %v613
  %v617 = vmul.f32 %v608, %v613
  %v618 = vmul.f32 %v610, %v613
  %v619 = vmul.f32 %v612, %v613
  %620 = vset.pattern.permute.xlu0 7
  %621 = vperm.xlu0 %620, %v208
  %v622 = vpop.permute.xlu0 %621
  %624 = vset.pattern.permute.xlu0 7
  %625 = vperm.xlu0 %624, %v209
  %v626 = vpop.permute.xlu0 %625
  %628 = vset.pattern.permute.xlu0 7
  %629 = vperm.xlu0 %628, %v210
  %v630 = vpop.permute.xlu0 %629
  %632 = vset.pattern.permute.xlu0 7
  %633 = vperm.xlu0 %632, %v211
  %v634 = vpop.permute.xlu0 %633
  %636 = vset.pattern.permute.xlu0 7
  %637 = vperm.xlu0 %636, %v212
  %v638 = vpop.permute.xlu0 %637
  %640 = vset.pattern.permute.xlu0 7
  %641 = vperm.xlu0 %640, %v213
  %v642 = vpop.permute.xlu0 %641
  %v644 = vmul.f32 %v614, %v622
  %v645 = vmul.f32 %v615, %v626
  %v646 = vmul.f32 %v616, %v630
  %v647 = vmul.f32 %v617, %v634
  %v648 = vmul.f32 %v618, %v638
  %v649 = vmul.f32 %v619, %v642
  %v650 = vadd.f32 %v595, %v644
  %v651 = vadd.f32 %v596, %v645
  %v652 = vadd.f32 %v597, %v646
  %v653 = vadd.f32 %v598, %v647
  %v654 = vadd.f32 %v599, %v648
  %v655 = vadd.f32 %v600, %v649
  %656 = vrot.lane.b32.xlu0 %v194, 119
  %v657 = vpop.permute.xlu0 %656
  %658 = vrot.lane.b32.xlu0 %v196, 119
  %v659 = vpop.permute.xlu0 %658
  %660 = vrot.lane.b32.xlu0 %v199, 119
  %v661 = vpop.permute.xlu0 %660
  %662 = vrot.lane.b32.xlu0 %v201, 119
  %v663 = vpop.permute.xlu0 %662
  %664 = vrot.lane.b32.xlu0 %v204, 119
  %v665 = vpop.permute.xlu0 %664
  %666 = vrot.lane.b32.xlu0 %v206, 119
  %v667 = vpop.permute.xlu0 %666
  %v668 = vperm.slane %v221, 0
  %v669 = vmul.f32 %v657, %v668
  %v670 = vmul.f32 %v659, %v668
  %v671 = vmul.f32 %v661, %v668
  %v672 = vmul.f32 %v663, %v668
  %v673 = vmul.f32 %v665, %v668
  %v674 = vmul.f32 %v667, %v668
  %675 = vset.pattern.permute.xlu0 8
  %676 = vperm.xlu0 %675, %v208
  %v677 = vpop.permute.xlu0 %676
  %679 = vset.pattern.permute.xlu0 8
  %680 = vperm.xlu0 %679, %v209
  %v681 = vpop.permute.xlu0 %680
  %683 = vset.pattern.permute.xlu0 8
  %684 = vperm.xlu0 %683, %v210
  %v685 = vpop.permute.xlu0 %684
  %687 = vset.pattern.permute.xlu0 8
  %688 = vperm.xlu0 %687, %v211
  %v689 = vpop.permute.xlu0 %688
  %691 = vset.pattern.permute.xlu0 8
  %692 = vperm.xlu0 %691, %v212
  %v693 = vpop.permute.xlu0 %692
  %695 = vset.pattern.permute.xlu0 8
  %696 = vperm.xlu0 %695, %v213
  %v697 = vpop.permute.xlu0 %696
  %v699 = vmul.f32 %v669, %v677
  %v700 = vmul.f32 %v670, %v681
  %v701 = vmul.f32 %v671, %v685
  %v702 = vmul.f32 %v672, %v689
  %v703 = vmul.f32 %v673, %v693
  %v704 = vmul.f32 %v674, %v697
  %v705 = vadd.f32 %v650, %v699
  %v706 = vadd.f32 %v651, %v700
  %v707 = vadd.f32 %v652, %v701
  %v708 = vadd.f32 %v653, %v702
  %v709 = vadd.f32 %v654, %v703
  %v710 = vadd.f32 %v655, %v704
  %712 = vset.pattern.permute.xlu0 0
  %713 = vperm.xlu0 %712, %v214
  %v714 = vpop.permute.xlu0 %713
  %717 = vset.pattern.permute.xlu0 0
  %718 = vperm.xlu0 %717, %v215
  %v719 = vpop.permute.xlu0 %718
  %722 = vset.pattern.permute.xlu0 0
  %723 = vperm.xlu0 %722, %v216
  %v724 = vpop.permute.xlu0 %723
  %727 = vset.pattern.permute.xlu0 0
  %728 = vperm.xlu0 %727, %v217
  %v729 = vpop.permute.xlu0 %728
  %732 = vset.pattern.permute.xlu0 0
  %733 = vperm.xlu0 %732, %v218
  %v734 = vpop.permute.xlu0 %733
  %737 = vset.pattern.permute.xlu0 0
  %738 = vperm.xlu0 %737, %v219
  %v739 = vpop.permute.xlu0 %738
  %v741 = vadd.f32 %v705, %v714
  %v742 = vadd.f32 %v706, %v719
  %v743 = vadd.f32 %v707, %v724
  %v744 = vadd.f32 %v708, %v729
  %v745 = vadd.f32 %v709, %v734
  %v746 = vadd.f32 %v710, %v739
  %747 = vst [vmem:[%s8] sm:$0xff] %v741
  %748 = vst [vmem:[%s8 + $0x8] sm:$0xff] %v742
  %749 = vst [vmem:[%s8 + $0x10] sm:$0xff] %v743
  %750 = vst [vmem:[%s8 + $0x18] sm:$0xff] %v744
  %751 = vst [vmem:[%s8 + $0x20] sm:$0xff] %v745
  %752 = vst [vmem:[%s8 + $0x28] sm:$0xff] %v746
  %v753 = vadd.f32 %v741, 0.0
  %v754 = vadd.f32 %v742, 0.0
  %757 = vrot.lane.b32.xlu0 %v741, 64
  %v758 = vpop.permute.xlu0 %757
  %759 = vrot.lane.b32.xlu0 %v742, 64
  %v760 = vpop.permute.xlu0 %759
  %v763 = vadd.f32 %v753, %v758
  %v764 = vadd.f32 %v754, %v760
  %v765 = vmul.f32 %v763, 0.5
  %v766 = vmul.f32 %v764, 0.5
  %767 = vst.msk [vmem:[%s9] sm:$0xff] %vm45, %v765
  %768 = vst.msk [vmem:[%s9 + $0x8] sm:$0xff] %vm45, %v766
  // Predicated region
  $region34: #{transformer_block_forward.2} parent=0 // pred_check
    _
  $region35: #{transformer_block_forward.2} parent=0 // pred_check_branch
    %770 = sbr.rel (0) target = $region37
  $region36: #{transformer_block_forward.2} parent=0 // pred_region
    _
  $region37: #{transformer_block_forward.2} parent=0 // pred_fallthru
    _
  // Predicated region
  $region38: #{transformer_block_forward.2} parent=0 // pred_check
    _
  $region39: #{transformer_block_forward.2} parent=0 // pred_check_branch
    %772 = sbr.rel (0) target = $region41
  $region40: #{transformer_block_forward.2} parent=0 // pred_region
    _
  $region41: #{transformer_block_forward.2} parent=0 // pred_fallthru
    _
  // Predicated region
  $region42: #{transformer_block_forward.2} parent=0 // pred_check
    _
  $region43: #{transformer_block_forward.2} parent=0 // pred_check_branch
    %774 = sbr.rel (0) target = $region45
  $region44: #{transformer_block_forward.2} parent=0 // pred_region
    _
  $region45: #{transformer_block_forward.2} parent=0 // pred_fallthru
    _
  // Predicated region
  $region46: #{transformer_block_forward.2} parent=0 // pred_check
    _
  $region47: #{transformer_block_forward.2} parent=0 // pred_check_branch
    %776 = sbr.rel (0) target = $region49
  $region48: #{transformer_block_forward.2} parent=0 // pred_region
    _
  $region49: #{transformer_block_forward.2} parent=0 // pred_fallthru
    _

// kernel: transformer_block_forward.3
$region0: #{transformer_block_forward.3}
  #allocation0 [shape = 'u32[]', space=smem, size = 0x4, offset = 0x4, fixed_abs, tag = 'smem constant byte address 0x4 - core index']
  #allocation1 [shape = 'u32[72,128]{1,0:T(1,128)}', space=vmem, size = 0x9000, scoped, tag = 'internal scratch']
  %s0 = inlined_call_operand.vmem [shape: f32[2,16,64], index: 0, kind: input, shape index: {}]
  %s1 = inlined_call_operand.vmem [shape: f32[48,128], index: 1, kind: input, shape index: {}]
  %s2 = inlined_call_operand.vmem [shape: f32[16,16], index: 2, kind: input, shape index: {}]
  %s3 = inlined_call_operand.vmem [shape: f32[16,1], index: 3, kind: input, shape index: {}]
  %s4 = inlined_call_operand.vmem [shape: f32[16,16], index: 4, kind: input, shape index: {}]
  %s5 = inlined_call_operand.vmem [shape: f32[9,128], index: 5, kind: input, shape index: {}]
  %s6 = inlined_call_operand.vmem [shape: bf16[16,16], index: 6, kind: input, shape index: {}]
  %s7 = inlined_call_operand.vmem [shape: f32[16,1], index: 7, kind: input, shape index: {}]
  %s8 = inlined_call_operand.vmem [shape: bf16[8,16], index: 8, kind: input, shape index: {}]
  %s9 = inlined_call_operand.vmem [shape: f32[8,1], index: 9, kind: input, shape index: {}]
  %s10 = inlined_call_operand.vmem [shape: bf16[16,8], index: 10, kind: input, shape index: {}]
  %s11 = inlined_call_operand.vmem [shape: f32[16,1], index: 11, kind: input, shape index: {}]
  %s12 = inlined_call_operand.vmem [shape: bf16[16,16], index: 12, kind: input, shape index: {}]
  %s13 = inlined_call_operand.vmem [shape: f32[16,1], index: 13, kind: input, shape index: {}]
  %s14 = inlined_call_operand.vmem [shape: f32[16,1], index: 14, kind: input, shape index: {}]
  %s15 = inlined_call_operand.vmem [shape: f32[16,1], index: 15, kind: input, shape index: {}]
  %s16 = inlined_call_operand.vmem [shape: bf16[64,16], index: 16, kind: input, shape index: {}]
  %s17 = inlined_call_operand.vmem [shape: f32[64,1], index: 17, kind: input, shape index: {}]
  %s18 = inlined_call_operand.vmem [shape: f32[64,9], index: 18, kind: input, shape index: {}]
  %s19 = inlined_call_operand.vmem [shape: f32[64,1], index: 19, kind: input, shape index: {}]
  %s20 = inlined_call_operand.vmem [shape: bf16[16,32], index: 20, kind: input, shape index: {}]
  %s21 = inlined_call_operand.vmem [shape: f32[16,1], index: 21, kind: input, shape index: {}]
  %s22 = inlined_call_operand.vmem [shape: f32[2,16,64], index: 22, kind: output, shape index: {0}]
  %s23 = inlined_call_operand.vmem [shape: f32[16,16], index: 23, kind: output, shape index: {1}]
  %24 = xla_tuple %s22, %s23
  %s25 = sld [smem:[#allocation0]]
  $region106: #{transformer_block_forward.3} parent=0
    _
  %s27 = ssub.s32 1, %s25
  %s28 = scalar_select 0, %s27, %s25
  // Predicated region
  $region2: #{transformer_block_forward.3} parent=0 // pred_check
    _
  $region3: #{transformer_block_forward.3} parent=0 // pred_check_branch
    %30 = sbr.rel (0) target = $region5
  $region4: #{transformer_block_forward.3} parent=0 // pred_region
    _
  $region5: #{transformer_block_forward.3} parent=0 // pred_fallthru
    _
  // Predicated region
  $region6: #{transformer_block_forward.3} parent=0 // pred_check
    _
  $region7: #{transformer_block_forward.3} parent=0 // pred_check_branch
    %32 = sbr.rel (0) target = $region9
  $region8: #{transformer_block_forward.3} parent=0 // pred_region
    _
  $region9: #{transformer_block_forward.3} parent=0 // pred_fallthru
    _
  // Predicated region
  $region10: #{transformer_block_forward.3} parent=0 // pred_check
    _
  $region11: #{transformer_block_forward.3} parent=0 // pred_check_branch
    %34 = sbr.rel (0) target = $region13
  $region12: #{transformer_block_forward.3} parent=0 // pred_region
    _
  $region13: #{transformer_block_forward.3} parent=0 // pred_fallthru
    _
  // Predicated region
  $region14: #{transformer_block_forward.3} parent=0 // pred_check
    _
  $region15: #{transformer_block_forward.3} parent=0 // pred_check_branch
    %36 = sbr.rel (0) target = $region17
  $region16: #{transformer_block_forward.3} parent=0 // pred_region
    _
  $region17: #{transformer_block_forward.3} parent=0 // pred_fallthru
    _
  // Predicated region
  $region18: #{transformer_block_forward.3} parent=0 // pred_check
    _
  $region19: #{transformer_block_forward.3} parent=0 // pred_check_branch
    %38 = sbr.rel (0) target = $region21
  $region20: #{transformer_block_forward.3} parent=0 // pred_region
    _
  $region21: #{transformer_block_forward.3} parent=0 // pred_fallthru
    _
  // Predicated region
  $region22: #{transformer_block_forward.3} parent=0 // pred_check
    _
  $region23: #{transformer_block_forward.3} parent=0 // pred_check_branch
    %40 = sbr.rel (0) target = $region25
  $region24: #{transformer_block_forward.3} parent=0 // pred_region
    _
  $region25: #{transformer_block_forward.3} parent=0 // pred_fallthru
    _
  // Predicated region
  $region26: #{transformer_block_forward.3} parent=0 // pred_check
    _
  $region27: #{transformer_block_forward.3} parent=0 // pred_check_branch
    %42 = sbr.rel (0) target = $region29
  $region28: #{transformer_block_forward.3} parent=0 // pred_region
    _
  $region29: #{transformer_block_forward.3} parent=0 // pred_fallthru
    _
  // Predicated region
  $region30: #{transformer_block_forward.3} parent=0 // pred_check
    _
  $region31: #{transformer_block_forward.3} parent=0 // pred_check_branch
    %44 = sbr.rel (0) target = $region33
  $region32: #{transformer_block_forward.3} parent=0 // pred_region
    _
  $region33: #{transformer_block_forward.3} parent=0 // pred_fallthru
    _
  // Predicated region
  $region34: #{transformer_block_forward.3} parent=0 // pred_check
    _
  $region35: #{transformer_block_forward.3} parent=0 // pred_check_branch
    %46 = sbr.rel (0) target = $region37
  $region36: #{transformer_block_forward.3} parent=0 // pred_region
    _
  $region37: #{transformer_block_forward.3} parent=0 // pred_fallthru
    _
  // Predicated region
  $region38: #{transformer_block_forward.3} parent=0 // pred_check
    _
  $region39: #{transformer_block_forward.3} parent=0 // pred_check_branch
    %48 = sbr.rel (0) target = $region41
  $region40: #{transformer_block_forward.3} parent=0 // pred_region
    _
  $region41: #{transformer_block_forward.3} parent=0 // pred_fallthru
    _
  // Predicated region
  $region42: #{transformer_block_forward.3} parent=0 // pred_check
    _
  $region43: #{transformer_block_forward.3} parent=0 // pred_check_branch
    %50 = sbr.rel (0) target = $region45
  $region44: #{transformer_block_forward.3} parent=0 // pred_region
    _
  $region45: #{transformer_block_forward.3} parent=0 // pred_fallthru
    _
  // Predicated region
  $region46: #{transformer_block_forward.3} parent=0 // pred_check
    _
  $region47: #{transformer_block_forward.3} parent=0 // pred_check_branch
    %52 = sbr.rel (0) target = $region49
  $region48: #{transformer_block_forward.3} parent=0 // pred_region
    _
  $region49: #{transformer_block_forward.3} parent=0 // pred_fallthru
    _
  // Predicated region
  $region50: #{transformer_block_forward.3} parent=0 // pred_check
    _
  $region51: #{transformer_block_forward.3} parent=0 // pred_check_branch
    %54 = sbr.rel (0) target = $region53
  $region52: #{transformer_block_forward.3} parent=0 // pred_region
    _
  $region53: #{transformer_block_forward.3} parent=0 // pred_fallthru
    _
  // Predicated region
  $region54: #{transformer_block_forward.3} parent=0 // pred_check
    _
  $region55: #{transformer_block_forward.3} parent=0 // pred_check_branch
    %56 = sbr.rel (0) target = $region57
  $region56: #{transformer_block_forward.3} parent=0 // pred_region
    _
  $region57: #{transformer_block_forward.3} parent=0 // pred_fallthru
    _
  // Predicated region
  $region58: #{transformer_block_forward.3} parent=0 // pred_check
    _
  $region59: #{transformer_block_forward.3} parent=0 // pred_check_branch
    %58 = sbr.rel (0) target = $region61
  $region60: #{transformer_block_forward.3} parent=0 // pred_region
    _
  $region61: #{transformer_block_forward.3} parent=0 // pred_fallthru
    _
  // Predicated region
  $region62: #{transformer_block_forward.3} parent=0 // pred_check
    _
  $region63: #{transformer_block_forward.3} parent=0 // pred_check_branch
    %60 = sbr.rel (0) target = $region65
  $region64: #{transformer_block_forward.3} parent=0 // pred_region
    _
  $region65: #{transformer_block_forward.3} parent=0 // pred_fallthru
    _
  // Predicated region
  $region66: #{transformer_block_forward.3} parent=0 // pred_check
    _
  $region67: #{transformer_block_forward.3} parent=0 // pred_check_branch
    %62 = sbr.rel (0) target = $region69
  $region68: #{transformer_block_forward.3} parent=0 // pred_region
    _
  $region69: #{transformer_block_forward.3} parent=0 // pred_fallthru
    _
  // Predicated region
  $region70: #{transformer_block_forward.3} parent=0 // pred_check
    _
  $region71: #{transformer_block_forward.3} parent=0 // pred_check_branch
    %64 = sbr.rel (0) target = $region73
  $region72: #{transformer_block_forward.3} parent=0 // pred_region
    _
  $region73: #{transformer_block_forward.3} parent=0 // pred_fallthru
    _
  // Predicated region
  $region74: #{transformer_block_forward.3} parent=0 // pred_check
    _
  $region75: #{transformer_block_forward.3} parent=0 // pred_check_branch
    %66 = sbr.rel (0) target = $region77
  $region76: #{transformer_block_forward.3} parent=0 // pred_region
    _
  $region77: #{transformer_block_forward.3} parent=0 // pred_fallthru
    _
  // Predicated region
  $region78: #{transformer_block_forward.3} parent=0 // pred_check
    _
  $region79: #{transformer_block_forward.3} parent=0 // pred_check_branch
    %68 = sbr.rel (0) target = $region81
  $region80: #{transformer_block_forward.3} parent=0 // pred_region
    _
  $region81: #{transformer_block_forward.3} parent=0 // pred_fallthru
    _
  // Predicated region
  $region82: #{transformer_block_forward.3} parent=0 // pred_check
    _
  $region83: #{transformer_block_forward.3} parent=0 // pred_check_branch
    %70 = sbr.rel (0) target = $region85
  $region84: #{transformer_block_forward.3} parent=0 // pred_region
    _
  $region85: #{transformer_block_forward.3} parent=0 // pred_fallthru
    _
  // Predicated region
  $region86: #{transformer_block_forward.3} parent=0 // pred_check
    _
  $region87: #{transformer_block_forward.3} parent=0 // pred_check_branch
    %72 = sbr.rel (0) target = $region89
  $region88: #{transformer_block_forward.3} parent=0 // pred_region
    _
  $region89: #{transformer_block_forward.3} parent=0 // pred_fallthru
    _
  %v74 = vld [vmem:[%s0] sm:$0xff]
  %v75 = vld [vmem:[%s0 + $0x8] sm:$0xff]
  %s76 = scalar_lea.vmem %s0, 16
  %v77 = vld [vmem:[%s76] sm:$0xff]
  %v78 = vld [vmem:[%s76 + $0x8] sm:$0xff]
  %81 = vrot.lane.b32.xlu0 %v77, 64
  %v82 = vpop.permute.xlu0 %81
  %83 = vrot.lane.b32.xlu0 %v78, 64
  %v84 = vpop.permute.xlu0 %83
  %vm87 = vcmask 523264
  %v88 = vsel %vm87, %v74, %v82
  %v89 = vsel %vm87, %v75, %v84
  %v90 = vld [vmem:[%s1] sm:$0xff]
  %v91 = vld [vmem:[%s1 + $0x8] sm:$0xff]
  %v92 = vld [vmem:[%s1 + $0x10] sm:$0xff]
  %v93 = vld [vmem:[%s1 + $0x18] sm:$0xff]
  %v94 = vld [vmem:[%s1 + $0x20] sm:$0xff]
  %v95 = vld [vmem:[%s1 + $0x28] sm:$0xff]
  %v96 = vld [vmem:[%s2] sm:$0xff]
  %v97 = vld [vmem:[%s2 + $0x8] sm:$0xff]
  %vm98 = vcmask 130048
  %v100 = vsel %vm98, %v96, 0
  %v103 = vsel %vm98, %v97, 0
  %105 = vmatpush.msra.mxu0 0.0
  %106 = vmatpush.msra.mxu0 0.0
  %107 = vmatpush.msra.mxu0 0.0
  %108 = vmatpush.msra.mxu0 0.0
  %109 = vmatpush.msra.mxu0 0.0
  %110 = vmatpush.msra.mxu0 0.0
  %111 = vmatpush.msra.mxu0 0.0
  %112 = vmatpush.msra.mxu0 0.0
  %113 = vmatpush.msra.mxu0 0.0
  %114 = vmatpush.msra.mxu0 0.0
  %115 = vmatpush.msra.mxu0 0.0
  %116 = vmatpush.msra.mxu0 0.0
  %117 = vmatpush.msra.mxu0 0.0
  %118 = vmatpush.msra.mxu0 0.0
  %119 = vmatpush.msra.mxu0 %v91
  %120 = vmatpush.msra.mxu0 %v90
  %121 = vmatmul.f32.gmra.mxu0 %v100
  %v122 = vpop.f32.mrf.mxu0
  %v123 = vadd.f32 0.0, %v122
  %124 = vmatmul.f32.gmra.mxu0 %v103
  %v125 = vpop.f32.mrf.mxu0
  %v126 = vadd.f32 0.0, %v125
  %127 = vdwg.mxu0
  %128 = vmatpush.msra.mxu0 0.0
  %129 = vmatpush.msra.mxu0 0.0
  %130 = vmatpush.msra.mxu0 0.0
  %131 = vmatpush.msra.mxu0 0.0
  %132 = vmatpush.msra.mxu0 0.0
  %133 = vmatpush.msra.mxu0 0.0
  %134 = vmatpush.msra.mxu0 0.0
  %135 = vmatpush.msra.mxu0 0.0
  %136 = vmatpush.msra.mxu0 0.0
  %137 = vmatpush.msra.mxu0 0.0
  %138 = vmatpush.msra.mxu0 0.0
  %139 = vmatpush.msra.mxu0 0.0
  %140 = vmatpush.msra.mxu0 0.0
  %141 = vmatpush.msra.mxu0 0.0
  %142 = vmatpush.msra.mxu0 %v93
  %143 = vmatpush.msra.mxu0 %v92
  %144 = vmatmul.f32.gmra.mxu0 %v100
  %v145 = vpop.f32.mrf.mxu0
  %v146 = vadd.f32 0.0, %v145
  %147 = vmatmul.f32.gmra.mxu0 %v103
  %v148 = vpop.f32.mrf.mxu0
  %v149 = vadd.f32 0.0, %v148
  %150 = vdwg.mxu0
  %151 = vmatpush.msra.mxu0 0.0
  %152 = vmatpush.msra.mxu0 0.0
  %153 = vmatpush.msra.mxu0 0.0
  %154 = vmatpush.msra.mxu0 0.0
  %155 = vmatpush.msra.mxu0 0.0
  %156 = vmatpush.msra.mxu0 0.0
  %157 = vmatpush.msra.mxu0 0.0
  %158 = vmatpush.msra.mxu0 0.0
  %159 = vmatpush.msra.mxu0 0.0
  %160 = vmatpush.msra.mxu0 0.0
  %161 = vmatpush.msra.mxu0 0.0
  %162 = vmatpush.msra.mxu0 0.0
  %163 = vmatpush.msra.mxu0 0.0
  %164 = vmatpush.msra.mxu0 0.0
  %165 = vmatpush.msra.mxu0 %v95
  %166 = vmatpush.msra.mxu0 %v94
  %167 = vmatmul.f32.gmra.mxu0 %v100
  %v168 = vpop.f32.mrf.mxu0
  %v169 = vadd.f32 0.0, %v168
  %170 = vmatmul.f32.gmra.mxu0 %v103
  %v171 = vpop.f32.mrf.mxu0
  %v172 = vadd.f32 0.0, %v171
  %173 = vdwg.mxu0
  %v174 = vld [vmem:[%s3] sm:$0xff]
  %v175 = vld [vmem:[%s3 + $0x8] sm:$0xff]
  %v176 = vld [vmem:[%s4] sm:$0xff]
  %v177 = vld [vmem:[%s4 + $0x8] sm:$0xff]
  %v178 = vmul.f32 %v123, %v123
  %v179 = vmul.f32 %v126, %v126
  %v180 = vsel %vm87, %v178, 0.0
  %181 = vadd.xlane.f32.xlu0 %v180
  %v182 = vpop.xlane.xlu0 %181
  %v183 = vsel %vm87, %v179, 0.0
  %184 = vadd.xlane.f32.xlu0 %v183
  %v185 = vpop.xlane.xlu0 %184
  %v186 = vmax.f32 %v182, 1e-24
  %v187 = vmax.f32 %v185, 1e-24
  %v188 = vrsqrt.pop %v186
  %v189 = vmul.f32 %v188, %v186
  %v190 = vmul.f32 %v189, %v188
  %v191 = vmul.f32 0.5, %v190
  %v192 = vsub.f32 1.5, %v191
  %v193 = vmul.f32 %v188, %v192
  %vm194 = vweird.f32 %v186
  %vm195 = vweird.f32 %v188
  %vm196 = vmor %vm194, %vm195
  %v197 = vsel %vm196, %v188, %v193
  %v198 = vrsqrt.pop %v187
  %v199 = vmul.f32 %v198, %v187
  %v200 = vmul.f32 %v199, %v198
  %v201 = vmul.f32 0.5, %v200
  %v202 = vsub.f32 1.5, %v201
  %v203 = vmul.f32 %v198, %v202
  %vm204 = vweird.f32 %v187
  %vm205 = vweird.f32 %v198
  %vm206 = vmor %vm204, %vm205
  %v207 = vsel %vm206, %v198, %v203
  %v208 = vmul.f32 %v123, %v197
  %v209 = vmul.f32 %v126, %v207
  %v210 = vmul.f32 %v146, %v146
  %v211 = vmul.f32 %v149, %v149
  %v212 = vsel %vm87, %v210, 0.0
  %213 = vadd.xlane.f32.xlu0 %v212
  %v214 = vpop.xlane.xlu0 %213
  %v215 = vsel %vm87, %v211, 0.0
  %216 = vadd.xlane.f32.xlu0 %v215
  %v217 = vpop.xlane.xlu0 %216
  %v218 = vmax.f32 %v214, 1e-24
  %v219 = vmax.f32 %v217, 1e-24
  %v220 = vrsqrt.pop %v218
  %v221 = vmul.f32 %v220, %v218
  %v222 = vmul.f32 %v221, %v220
  %v223 = vmul.f32 0.5, %v222
  %v224 = vsub.f32 1.5, %v223
  %v225 = vmul.f32 %v220, %v224
  %vm226 = vweird.f32 %v218
  %vm227 = vweird.f32 %v220
  %vm228 = vmor %vm226, %vm227
  %v229 = vsel %vm228, %v220, %v225
  %v230 = vrsqrt.pop %v219
  %v231 = vmul.f32 %v230, %v219
  %v232 = vmul.f32 %v231, %v230
  %v233 = vmul.f32 0.5, %v232
  %v234 = vsub.f32 1.5, %v233
  %v235 = vmul.f32 %v230, %v234
  %vm236 = vweird.f32 %v219
  %vm237 = vweird.f32 %v230
  %vm238 = vmor %vm236, %vm237
  %v239 = vsel %vm238, %v230, %v235
  %v240 = vmul.f32 %v146, %v229
  %v241 = vmul.f32 %v149, %v239
  %v242 = vadd.f32 %v208, %v240
  %v243 = vadd.f32 %v209, %v241
  %v244 = vpack.c.bf16 %v209, %v208
  %v245 = vpack.c.bf16 %v241, %v240
  %v247 = vsel %vm87, %v244, 0
  %v250 = vsel %vm87, %v245, 0
  %252 = vmatpush.bf16.xpose.msra.mxu0 0
  %253 = vmatpush.bf16.xpose.msra.mxu0 0
  %254 = vmatpush.bf16.xpose.msra.mxu0 0
  %255 = vmatpush.bf16.xpose.msra.mxu0 0
  %256 = vmatpush.bf16.xpose.msra.mxu0 0
  %257 = vmatpush.bf16.xpose.msra.mxu0 0
  %258 = vmatpush.bf16.xpose.msra.mxu0 0
  %259 = vmatpush.bf16.xpose.msra.mxu0 %v250
  %260 = vmatmul.bf16.gmra.mxu0 %v247
  %v261 = vpop.f32.mrf.mxu0
  %v262 = vadd.f32 0.0, %v261
  %v263 = vpop.f32.mrf.mxu0
  %v264 = vadd.f32 0.0, %v263
  %265 = vdwg.mxu0
  %267 = vset.pattern.permute.xlu0 0
  %268 = vperm.xlu0 %267, %v174
  %v269 = vpop.permute.xlu0 %268
  %272 = vset.pattern.permute.xlu0 0
  %273 = vperm.xlu0 %272, %v175
  %v274 = vpop.permute.xlu0 %273
  %v276 = vmul.f32 %v262, %v269
  %v277 = vmul.f32 %v264, %v274
  %v278 = vadd.f32 %v276, %v176
  %v279 = vadd.f32 %v277, %v177
  %v280 = vsel %vm98, %v278, -inf
  %281 = vmax.xlane.f32.xlu0 %v280
  %v282 = vpop.xlane.xlu0 %281
  %v283 = vsel %vm98, %v279, -inf
  %284 = vmax.xlane.f32.xlu0 %v283
  %v285 = vpop.xlane.xlu0 %284
  %v286 = vsub.f32 %v278, %v282
  %v287 = vsub.f32 %v279, %v285
  %v288 = vmul.f32 %v286, 1.442695
  %v289 = vpow.pop %v288
  %v290 = vmul.f32 %v287, 1.442695
  %v291 = vpow.pop %v290
  %v292 = vsel %vm98, %v289, 0.0
  %293 = vadd.xlane.f32.xlu0 %v292
  %v294 = vpop.xlane.xlu0 %293
  %v295 = vsel %vm98, %v291, 0.0
  %296 = vadd.xlane.f32.xlu0 %v295
  %v297 = vpop.xlane.xlu0 %296
  %v298 = vrcp.pop %v294
  %v299 = vrcp.pop %v297
  %v300 = vmul.f32 %v289, %v298
  %v301 = vmul.f32 %v291, %v299
  %v302 = vadd.f32 %v300, 0.0
  %v303 = vadd.f32 %v301, 0.0
  %v304 = vpack.c.bf16 %v301, %v300
  %v305 = vpack.c.bf16 %v172, %v169
  %v307 = vsel %vm98, %v304, 0
  %309 = vmatpush.bf16.msra.mxu0 0
  %310 = vmatpush.bf16.msra.mxu0 0
  %311 = vmatpush.bf16.msra.mxu0 0
  %312 = vmatpush.bf16.msra.mxu0 0
  %313 = vmatpush.bf16.msra.mxu0 0
  %314 = vmatpush.bf16.msra.mxu0 0
  %315 = vmatpush.bf16.msra.mxu0 0
  %316 = vmatpush.bf16.msra.mxu0 %v305
  %317 = vmatmul.bf16.gmra.mxu0 %v307
  %v318 = vpop.f32.mrf.mxu0
  %v319 = vadd.f32 0.0, %v318
  %v320 = vpop.f32.mrf.mxu0
  %v321 = vadd.f32 0.0, %v320
  %322 = vdwg.mxu0
  %325 = vrot.lane.b32.xlu0 %v178, 64
  %v326 = vpop.permute.xlu0 %325
  %327 = vrot.lane.b32.xlu0 %v179, 64
  %v328 = vpop.permute.xlu0 %327
  %v331 = vsel %vm87, %v326, 0.0
  %332 = vadd.xlane.f32.xlu0 %v331
  %v333 = vpop.xlane.xlu0 %332
  %v334 = vsel %vm87, %v328, 0.0
  %335 = vadd.xlane.f32.xlu0 %v334
  %v336 = vpop.xlane.xlu0 %335
  %v337 = vmax.f32 %v333, 1e-24
  %v338 = vmax.f32 %v336, 1e-24
  %v339 = vrsqrt.pop %v337
  %v340 = vmul.f32 %v339, %v337
  %v341 = vmul.f32 %v340, %v339
  %v342 = vmul.f32 0.5, %v341
  %v343 = vsub.f32 1.5, %v342
  %v344 = vmul.f32 %v339, %v343
  %vm345 = vweird.f32 %v337
  %vm346 = vweird.f32 %v339
  %vm347 = vmor %vm345, %vm346
  %v348 = vsel %vm347, %v339, %v344
  %v349 = vrsqrt.pop %v338
  %v350 = vmul.f32 %v349, %v338
  %v351 = vmul.f32 %v350, %v349
  %v352 = vmul.f32 0.5, %v351
  %v353 = vsub.f32 1.5, %v352
  %v354 = vmul.f32 %v349, %v353
  %vm355 = vweird.f32 %v338
  %vm356 = vweird.f32 %v349
  %vm357 = vmor %vm355, %vm356
  %v358 = vsel %vm357, %v349, %v354
  %v359 = vmul.f32 %v123, %v348
  %v360 = vmul.f32 %v126, %v358
  %363 = vrot.lane.b32.xlu0 %v210, 64
  %v364 = vpop.permute.xlu0 %363
  %365 = vrot.lane.b32.xlu0 %v211, 64
  %v366 = vpop.permute.xlu0 %365
  %v369 = vsel %vm87, %v364, 0.0
  %370 = vadd.xlane.f32.xlu0 %v369
  %v371 = vpop.xlane.xlu0 %370
  %v372 = vsel %vm87, %v366, 0.0
  %373 = vadd.xlane.f32.xlu0 %v372
  %v374 = vpop.xlane.xlu0 %373
  %v375 = vmax.f32 %v371, 1e-24
  %v376 = vmax.f32 %v374, 1e-24
  %v377 = vrsqrt.pop %v375
  %v378 = vmul.f32 %v377, %v375
  %v379 = vmul.f32 %v378, %v377
  %v380 = vmul.f32 0.5, %v379
  %v381 = vsub.f32 1.5, %v380
  %v382 = vmul.f32 %v377, %v381
  %vm383 = vweird.f32 %v375
  %vm384 = vweird.f32 %v377
  %vm385 = vmor %vm383, %vm384
  %v386 = vsel %vm385, %v377, %v382
  %v387 = vrsqrt.pop %v376
  %v388 = vmul.f32 %v387, %v376
  %v389 = vmul.f32 %v388, %v387
  %v390 = vmul.f32 0.5, %v389
  %v391 = vsub.f32 1.5, %v390
  %v392 = vmul.f32 %v387, %v391
  %vm393 = vweird.f32 %v376
  %vm394 = vweird.f32 %v387
  %vm395 = vmor %vm393, %vm394
  %v396 = vsel %vm395, %v387, %v392
  %v397 = vmul.f32 %v146, %v386
  %v398 = vmul.f32 %v149, %v396
  %v399 = vadd.f32 %v359, %v397
  %v400 = vadd.f32 %v360, %v398
  %v401 = vpack.c.bf16 %v360, %v359
  %v402 = vpack.c.bf16 %v398, %v397
  %404 = vrot.lane.b32.xlu0 %v401, 64
  %v405 = vpop.permute.xlu0 %404
  %407 = vrot.lane.b32.xlu0 %v402, 64
  %v408 = vpop.permute.xlu0 %407
  %v410 = vsel %vm87, %v405, 0
  %v413 = vsel %vm87, %v408, 0
  %415 = vmatpush.bf16.xpose.msra.mxu0 0
  %416 = vmatpush.bf16.xpose.msra.mxu0 0
  %417 = vmatpush.bf16.xpose.msra.mxu0 0
  %418 = vmatpush.bf16.xpose.msra.mxu0 0
  %419 = vmatpush.bf16.xpose.msra.mxu0 0
  %420 = vmatpush.bf16.xpose.msra.mxu0 0
  %421 = vmatpush.bf16.xpose.msra.mxu0 0
  %422 = vmatpush.bf16.xpose.msra.mxu0 %v413
  %423 = vmatmul.bf16.gmra.mxu0 %v410
  %v424 = vpop.f32.mrf.mxu0
  %v425 = vadd.f32 0.0, %v424
  %v426 = vpop.f32.mrf.mxu0
  %v427 = vadd.f32 0.0, %v426
  %428 = vdwg.mxu0
  %v429 = vmul.f32 %v425, %v269
  %v430 = vmul.f32 %v427, %v274
  %v431 = vadd.f32 %v429, %v176
  %v432 = vadd.f32 %v430, %v177
  %v433 = vsel %vm98, %v431, -inf
  %434 = vmax.xlane.f32.xlu0 %v433
  %v435 = vpop.xlane.xlu0 %434
  %v436 = vsel %vm98, %v432, -inf
  %437 = vmax.xlane.f32.xlu0 %v436
  %v438 = vpop.xlane.xlu0 %437
  %v439 = vsub.f32 %v431, %v435
  %v440 = vsub.f32 %v432, %v438
  %v441 = vmul.f32 %v439, 1.442695
  %v442 = vpow.pop %v441
  %v443 = vmul.f32 %v440, 1.442695
  %v444 = vpow.pop %v443
  %v445 = vsel %vm98, %v442, 0.0
  %446 = vadd.xlane.f32.xlu0 %v445
  %v447 = vpop.xlane.xlu0 %446
  %v448 = vsel %vm98, %v444, 0.0
  %449 = vadd.xlane.f32.xlu0 %v448
  %v450 = vpop.xlane.xlu0 %449
  %v451 = vrcp.pop %v447
  %v452 = vrcp.pop %v450
  %v453 = vmul.f32 %v442, %v451
  %v454 = vmul.f32 %v444, %v452
  %v455 = vadd.f32 %v302, %v453
  %v456 = vadd.f32 %v303, %v454
  %v457 = vpack.c.bf16 %v454, %v453
  %459 = vrot.lane.b32.xlu0 %v305, 64
  %v460 = vpop.permute.xlu0 %459
  %v463 = vsel %vm98, %v457, 0
  %465 = vmatpush.bf16.msra.mxu0 0
  %466 = vmatpush.bf16.msra.mxu0 0
  %467 = vmatpush.bf16.msra.mxu0 0
  %468 = vmatpush.bf16.msra.mxu0 0
  %469 = vmatpush.bf16.msra.mxu0 0
  %470 = vmatpush.bf16.msra.mxu0 0
  %471 = vmatpush.bf16.msra.mxu0 0
  %472 = vmatpush.bf16.msra.mxu0 %v460
  %473 = vmatmul.bf16.gmra.mxu0 %v463
  %v474 = vpop.f32.mrf.mxu0
  %v475 = vadd.f32 0.0, %v474
  %v476 = vpop.f32.mrf.mxu0
  %v477 = vadd.f32 0.0, %v476
  %478 = vdwg.mxu0
  %v479 = vmul.f32 %v455, 0.5
  %v480 = vmul.f32 %v456, 0.5
  %481 = vst.msk [vmem:[%s23] sm:$0xff] %vm98, %v479
  %482 = vst.msk [vmem:[%s23 + $0x8] sm:$0xff] %vm98, %v480
  %485 = vrot.lane.b32.xlu0 %v475, 64
  %v486 = vpop.permute.xlu0 %485
  %487 = vrot.lane.b32.xlu0 %v477, 64
  %v488 = vpop.permute.xlu0 %487
  %v491 = vsel %vm87, %v319, %v486
  %v492 = vsel %vm87, %v321, %v488
  %v493 = vsel %vm87, %v242, %v399
  %v494 = vsel %vm87, %v243, %v400
  %v495 = vadd.f32 %v491, %v493
  %v496 = vadd.f32 %v492, %v494
  %v497 = vld [vmem:[%s6] sm:$0xf]
  %v498 = vld [vmem:[%s6 + $0x4] sm:$0xf]
  %v499 = vpack.c.bf16 %v496, %v495
  %v500 = vld [vmem:[%s7] sm:$0xff]
  %v501 = vld [vmem:[%s7 + $0x8] sm:$0xff]
  %503 = vset.pattern.permute.xlu0 0
  %504 = vperm.xlu0 %503, %v500
  %v505 = vpop.permute.xlu0 %504
  %508 = vset.pattern.permute.xlu0 0
  %509 = vperm.xlu0 %508, %v501
  %v510 = vpop.permute.xlu0 %509
  %v514 = vunpack.c.l.b16 %v497
  %v515 = vunpack.c.l.b16 %v498
  %v516 = vpack.c.b16 %v515, %v514
  %v518 = vsel %vm98, %v516, 0
  %520 = vmatpush.bf16.msra.mxu0 0
  %521 = vmatpush.bf16.msra.mxu0 0
  %522 = vmatpush.bf16.msra.mxu0 0
  %523 = vmatpush.bf16.msra.mxu0 0
  %524 = vmatpush.bf16.msra.mxu0 0
  %525 = vmatpush.bf16.msra.mxu0 0
  %526 = vmatpush.bf16.msra.mxu0 0
  %527 = vmatpush.bf16.msra.mxu0 %v499
  %528 = vmatmul.bf16.gmra.mxu0 %v518
  %v529 = vpop.f32.mrf.mxu0
  %v530 = vadd.f32 %v505, %v529
  %v531 = vpop.f32.mrf.mxu0
  %v532 = vadd.f32 %v510, %v531
  %533 = vdwg.mxu0
  %v534 = vmul.f32 %v530, 0.5
  %v535 = vmul.f32 %v532, 0.5
  %v536 = vrcp.pop 1.4142135
  %v537 = vmul.f32 1.4142135, %v536
  %v538 = vsub.f32 1.0, %v537
  %v539 = vmul.f32 %v536, %v538
  %v540 = vadd.f32 %v536, %v539
  %vm541 = vweird.f32 %v536
  %v542 = vsel %vm541, %v536, %v540
  %v543 = vmul.f32 %v530, %v542
  %v544 = vmul.f32 %v532, %v542
  %v545 = vand.u32 2147483647, %v543
  %v546 = vand.u32 2147483647, %v544
  %v547 = vmul.f32 %v545, 0.3275911
  %v548 = vmul.f32 %v546, 0.3275911
  %v549 = vadd.f32 %v547, 1.0
  %v550 = vadd.f32 %v548, 1.0
  %v551 = vrcp.pop %v549
  %v552 = vmul.f32 %v549, %v551
  %v553 = vsub.f32 1.0, %v552
  %v554 = vmul.f32 %v551, %v553
  %v555 = vadd.f32 %v551, %v554
  %vm556 = vweird.f32 %v549
  %vm557 = vweird.f32 %v551
  %vm558 = vmor %vm556, %vm557
  %v559 = vsel %vm558, %v551, %v555
  %v560 = vand.u32 2147483647, %v549
  %vm561 = vcmp.eq.f32.partialorder %v560, 8.507059e+37
  %v562 = vand.u32 %v549, 2147483648
  %v563 = vor.u32 1.1754944e-38, %v562
  %v564 = vsel %vm561, %v563, %v559
  %v565 = vmul.f32 1.0, %v564
  %v566 = vrcp.pop %v550
  %v567 = vmul.f32 %v550, %v566
  %v568 = vsub.f32 1.0, %v567
  %v569 = vmul.f32 %v566, %v568
  %v570 = vadd.f32 %v566, %v569
  %vm571 = vweird.f32 %v550
  %vm572 = vweird.f32 %v566
  %vm573 = vmor %vm571, %vm572
  %v574 = vsel %vm573, %v566, %v570
  %v575 = vand.u32 2147483647, %v550
  %vm576 = vcmp.eq.f32.partialorder %v575, 8.507059e+37
  %v577 = vand.u32 %v550, 2147483648
  %v578 = vor.u32 1.1754944e-38, %v577
  %v579 = vsel %vm576, %v578, %v574
  %v580 = vmul.f32 1.0, %v579
  %v581 = vmul.f32 %v565, 1.0614054
  %v582 = vmul.f32 %v580, 1.0614054
  %v583 = vadd.f32 %v581, -1.4531521
  %v584 = vadd.f32 %v582, -1.4531521
  %v585 = vmul.f32 %v583, %v565
  %v586 = vmul.f32 %v584, %v580
  %v587 = vadd.f32 %v585, 1.4214138
  %v588 = vadd.f32 %v586, 1.4214138
  %v589 = vmul.f32 %v587, %v565
  %v590 = vmul.f32 %v588, %v580
  %v591 = vadd.f32 %v589, -0.28449672
  %v592 = vadd.f32 %v590, -0.28449672
  %v593 = vmul.f32 %v591, %v565
  %v594 = vmul.f32 %v592, %v580
  %v595 = vadd.f32 %v593, 0.2548296
  %v596 = vadd.f32 %v594, 0.2548296
  %v597 = vmul.f32 %v595, %v565
  %v598 = vmul.f32 %v596, %v580
  %v599 = vsub.f32 0.0, %v545
  %v600 = vsub.f32 0.0, %v546
  %v601 = vmul.f32 %v599, %v545
  %v602 = vmul.f32 %v600, %v546
  %v603 = vmul.f32 %v601, 1.442695
  %v604 = vpow.pop %v603
  %v605 = vmul.f32 %v602, 1.442695
  %v606 = vpow.pop %v605
  %v607 = vmul.f32 %v597, %v604
  %v608 = vmul.f32 %v598, %v606
  %v609 = vsub.f32 1.0, %v607
  %v610 = vsub.f32 1.0, %v608
  %vm611 = vcmp.lt.f32.partialorder %v543, 0.0
  %vm612 = vcmp.lt.f32.partialorder %v544, 0.0
  %v613 = vsub.f32 0.0, %v609
  %v614 = vsub.f32 0.0, %v610
  %v615 = vsel %vm611, %v613, %v609
  %v616 = vsel %vm612, %v614, %v610
  %v617 = vadd.f32 %v615, 1.0
  %v618 = vadd.f32 %v616, 1.0
  %v619 = vmul.f32 %v534, %v617
  %v620 = vmul.f32 %v535, %v618
  %v621 = vmul.f32 %v619, %v495
  %v622 = vmul.f32 %v620, %v496
  %v623 = vld [vmem:[%s8] sm:$0xf]
  %v624 = vpack.c.bf16 %v622, %v621
  %v625 = vld [vmem:[%s9] sm:$0xff]
  %627 = vset.pattern.permute.xlu0 0
  %628 = vperm.xlu0 %627, %v625
  %v629 = vpop.permute.xlu0 %628
  %v632 = vsel %vm98, %v623, 0
  %634 = vmatpush.bf16.msra.mxu0 0
  %635 = vmatpush.bf16.msra.mxu0 0
  %636 = vmatpush.bf16.msra.mxu0 0
  %637 = vmatpush.bf16.msra.mxu0 0
  %638 = vmatpush.bf16.msra.mxu0 0
  %639 = vmatpush.bf16.msra.mxu0 0
  %640 = vmatpush.bf16.msra.mxu0 0
  %641 = vmatpush.bf16.msra.mxu0 %v624
  %642 = vmatmul.bf16.gmra.mxu0 %v632
  %v643 = vpop.f32.mrf.mxu0
  %v644 = vadd.f32 %v629, %v643
  %v645 = vpop.f32.mrf.mxu0
  %646 = vdwg.mxu0
  %v647 = vld [vmem:[%s10] sm:$0xf]
  %v648 = vld [vmem:[%s10 + $0x4] sm:$0xf]
  %v649 = vpack.c.bf16 %v644, %v644
  %v650 = vld [vmem:[%s11] sm:$0xff]
  %v651 = vld [vmem:[%s11 + $0x8] sm:$0xff]
  %653 = vset.pattern.permute.xlu0 0
  %654 = vperm.xlu0 %653, %v650
  %v655 = vpop.permute.xlu0 %654
  %658 = vset.pattern.permute.xlu0 0
  %659 = vperm.xlu0 %658, %v651
  %v660 = vpop.permute.xlu0 %659
  %v664 = vunpack.c.l.b16 %v647
  %v665 = vunpack.c.l.b16 %v648
  %v666 = vpack.c.b16 %v665, %v664
  %vm667 = vcmask 64512
  %v669 = vsel %vm667, %v666, 0
  %vm671 = vcmask 1043456
  %v673 = vsel %vm671, %v649, 0
  %675 = vmatpush.bf16.msra.mxu0 0
  %676 = vmatpush.bf16.msra.mxu0 0
  %677 = vmatpush.bf16.msra.mxu0 0
  %678 = vmatpush.bf16.msra.mxu0 0
  %679 = vmatpush.bf16.msra.mxu0 0
  %680 = vmatpush.bf16.msra.mxu0 0
  %681 = vmatpush.bf16.msra.mxu0 0
  %682 = vmatpush.bf16.msra.mxu0 %v673
  %683 = vmatmul.bf16.gmra.mxu0 %v669
  %v684 = vpop.f32.mrf.mxu0
  %v685 = vadd.f32 %v655, %v684
  %v686 = vpop.f32.mrf.mxu0
  %v687 = vadd.f32 %v660, %v686
  %688 = vdwg.mxu0
  %v689 = vadd.f32 %v685, %v491
  %v690 = vadd.f32 %v687, %v492
  %v691 = vld [vmem:[%s12] sm:$0xf]
  %v692 = vld [vmem:[%s12 + $0x4] sm:$0xf]
  %v693 = vpack.c.bf16 %v690, %v689
  %v694 = vld [vmem:[%s13] sm:$0xff]
  %v695 = vld [vmem:[%s13 + $0x8] sm:$0xff]
  %697 = vset.pattern.permute.xlu0 0
  %698 = vperm.xlu0 %697, %v694
  %v699 = vpop.permute.xlu0 %698
  %702 = vset.pattern.permute.xlu0 0
  %703 = vperm.xlu0 %702, %v695
  %v704 = vpop.permute.xlu0 %703
  %v708 = vunpack.c.l.b16 %v691
  %v709 = vunpack.c.l.b16 %v692
  %v710 = vpack.c.b16 %v709, %v708
  %v712 = vsel %vm98, %v710, 0
  %714 = vmatpush.bf16.msra.mxu0 0
  %715 = vmatpush.bf16.msra.mxu0 0
  %716 = vmatpush.bf16.msra.mxu0 0
  %717 = vmatpush.bf16.msra.mxu0 0
  %718 = vmatpush.bf16.msra.mxu0 0
  %719 = vmatpush.bf16.msra.mxu0 0
  %720 = vmatpush.bf16.msra.mxu0 0
  %721 = vmatpush.bf16.msra.mxu0 %v693
  %722 = vmatmul.bf16.gmra.mxu0 %v712
  %v723 = vpop.f32.mrf.mxu0
  %v724 = vadd.f32 %v699, %v723
  %v725 = vpop.f32.mrf.mxu0
  %v726 = vadd.f32 %v704, %v725
  %727 = vdwg.mxu0
  %v728 = vadd.f32 %v88, %v724
  %v729 = vadd.f32 %v89, %v726
  %v730 = vld [vmem:[%s14] sm:$0xff]
  %v731 = vld [vmem:[%s14 + $0x8] sm:$0xff]
  %v732 = vld [vmem:[%s15] sm:$0xff]
  %v733 = vld [vmem:[%s15 + $0x8] sm:$0xff]
  %v734 = vadd.f32 %v728, %v729
  %v735 = vrot.slane %v734, 4
  %v736 = vadd.f32 %v734, %v735
  %v737 = vrot.slane %v736, 2
  %v738 = vadd.f32 %v736, %v737
  %v739 = vrot.slane %v738, 1
  %v740 = vadd.f32 %v738, %v739
  %v741 = vrcp.pop 16.0
  %v742 = vmul.f32 16.0, %v741
  %v743 = vsub.f32 1.0, %v742
  %v744 = vmul.f32 %v741, %v743
  %v745 = vadd.f32 %v741, %v744
  %vm746 = vweird.f32 %v741
  %v747 = vsel %vm746, %v741, %v745
  %v748 = vmul.f32 %v740, %v747
  %v749 = vsub.f32 %v728, %v748
  %v750 = vsub.f32 %v729, %v748
  %v751 = vmul.f32 %v749, %v749
  %v752 = vmul.f32 %v750, %v750
  %v753 = vadd.f32 %v751, %v752
  %v754 = vrot.slane %v753, 4
  %v755 = vadd.f32 %v753, %v754
  %v756 = vrot.slane %v755, 2
  %v757 = vadd.f32 %v755, %v756
  %v758 = vrot.slane %v757, 1
  %v759 = vadd.f32 %v757, %v758
  %v760 = vmul.f32 %v759, %v747
  %v761 = vadd.f32 %v760, 1e-05
  %v762 = vrsqrt.pop %v761
  %v763 = vmul.f32 %v762, %v761
  %v764 = vmul.f32 %v763, %v762
  %v765 = vmul.f32 0.5, %v764
  %v766 = vsub.f32 1.5, %v765
  %v767 = vmul.f32 %v762, %v766
  %vm768 = vweird.f32 %v761
  %vm769 = vweird.f32 %v762
  %vm770 = vmor %vm768, %vm769
  %v771 = vsel %vm770, %v762, %v767
  %v772 = vmul.f32 %v749, %v771
  %v773 = vmul.f32 %v750, %v771
  %775 = vset.pattern.permute.xlu0 0
  %776 = vperm.xlu0 %775, %v730
  %v777 = vpop.permute.xlu0 %776
  %780 = vset.pattern.permute.xlu0 0
  %781 = vperm.xlu0 %780, %v731
  %v782 = vpop.permute.xlu0 %781
  %v784 = vmul.f32 %v772, %v777
  %v785 = vmul.f32 %v773, %v782
  %787 = vset.pattern.permute.xlu0 0
  %788 = vperm.xlu0 %787, %v732
  %v789 = vpop.permute.xlu0 %788
  %792 = vset.pattern.permute.xlu0 0
  %793 = vperm.xlu0 %792, %v733
  %v794 = vpop.permute.xlu0 %793
  %v796 = vadd.f32 %v784, %v789
  %v797 = vadd.f32 %v785, %v794
  %v798 = vld [vmem:[%s16] sm:$0xf]
  %v799 = vld [vmem:[%s16 + $0x4] sm:$0xf]
  %v800 = vld [vmem:[%s16 + $0x8] sm:$0xf]
  %v801 = vld [vmem:[%s16 + $0xc] sm:$0xf]
  %v802 = vld [vmem:[%s16 + $0x10] sm:$0xf]
  %v803 = vld [vmem:[%s16 + $0x14] sm:$0xf]
  %v804 = vld [vmem:[%s16 + $0x18] sm:$0xf]
  %v805 = vld [vmem:[%s16 + $0x1c] sm:$0xf]
  %v806 = vpack.c.bf16 %v797, %v796
  %v807 = vld [vmem:[%s17] sm:$0xff]
  %v808 = vld [vmem:[%s17 + $0x8] sm:$0xff]
  %v809 = vld [vmem:[%s17 + $0x10] sm:$0xff]
  %v810 = vld [vmem:[%s17 + $0x18] sm:$0xff]
  %v811 = vld [vmem:[%s17 + $0x20] sm:$0xff]
  %v812 = vld [vmem:[%s17 + $0x28] sm:$0xff]
  %v813 = vld [vmem:[%s17 + $0x30] sm:$0xff]
  %v814 = vld [vmem:[%s17 + $0x38] sm:$0xff]
  %816 = vset.pattern.permute.xlu0 0
  %817 = vperm.xlu0 %816, %v807
  %v818 = vpop.permute.xlu0 %817
  %821 = vset.pattern.permute.xlu0 0
  %822 = vperm.xlu0 %821, %v808
  %v823 = vpop.permute.xlu0 %822
  %826 = vset.pattern.permute.xlu0 0
  %827 = vperm.xlu0 %826, %v809
  %v828 = vpop.permute.xlu0 %827
  %831 = vset.pattern.permute.xlu0 0
  %832 = vperm.xlu0 %831, %v810
  %v833 = vpop.permute.xlu0 %832
  %836 = vset.pattern.permute.xlu0 0
  %837 = vperm.xlu0 %836, %v811
  %v838 = vpop.permute.xlu0 %837
  %841 = vset.pattern.permute.xlu0 0
  %842 = vperm.xlu0 %841, %v812
  %v843 = vpop.permute.xlu0 %842
  %846 = vset.pattern.permute.xlu0 0
  %847 = vperm.xlu0 %846, %v813
  %v848 = vpop.permute.xlu0 %847
  %851 = vset.pattern.permute.xlu0 0
  %852 = vperm.xlu0 %851, %v814
  %v853 = vpop.permute.xlu0 %852
  %v863 = vunpack.c.l.b16 %v798
  %v864 = vunpack.c.l.b16 %v799
  %v865 = vunpack.c.l.b16 %v800
  %v866 = vunpack.c.l.b16 %v801
  %v867 = vunpack.c.l.b16 %v802
  %v868 = vunpack.c.l.b16 %v803
  %v869 = vunpack.c.l.b16 %v804
  %v870 = vunpack.c.l.b16 %v805
  %v871 = vpack.c.b16 %v864, %v863
  %v872 = vpack.c.b16 %v866, %v865
  %v873 = vpack.c.b16 %v868, %v867
  %v874 = vpack.c.b16 %v870, %v869
  %v876 = vsel %vm98, %v871, 0
  %v879 = vsel %vm98, %v872, 0
  %v882 = vsel %vm98, %v873, 0
  %v885 = vsel %vm98, %v874, 0
  %887 = vmatpush.bf16.msra.mxu0 0
  %888 = vmatpush.bf16.msra.mxu0 0
  %889 = vmatpush.bf16.msra.mxu0 0
  %890 = vmatpush.bf16.msra.mxu0 0
  %891 = vmatpush.bf16.msra.mxu0 0
  %892 = vmatpush.bf16.msra.mxu0 0
  %893 = vmatpush.bf16.msra.mxu0 0
  %894 = vmatpush.bf16.msra.mxu0 %v806
  %895 = vmatmul.bf16.gmra.mxu0 %v876
  %v896 = vpop.f32.mrf.mxu0
  %v897 = vadd.f32 %v818, %v896
  %v898 = vpop.f32.mrf.mxu0
  %v899 = vadd.f32 %v823, %v898
  %900 = vmatmul.bf16.gmra.mxu0 %v879
  %v901 = vpop.f32.mrf.mxu0
  %v902 = vadd.f32 %v828, %v901
  %v903 = vpop.f32.mrf.mxu0
  %v904 = vadd.f32 %v833, %v903
  %905 = vmatmul.bf16.gmra.mxu0 %v882
  %v906 = vpop.f32.mrf.mxu0
  %v907 = vadd.f32 %v838, %v906
  %v908 = vpop.f32.mrf.mxu0
  %v909 = vadd.f32 %v843, %v908
  %910 = vmatmul.bf16.gmra.mxu0 %v885
  %v911 = vpop.f32.mrf.mxu0
  %v912 = vadd.f32 %v848, %v911
  %v913 = vpop.f32.mrf.mxu0
  %v914 = vadd.f32 %v853, %v913
  %915 = vdwg.mxu0
  %v916 = vld [vmem:[%s18] sm:$0xff]
  %v917 = vld [vmem:[%s18 + $0x8] sm:$0xff]
  %v918 = vld [vmem:[%s18 + $0x10] sm:$0xff]
  %v919 = vld [vmem:[%s18 + $0x18] sm:$0xff]
  %v920 = vld [vmem:[%s18 + $0x20] sm:$0xff]
  %v921 = vld [vmem:[%s18 + $0x28] sm:$0xff]
  %v922 = vld [vmem:[%s18 + $0x30] sm:$0xff]
  %v923 = vld [vmem:[%s18 + $0x38] sm:$0xff]
  %v924 = vld [vmem:[%s19] sm:$0xff]
  %v925 = vld [vmem:[%s19 + $0x8] sm:$0xff]
  %v926 = vld [vmem:[%s19 + $0x10] sm:$0xff]
  %v927 = vld [vmem:[%s19 + $0x18] sm:$0xff]
  %v928 = vld [vmem:[%s19 + $0x20] sm:$0xff]
  %v929 = vld [vmem:[%s19 + $0x28] sm:$0xff]
  %v930 = vld [vmem:[%s19 + $0x30] sm:$0xff]
  %v931 = vld [vmem:[%s19 + $0x38] sm:$0xff]
  %v932 = vld [vmem:[%s5] sm:$0xff]
  %v933 = vld [vmem:[%s5 + $0x8] sm:$0x1]
  %934 = vrot.lane.b32.xlu0 %v897, 9
  %v935 = vpop.permute.xlu0 %934
  %936 = vrot.lane.b32.xlu0 %v899, 9
  %v937 = vpop.permute.xlu0 %936
  %938 = vrot.lane.b32.xlu0 %v902, 9
  %v939 = vpop.permute.xlu0 %938
  %940 = vrot.lane.b32.xlu0 %v904, 9
  %v941 = vpop.permute.xlu0 %940
  %942 = vrot.lane.b32.xlu0 %v907, 9
  %v943 = vpop.permute.xlu0 %942
  %944 = vrot.lane.b32.xlu0 %v909, 9
  %v945 = vpop.permute.xlu0 %944
  %946 = vrot.lane.b32.xlu0 %v912, 9
  %v947 = vpop.permute.xlu0 %946
  %948 = vrot.lane.b32.xlu0 %v914, 9
  %v949 = vpop.permute.xlu0 %948
  %v950 = vperm.slane %v932, 0
  %v951 = vmul.f32 %v935, %v950
  %v952 = vmul.f32 %v937, %v950
  %v953 = vmul.f32 %v939, %v950
  %v954 = vmul.f32 %v941, %v950
  %v955 = vmul.f32 %v943, %v950
  %v956 = vmul.f32 %v945, %v950
  %v957 = vmul.f32 %v947, %v950
  %v958 = vmul.f32 %v949, %v950
  %960 = vset.pattern.permute.xlu0 0
  %961 = vperm.xlu0 %960, %v916
  %v962 = vpop.permute.xlu0 %961
  %965 = vset.pattern.permute.xlu0 0
  %966 = vperm.xlu0 %965, %v917
  %v967 = vpop.permute.xlu0 %966
  %970 = vset.pattern.permute.xlu0 0
  %971 = vperm.xlu0 %970, %v918
  %v972 = vpop.permute.xlu0 %971
  %975 = vset.pattern.permute.xlu0 0
  %976 = vperm.xlu0 %975, %v919
  %v977 = vpop.permute.xlu0 %976
  %980 = vset.pattern.permute.xlu0 0
  %981 = vperm.xlu0 %980, %v920
  %v982 = vpop.permute.xlu0 %981
  %985 = vset.pattern.permute.xlu0 0
  %986 = vperm.xlu0 %985, %v921
  %v987 = vpop.permute.xlu0 %986
  %990 = vset.pattern.permute.xlu0 0
  %991 = vperm.xlu0 %990, %v922
  %v992 = vpop.permute.xlu0 %991
  %995 = vset.pattern.permute.xlu0 0
  %996 = vperm.xlu0 %995, %v923
  %v997 = vpop.permute.xlu0 %996
  %v999 = vmul.f32 %v951, %v962
  %v1000 = vmul.f32 %v952, %v967
  %v1001 = vmul.f32 %v953, %v972
  %v1002 = vmul.f32 %v954, %v977
  %v1003 = vmul.f32 %v955, %v982
  %v1004 = vmul.f32 %v956, %v987
  %v1005 = vmul.f32 %v957, %v992
  %v1006 = vmul.f32 %v958, %v997
  %v1007 = vadd.f32 %v999, 0.0
  %v1008 = vadd.f32 %v1000, 0.0
  %v1009 = vadd.f32 %v1001, 0.0
  %v1010 = vadd.f32 %v1002, 0.0
  %v1011 = vadd.f32 %v1003, 0.0
  %v1012 = vadd.f32 %v1004, 0.0
  %v1013 = vadd.f32 %v1005, 0.0
  %v1014 = vadd.f32 %v1006, 0.0
  %1015 = vrot.lane.b32.xlu0 %v897, 8
  %v1016 = vpop.permute.xlu0 %1015
  %1017 = vrot.lane.b32.xlu0 %v899, 8
  %v1018 = vpop.permute.xlu0 %1017
  %1019 = vrot.lane.b32.xlu0 %v902, 8
  %v1020 = vpop.permute.xlu0 %1019
  %1021 = vrot.lane.b32.xlu0 %v904, 8
  %v1022 = vpop.permute.xlu0 %1021
  %1023 = vrot.lane.b32.xlu0 %v907, 8
  %v1024 = vpop.permute.xlu0 %1023
  %1025 = vrot.lane.b32.xlu0 %v909, 8
  %v1026 = vpop.permute.xlu0 %1025
  %1027 = vrot.lane.b32.xlu0 %v912, 8
  %v1028 = vpop.permute.xlu0 %1027
  %1029 = vrot.lane.b32.xlu0 %v914, 8
  %v1030 = vpop.permute.xlu0 %1029
  %v1031 = vperm.slane %v932, 1
  %v1032 = vmul.f32 %v1016, %v1031
  %v1033 = vmul.f32 %v1018, %v1031
  %v1034 = vmul.f32 %v1020, %v1031
  %v1035 = vmul.f32 %v1022, %v1031
  %v1036 = vmul.f32 %v1024, %v1031
  %v1037 = vmul.f32 %v1026, %v1031
  %v1038 = vmul.f32 %v1028, %v1031
  %v1039 = vmul.f32 %v1030, %v1031
  %1040 = vset.pattern.permute.xlu0 1
  %1041 = vperm.xlu0 %1040, %v916
  %v1042 = vpop.permute.xlu0 %1041
  %1044 = vset.pattern.permute.xlu0 1
  %1045 = vperm.xlu0 %1044, %v917
  %v1046 = vpop.permute.xlu0 %1045
  %1048 = vset.pattern.permute.xlu0 1
  %1049 = vperm.xlu0 %1048, %v918
  %v1050 = vpop.permute.xlu0 %1049
  %1052 = vset.pattern.permute.xlu0 1
  %1053 = vperm.xlu0 %1052, %v919
  %v1054 = vpop.permute.xlu0 %1053
  %1056 = vset.pattern.permute.xlu0 1
  %1057 = vperm.xlu0 %1056, %v920
  %v1058 = vpop.permute.xlu0 %1057
  %1060 = vset.pattern.permute.xlu0 1
  %1061 = vperm.xlu0 %1060, %v921
  %v1062 = vpop.permute.xlu0 %1061
  %1064 = vset.pattern.permute.xlu0 1
  %1065 = vperm.xlu0 %1064, %v922
  %v1066 = vpop.permute.xlu0 %1065
  %1068 = vset.pattern.permute.xlu0 1
  %1069 = vperm.xlu0 %1068, %v923
  %v1070 = vpop.permute.xlu0 %1069
  %v1072 = vmul.f32 %v1032, %v1042
  %v1073 = vmul.f32 %v1033, %v1046
  %v1074 = vmul.f32 %v1034, %v1050
  %v1075 = vmul.f32 %v1035, %v1054
  %v1076 = vmul.f32 %v1036, %v1058
  %v1077 = vmul.f32 %v1037, %v1062
  %v1078 = vmul.f32 %v1038, %v1066
  %v1079 = vmul.f32 %v1039, %v1070
  %v1080 = vadd.f32 %v1007, %v1072
  %v1081 = vadd.f32 %v1008, %v1073
  %v1082 = vadd.f32 %v1009, %v1074
  %v1083 = vadd.f32 %v1010, %v1075
  %v1084 = vadd.f32 %v1011, %v1076
  %v1085 = vadd.f32 %v1012, %v1077
  %v1086 = vadd.f32 %v1013, %v1078
  %v1087 = vadd.f32 %v1014, %v1079
  %1088 = vrot.lane.b32.xlu0 %v897, 7
  %v1089 = vpop.permute.xlu0 %1088
  %1090 = vrot.lane.b32.xlu0 %v899, 7
  %v1091 = vpop.permute.xlu0 %1090
  %1092 = vrot.lane.b32.xlu0 %v902, 7
  %v1093 = vpop.permute.xlu0 %1092
  %1094 = vrot.lane.b32.xlu0 %v904, 7
  %v1095 = vpop.permute.xlu0 %1094
  %1096 = vrot.lane.b32.xlu0 %v907, 7
  %v1097 = vpop.permute.xlu0 %1096
  %1098 = vrot.lane.b32.xlu0 %v909, 7
  %v1099 = vpop.permute.xlu0 %1098
  %1100 = vrot.lane.b32.xlu0 %v912, 7
  %v1101 = vpop.permute.xlu0 %1100
  %1102 = vrot.lane.b32.xlu0 %v914, 7
  %v1103 = vpop.permute.xlu0 %1102
  %v1104 = vperm.slane %v932, 2
  %v1105 = vmul.f32 %v1089, %v1104
  %v1106 = vmul.f32 %v1091, %v1104
  %v1107 = vmul.f32 %v1093, %v1104
  %v1108 = vmul.f32 %v1095, %v1104
  %v1109 = vmul.f32 %v1097, %v1104
  %v1110 = vmul.f32 %v1099, %v1104
  %v1111 = vmul.f32 %v1101, %v1104
  %v1112 = vmul.f32 %v1103, %v1104
  %1113 = vset.pattern.permute.xlu0 2
  %1114 = vperm.xlu0 %1113, %v916
  %v1115 = vpop.permute.xlu0 %1114
  %1117 = vset.pattern.permute.xlu0 2
  %1118 = vperm.xlu0 %1117, %v917
  %v1119 = vpop.permute.xlu0 %1118
  %1121 = vset.pattern.permute.xlu0 2
  %1122 = vperm.xlu0 %1121, %v918
  %v1123 = vpop.permute.xlu0 %1122
  %1125 = vset.pattern.permute.xlu0 2
  %1126 = vperm.xlu0 %1125, %v919
  %v1127 = vpop.permute.xlu0 %1126
  %1129 = vset.pattern.permute.xlu0 2
  %1130 = vperm.xlu0 %1129, %v920
  %v1131 = vpop.permute.xlu0 %1130
  %1133 = vset.pattern.permute.xlu0 2
  %1134 = vperm.xlu0 %1133, %v921
  %v1135 = vpop.permute.xlu0 %1134
  %1137 = vset.pattern.permute.xlu0 2
  %1138 = vperm.xlu0 %1137, %v922
  %v1139 = vpop.permute.xlu0 %1138
  %1141 = vset.pattern.permute.xlu0 2
  %1142 = vperm.xlu0 %1141, %v923
  %v1143 = vpop.permute.xlu0 %1142
  %v1145 = vmul.f32 %v1105, %v1115
  %v1146 = vmul.f32 %v1106, %v1119
  %v1147 = vmul.f32 %v1107, %v1123
  %v1148 = vmul.f32 %v1108, %v1127
  %v1149 = vmul.f32 %v1109, %v1131
  %v1150 = vmul.f32 %v1110, %v1135
  %v1151 = vmul.f32 %v1111, %v1139
  %v1152 = vmul.f32 %v1112, %v1143
  %v1153 = vadd.f32 %v1080, %v1145
  %v1154 = vadd.f32 %v1081, %v1146
  %v1155 = vadd.f32 %v1082, %v1147
  %v1156 = vadd.f32 %v1083, %v1148
  %v1157 = vadd.f32 %v1084, %v1149
  %v1158 = vadd.f32 %v1085, %v1150
  %v1159 = vadd.f32 %v1086, %v1151
  %v1160 = vadd.f32 %v1087, %v1152
  %1161 = vrot.lane.b32.xlu0 %v897, 1
  %v1162 = vpop.permute.xlu0 %1161
  %1163 = vrot.lane.b32.xlu0 %v899, 1
  %v1164 = vpop.permute.xlu0 %1163
  %1165 = vrot.lane.b32.xlu0 %v902, 1
  %v1166 = vpop.permute.xlu0 %1165
  %1167 = vrot.lane.b32.xlu0 %v904, 1
  %v1168 = vpop.permute.xlu0 %1167
  %1169 = vrot.lane.b32.xlu0 %v907, 1
  %v1170 = vpop.permute.xlu0 %1169
  %1171 = vrot.lane.b32.xlu0 %v909, 1
  %v1172 = vpop.permute.xlu0 %1171
  %1173 = vrot.lane.b32.xlu0 %v912, 1
  %v1174 = vpop.permute.xlu0 %1173
  %1175 = vrot.lane.b32.xlu0 %v914, 1
  %v1176 = vpop.permute.xlu0 %1175
  %v1177 = vperm.slane %v932, 3
  %v1178 = vmul.f32 %v1162, %v1177
  %v1179 = vmul.f32 %v1164, %v1177
  %v1180 = vmul.f32 %v1166, %v1177
  %v1181 = vmul.f32 %v1168, %v1177
  %v1182 = vmul.f32 %v1170, %v1177
  %v1183 = vmul.f32 %v1172, %v1177
  %v1184 = vmul.f32 %v1174, %v1177
  %v1185 = vmul.f32 %v1176, %v1177
  %1186 = vset.pattern.permute.xlu0 3
  %1187 = vperm.xlu0 %1186, %v916
  %v1188 = vpop.permute.xlu0 %1187
  %1190 = vset.pattern.permute.xlu0 3
  %1191 = vperm.xlu0 %1190, %v917
  %v1192 = vpop.permute.xlu0 %1191
  %1194 = vset.pattern.permute.xlu0 3
  %1195 = vperm.xlu0 %1194, %v918
  %v1196 = vpop.permute.xlu0 %1195
  %1198 = vset.pattern.permute.xlu0 3
  %1199 = vperm.xlu0 %1198, %v919
  %v1200 = vpop.permute.xlu0 %1199
  %1202 = vset.pattern.permute.xlu0 3
  %1203 = vperm.xlu0 %1202, %v920
  %v1204 = vpop.permute.xlu0 %1203
  %1206 = vset.pattern.permute.xlu0 3
  %1207 = vperm.xlu0 %1206, %v921
  %v1208 = vpop.permute.xlu0 %1207
  %1210 = vset.pattern.permute.xlu0 3
  %1211 = vperm.xlu0 %1210, %v922
  %v1212 = vpop.permute.xlu0 %1211
  %1214 = vset.pattern.permute.xlu0 3
  %1215 = vperm.xlu0 %1214, %v923
  %v1216 = vpop.permute.xlu0 %1215
  %v1218 = vmul.f32 %v1178, %v1188
  %v1219 = vmul.f32 %v1179, %v1192
  %v1220 = vmul.f32 %v1180, %v1196
  %v1221 = vmul.f32 %v1181, %v1200
  %v1222 = vmul.f32 %v1182, %v1204
  %v1223 = vmul.f32 %v1183, %v1208
  %v1224 = vmul.f32 %v1184, %v1212
  %v1225 = vmul.f32 %v1185, %v1216
  %v1226 = vadd.f32 %v1153, %v1218
  %v1227 = vadd.f32 %v1154, %v1219
  %v1228 = vadd.f32 %v1155, %v1220
  %v1229 = vadd.f32 %v1156, %v1221
  %v1230 = vadd.f32 %v1157, %v1222
  %v1231 = vadd.f32 %v1158, %v1223
  %v1232 = vadd.f32 %v1159, %v1224
  %v1233 = vadd.f32 %v1160, %v1225
  %v1234 = vperm.slane %v932, 4
  %v1235 = vmul.f32 %v897, %v1234
  %v1236 = vmul.f32 %v899, %v1234
  %v1237 = vmul.f32 %v902, %v1234
  %v1238 = vmul.f32 %v904, %v1234
  %v1239 = vmul.f32 %v907, %v1234
  %v1240 = vmul.f32 %v909, %v1234
  %v1241 = vmul.f32 %v912, %v1234
  %v1242 = vmul.f32 %v914, %v1234
  %1243 = vset.pattern.permute.xlu0 4
  %1244 = vperm.xlu0 %1243, %v916
  %v1245 = vpop.permute.xlu0 %1244
  %1247 = vset.pattern.permute.xlu0 4
  %1248 = vperm.xlu0 %1247, %v917
  %v1249 = vpop.permute.xlu0 %1248
  %1251 = vset.pattern.permute.xlu0 4
  %1252 = vperm.xlu0 %1251, %v918
  %v1253 = vpop.permute.xlu0 %1252
  %1255 = vset.pattern.permute.xlu0 4
  %1256 = vperm.xlu0 %1255, %v919
  %v1257 = vpop.permute.xlu0 %1256
  %1259 = vset.pattern.permute.xlu0 4
  %1260 = vperm.xlu0 %1259, %v920
  %v1261 = vpop.permute.xlu0 %1260
  %1263 = vset.pattern.permute.xlu0 4
  %1264 = vperm.xlu0 %1263, %v921
  %v1265 = vpop.permute.xlu0 %1264
  %1267 = vset.pattern.permute.xlu0 4
  %1268 = vperm.xlu0 %1267, %v922
  %v1269 = vpop.permute.xlu0 %1268
  %1271 = vset.pattern.permute.xlu0 4
  %1272 = vperm.xlu0 %1271, %v923
  %v1273 = vpop.permute.xlu0 %1272
  %v1275 = vmul.f32 %v1235, %v1245
  %v1276 = vmul.f32 %v1236, %v1249
  %v1277 = vmul.f32 %v1237, %v1253
  %v1278 = vmul.f32 %v1238, %v1257
  %v1279 = vmul.f32 %v1239, %v1261
  %v1280 = vmul.f32 %v1240, %v1265
  %v1281 = vmul.f32 %v1241, %v1269
  %v1282 = vmul.f32 %v1242, %v1273
  %v1283 = vadd.f32 %v1226, %v1275
  %v1284 = vadd.f32 %v1227, %v1276
  %v1285 = vadd.f32 %v1228, %v1277
  %v1286 = vadd.f32 %v1229, %v1278
  %v1287 = vadd.f32 %v1230, %v1279
  %v1288 = vadd.f32 %v1231, %v1280
  %v1289 = vadd.f32 %v1232, %v1281
  %v1290 = vadd.f32 %v1233, %v1282
  %1291 = vrot.lane.b32.xlu0 %v897, 127
  %v1292 = vpop.permute.xlu0 %1291
  %1293 = vrot.lane.b32.xlu0 %v899, 127
  %v1294 = vpop.permute.xlu0 %1293
  %1295 = vrot.lane.b32.xlu0 %v902, 127
  %v1296 = vpop.permute.xlu0 %1295
  %1297 = vrot.lane.b32.xlu0 %v904, 127
  %v1298 = vpop.permute.xlu0 %1297
  %1299 = vrot.lane.b32.xlu0 %v907, 127
  %v1300 = vpop.permute.xlu0 %1299
  %1301 = vrot.lane.b32.xlu0 %v909, 127
  %v1302 = vpop.permute.xlu0 %1301
  %1303 = vrot.lane.b32.xlu0 %v912, 127
  %v1304 = vpop.permute.xlu0 %1303
  %1305 = vrot.lane.b32.xlu0 %v914, 127
  %v1306 = vpop.permute.xlu0 %1305
  %v1307 = vperm.slane %v932, 5
  %v1308 = vmul.f32 %v1292, %v1307
  %v1309 = vmul.f32 %v1294, %v1307
  %v1310 = vmul.f32 %v1296, %v1307
  %v1311 = vmul.f32 %v1298, %v1307
  %v1312 = vmul.f32 %v1300, %v1307
  %v1313 = vmul.f32 %v1302, %v1307
  %v1314 = vmul.f32 %v1304, %v1307
  %v1315 = vmul.f32 %v1306, %v1307
  %1316 = vset.pattern.permute.xlu0 5
  %1317 = vperm.xlu0 %1316, %v916
  %v1318 = vpop.permute.xlu0 %1317
  %1320 = vset.pattern.permute.xlu0 5
  %1321 = vperm.xlu0 %1320, %v917
  %v1322 = vpop.permute.xlu0 %1321
  %1324 = vset.pattern.permute.xlu0 5
  %1325 = vperm.xlu0 %1324, %v918
  %v1326 = vpop.permute.xlu0 %1325
  %1328 = vset.pattern.permute.xlu0 5
  %1329 = vperm.xlu0 %1328, %v919
  %v1330 = vpop.permute.xlu0 %1329
  %1332 = vset.pattern.permute.xlu0 5
  %1333 = vperm.xlu0 %1332, %v920
  %v1334 = vpop.permute.xlu0 %1333
  %1336 = vset.pattern.permute.xlu0 5
  %1337 = vperm.xlu0 %1336, %v921
  %v1338 = vpop.permute.xlu0 %1337
  %1340 = vset.pattern.permute.xlu0 5
  %1341 = vperm.xlu0 %1340, %v922
  %v1342 = vpop.permute.xlu0 %1341
  %1344 = vset.pattern.permute.xlu0 5
  %1345 = vperm.xlu0 %1344, %v923
  %v1346 = vpop.permute.xlu0 %1345
  %v1348 = vmul.f32 %v1308, %v1318
  %v1349 = vmul.f32 %v1309, %v1322
  %v1350 = vmul.f32 %v1310, %v1326
  %v1351 = vmul.f32 %v1311, %v1330
  %v1352 = vmul.f32 %v1312, %v1334
  %v1353 = vmul.f32 %v1313, %v1338
  %v1354 = vmul.f32 %v1314, %v1342
  %v1355 = vmul.f32 %v1315, %v1346
  %v1356 = vadd.f32 %v1283, %v1348
  %v1357 = vadd.f32 %v1284, %v1349
  %v1358 = vadd.f32 %v1285, %v1350
  %v1359 = vadd.f32 %v1286, %v1351
  %v1360 = vadd.f32 %v1287, %v1352
  %v1361 = vadd.f32 %v1288, %v1353
  %v1362 = vadd.f32 %v1289, %v1354
  %v1363 = vadd.f32 %v1290, %v1355
  %1364 = vrot.lane.b32.xlu0 %v897, 121
  %v1365 = vpop.permute.xlu0 %1364
  %1366 = vrot.lane.b32.xlu0 %v899, 121
  %v1367 = vpop.permute.xlu0 %1366
  %1368 = vrot.lane.b32.xlu0 %v902, 121
  %v1369 = vpop.permute.xlu0 %1368
  %1370 = vrot.lane.b32.xlu0 %v904, 121
  %v1371 = vpop.permute.xlu0 %1370
  %1372 = vrot.lane.b32.xlu0 %v907, 121
  %v1373 = vpop.permute.xlu0 %1372
  %1374 = vrot.lane.b32.xlu0 %v909, 121
  %v1375 = vpop.permute.xlu0 %1374
  %1376 = vrot.lane.b32.xlu0 %v912, 121
  %v1377 = vpop.permute.xlu0 %1376
  %1378 = vrot.lane.b32.xlu0 %v914, 121
  %v1379 = vpop.permute.xlu0 %1378
  %v1380 = vperm.slane %v932, 6
  %v1381 = vmul.f32 %v1365, %v1380
  %v1382 = vmul.f32 %v1367, %v1380
  %v1383 = vmul.f32 %v1369, %v1380
  %v1384 = vmul.f32 %v1371, %v1380
  %v1385 = vmul.f32 %v1373, %v1380
  %v1386 = vmul.f32 %v1375, %v1380
  %v1387 = vmul.f32 %v1377, %v1380
  %v1388 = vmul.f32 %v1379, %v1380
  %1389 = vset.pattern.permute.xlu0 6
  %1390 = vperm.xlu0 %1389, %v916
  %v1391 = vpop.permute.xlu0 %1390
  %1393 = vset.pattern.permute.xlu0 6
  %1394 = vperm.xlu0 %1393, %v917
  %v1395 = vpop.permute.xlu0 %1394
  %1397 = vset.pattern.permute.xlu0 6
  %1398 = vperm.xlu0 %1397, %v918
  %v1399 = vpop.permute.xlu0 %1398
  %1401 = vset.pattern.permute.xlu0 6
  %1402 = vperm.xlu0 %1401, %v919
  %v1403 = vpop.permute.xlu0 %1402
  %1405 = vset.pattern.permute.xlu0 6
  %1406 = vperm.xlu0 %1405, %v920
  %v1407 = vpop.permute.xlu0 %1406
  %1409 = vset.pattern.permute.xlu0 6
  %1410 = vperm.xlu0 %1409, %v921
  %v1411 = vpop.permute.xlu0 %1410
  %1413 = vset.pattern.permute.xlu0 6
  %1414 = vperm.xlu0 %1413, %v922
  %v1415 = vpop.permute.xlu0 %1414
  %1417 = vset.pattern.permute.xlu0 6
  %1418 = vperm.xlu0 %1417, %v923
  %v1419 = vpop.permute.xlu0 %1418
  %v1421 = vmul.f32 %v1381, %v1391
  %v1422 = vmul.f32 %v1382, %v1395
  %v1423 = vmul.f32 %v1383, %v1399
  %v1424 = vmul.f32 %v1384, %v1403
  %v1425 = vmul.f32 %v1385, %v1407
  %v1426 = vmul.f32 %v1386, %v1411
  %v1427 = vmul.f32 %v1387, %v1415
  %v1428 = vmul.f32 %v1388, %v1419
  %v1429 = vadd.f32 %v1356, %v1421
  %v1430 = vadd.f32 %v1357, %v1422
  %v1431 = vadd.f32 %v1358, %v1423
  %v1432 = vadd.f32 %v1359, %v1424
  %v1433 = vadd.f32 %v1360, %v1425
  %v1434 = vadd.f32 %v1361, %v1426
  %v1435 = vadd.f32 %v1362, %v1427
  %v1436 = vadd.f32 %v1363, %v1428
  %1437 = vrot.lane.b32.xlu0 %v897, 120
  %v1438 = vpop.permute.xlu0 %1437
  %1439 = vrot.lane.b32.xlu0 %v899, 120
  %v1440 = vpop.permute.xlu0 %1439
  %1441 = vrot.lane.b32.xlu0 %v902, 120
  %v1442 = vpop.permute.xlu0 %1441
  %1443 = vrot.lane.b32.xlu0 %v904, 120
  %v1444 = vpop.permute.xlu0 %1443
  %1445 = vrot.lane.b32.xlu0 %v907, 120
  %v1446 = vpop.permute.xlu0 %1445
  %1447 = vrot.lane.b32.xlu0 %v909, 120
  %v1448 = vpop.permute.xlu0 %1447
  %1449 = vrot.lane.b32.xlu0 %v912, 120
  %v1450 = vpop.permute.xlu0 %1449
  %1451 = vrot.lane.b32.xlu0 %v914, 120
  %v1452 = vpop.permute.xlu0 %1451
  %v1453 = vperm.slane %v932, 7
  %v1454 = vmul.f32 %v1438, %v1453
  %v1455 = vmul.f32 %v1440, %v1453
  %v1456 = vmul.f32 %v1442, %v1453
  %v1457 = vmul.f32 %v1444, %v1453
  %v1458 = vmul.f32 %v1446, %v1453
  %v1459 = vmul.f32 %v1448, %v1453
  %v1460 = vmul.f32 %v1450, %v1453
  %v1461 = vmul.f32 %v1452, %v1453
  %1462 = vset.pattern.permute.xlu0 7
  %1463 = vperm.xlu0 %1462, %v916
  %v1464 = vpop.permute.xlu0 %1463
  %1466 = vset.pattern.permute.xlu0 7
  %1467 = vperm.xlu0 %1466, %v917
  %v1468 = vpop.permute.xlu0 %1467
  %1470 = vset.pattern.permute.xlu0 7
  %1471 = vperm.xlu0 %1470, %v918
  %v1472 = vpop.permute.xlu0 %1471
  %1474 = vset.pattern.permute.xlu0 7
  %1475 = vperm.xlu0 %1474, %v919
  %v1476 = vpop.permute.xlu0 %1475
  %1478 = vset.pattern.permute.xlu0 7
  %1479 = vperm.xlu0 %1478, %v920
  %v1480 = vpop.permute.xlu0 %1479
  %1482 = vset.pattern.permute.xlu0 7
  %1483 = vperm.xlu0 %1482, %v921
  %v1484 = vpop.permute.xlu0 %1483
  %1486 = vset.pattern.permute.xlu0 7
  %1487 = vperm.xlu0 %1486, %v922
  %v1488 = vpop.permute.xlu0 %1487
  %1490 = vset.pattern.permute.xlu0 7
  %1491 = vperm.xlu0 %1490, %v923
  %v1492 = vpop.permute.xlu0 %1491
  %v1494 = vmul.f32 %v1454, %v1464
  %v1495 = vmul.f32 %v1455, %v1468
  %v1496 = vmul.f32 %v1456, %v1472
  %v1497 = vmul.f32 %v1457, %v1476
  %v1498 = vmul.f32 %v1458, %v1480
  %v1499 = vmul.f32 %v1459, %v1484
  %v1500 = vmul.f32 %v1460, %v1488
  %v1501 = vmul.f32 %v1461, %v1492
  %v1502 = vadd.f32 %v1429, %v1494
  %v1503 = vadd.f32 %v1430, %v1495
  %v1504 = vadd.f32 %v1431, %v1496
  %v1505 = vadd.f32 %v1432, %v1497
  %v1506 = vadd.f32 %v1433, %v1498
  %v1507 = vadd.f32 %v1434, %v1499
  %v1508 = vadd.f32 %v1435, %v1500
  %v1509 = vadd.f32 %v1436, %v1501
  %1510 = vrot.lane.b32.xlu0 %v897, 119
  %v1511 = vpop.permute.xlu0 %1510
  %1512 = vrot.lane.b32.xlu0 %v899, 119
  %v1513 = vpop.permute.xlu0 %1512
  %1514 = vrot.lane.b32.xlu0 %v902, 119
  %v1515 = vpop.permute.xlu0 %1514
  %1516 = vrot.lane.b32.xlu0 %v904, 119
  %v1517 = vpop.permute.xlu0 %1516
  %1518 = vrot.lane.b32.xlu0 %v907, 119
  %v1519 = vpop.permute.xlu0 %1518
  %1520 = vrot.lane.b32.xlu0 %v909, 119
  %v1521 = vpop.permute.xlu0 %1520
  %1522 = vrot.lane.b32.xlu0 %v912, 119
  %v1523 = vpop.permute.xlu0 %1522
  %1524 = vrot.lane.b32.xlu0 %v914, 119
  %v1525 = vpop.permute.xlu0 %1524
  %v1526 = vperm.slane %v933, 0
  %v1527 = vmul.f32 %v1511, %v1526
  %v1528 = vmul.f32 %v1513, %v1526
  %v1529 = vmul.f32 %v1515, %v1526
  %v1530 = vmul.f32 %v1517, %v1526
  %v1531 = vmul.f32 %v1519, %v1526
  %v1532 = vmul.f32 %v1521, %v1526
  %v1533 = vmul.f32 %v1523, %v1526
  %v1534 = vmul.f32 %v1525, %v1526
  %1535 = vset.pattern.permute.xlu0 8
  %1536 = vperm.xlu0 %1535, %v916
  %v1537 = vpop.permute.xlu0 %1536
  %1539 = vset.pattern.permute.xlu0 8
  %1540 = vperm.xlu0 %1539, %v917
  %v1541 = vpop.permute.xlu0 %1540
  %1543 = vset.pattern.permute.xlu0 8
  %1544 = vperm.xlu0 %1543, %v918
  %v1545 = vpop.permute.xlu0 %1544
  %1547 = vset.pattern.permute.xlu0 8
  %1548 = vperm.xlu0 %1547, %v919
  %v1549 = vpop.permute.xlu0 %1548
  %1551 = vset.pattern.permute.xlu0 8
  %1552 = vperm.xlu0 %1551, %v920
  %v1553 = vpop.permute.xlu0 %1552
  %1555 = vset.pattern.permute.xlu0 8
  %1556 = vperm.xlu0 %1555, %v921
  %v1557 = vpop.permute.xlu0 %1556
  %1559 = vset.pattern.permute.xlu0 8
  %1560 = vperm.xlu0 %1559, %v922
  %v1561 = vpop.permute.xlu0 %1560
  %1563 = vset.pattern.permute.xlu0 8
  %1564 = vperm.xlu0 %1563, %v923
  %v1565 = vpop.permute.xlu0 %1564
  %v1567 = vmul.f32 %v1527, %v1537
  %v1568 = vmul.f32 %v1528, %v1541
  %v1569 = vmul.f32 %v1529, %v1545
  %v1570 = vmul.f32 %v1530, %v1549
  %v1571 = vmul.f32 %v1531, %v1553
  %v1572 = vmul.f32 %v1532, %v1557
  %v1573 = vmul.f32 %v1533, %v1561
  %v1574 = vmul.f32 %v1534, %v1565
  %v1575 = vadd.f32 %v1502, %v1567
  %v1576 = vadd.f32 %v1503, %v1568
  %v1577 = vadd.f32 %v1504, %v1569
  %v1578 = vadd.f32 %v1505, %v1570
  %v1579 = vadd.f32 %v1506, %v1571
  %v1580 = vadd.f32 %v1507, %v1572
  %v1581 = vadd.f32 %v1508, %v1573
  %v1582 = vadd.f32 %v1509, %v1574
  %1584 = vset.pattern.permute.xlu0 0
  %1585 = vperm.xlu0 %1584, %v924
  %v1586 = vpop.permute.xlu0 %1585
  %1589 = vset.pattern.permute.xlu0 0
  %1590 = vperm.xlu0 %1589, %v925
  %v1591 = vpop.permute.xlu0 %1590
  %1594 = vset.pattern.permute.xlu0 0
  %1595 = vperm.xlu0 %1594, %v926
  %v1596 = vpop.permute.xlu0 %1595
  %1599 = vset.pattern.permute.xlu0 0
  %1600 = vperm.xlu0 %1599, %v927
  %v1601 = vpop.permute.xlu0 %1600
  %1604 = vset.pattern.permute.xlu0 0
  %1605 = vperm.xlu0 %1604, %v928
  %v1606 = vpop.permute.xlu0 %1605
  %1609 = vset.pattern.permute.xlu0 0
  %1610 = vperm.xlu0 %1609, %v929
  %v1611 = vpop.permute.xlu0 %1610
  %1614 = vset.pattern.permute.xlu0 0
  %1615 = vperm.xlu0 %1614, %v930
  %v1616 = vpop.permute.xlu0 %1615
  %1619 = vset.pattern.permute.xlu0 0
  %1620 = vperm.xlu0 %1619, %v931
  %v1621 = vpop.permute.xlu0 %1620
  %v1623 = vadd.f32 %v1575, %v1586
  %v1624 = vadd.f32 %v1576, %v1591
  %v1625 = vadd.f32 %v1577, %v1596
  %v1626 = vadd.f32 %v1578, %v1601
  %v1627 = vadd.f32 %v1579, %v1606
  %v1628 = vadd.f32 %v1580, %v1611
  %v1629 = vadd.f32 %v1581, %v1616
  %v1630 = vadd.f32 %v1582, %v1621
  %v1631 = vmul.f32 %v1623, 0.5
  %v1632 = vmul.f32 %v1624, 0.5
  %v1633 = vmul.f32 %v1625, 0.5
  %v1634 = vmul.f32 %v1626, 0.5
  %v1635 = vmul.f32 %v1623, %v542
  %v1636 = vmul.f32 %v1624, %v542
  %v1637 = vmul.f32 %v1625, %v542
  %v1638 = vmul.f32 %v1626, %v542
  %v1639 = vand.u32 2147483647, %v1635
  %v1640 = vand.u32 2147483647, %v1636
  %v1641 = vand.u32 2147483647, %v1637
  %v1642 = vand.u32 2147483647, %v1638
  %v1643 = vmul.f32 %v1639, 0.3275911
  %v1644 = vmul.f32 %v1640, 0.3275911
  %v1645 = vmul.f32 %v1641, 0.3275911
  %v1646 = vmul.f32 %v1642, 0.3275911
  %v1647 = vadd.f32 %v1643, 1.0
  %v1648 = vadd.f32 %v1644, 1.0
  %v1649 = vadd.f32 %v1645, 1.0
  %v1650 = vadd.f32 %v1646, 1.0
  %v1651 = vrcp.pop %v1647
  %v1652 = vmul.f32 %v1647, %v1651
  %v1653 = vsub.f32 1.0, %v1652
  %v1654 = vmul.f32 %v1651, %v1653
  %v1655 = vadd.f32 %v1651, %v1654
  %vm1656 = vweird.f32 %v1647
  %vm1657 = vweird.f32 %v1651
  %vm1658 = vmor %vm1656, %vm1657
  %v1659 = vsel %vm1658, %v1651, %v1655
  %v1660 = vand.u32 2147483647, %v1647
  %vm1661 = vcmp.eq.f32.partialorder %v1660, 8.507059e+37
  %v1662 = vand.u32 %v1647, 2147483648
  %v1663 = vor.u32 1.1754944e-38, %v1662
  %v1664 = vsel %vm1661, %v1663, %v1659
  %v1665 = vmul.f32 1.0, %v1664
  %v1666 = vrcp.pop %v1648
  %v1667 = vmul.f32 %v1648, %v1666
  %v1668 = vsub.f32 1.0, %v1667
  %v1669 = vmul.f32 %v1666, %v1668
  %v1670 = vadd.f32 %v1666, %v1669
  %vm1671 = vweird.f32 %v1648
  %vm1672 = vweird.f32 %v1666
  %vm1673 = vmor %vm1671, %vm1672
  %v1674 = vsel %vm1673, %v1666, %v1670
  %v1675 = vand.u32 2147483647, %v1648
  %vm1676 = vcmp.eq.f32.partialorder %v1675, 8.507059e+37
  %v1677 = vand.u32 %v1648, 2147483648
  %v1678 = vor.u32 1.1754944e-38, %v1677
  %v1679 = vsel %vm1676, %v1678, %v1674
  %v1680 = vmul.f32 1.0, %v1679
  %v1681 = vrcp.pop %v1649
  %v1682 = vmul.f32 %v1649, %v1681
  %v1683 = vsub.f32 1.0, %v1682
  %v1684 = vmul.f32 %v1681, %v1683
  %v1685 = vadd.f32 %v1681, %v1684
  %vm1686 = vweird.f32 %v1649
  %vm1687 = vweird.f32 %v1681
  %vm1688 = vmor %vm1686, %vm1687
  %v1689 = vsel %vm1688, %v1681, %v1685
  %v1690 = vand.u32 2147483647, %v1649
  %vm1691 = vcmp.eq.f32.partialorder %v1690, 8.507059e+37
  %v1692 = vand.u32 %v1649, 2147483648
  %v1693 = vor.u32 1.1754944e-38, %v1692
  %v1694 = vsel %vm1691, %v1693, %v1689
  %v1695 = vmul.f32 1.0, %v1694
  %v1696 = vrcp.pop %v1650
  %v1697 = vmul.f32 %v1650, %v1696
  %v1698 = vsub.f32 1.0, %v1697
  %v1699 = vmul.f32 %v1696, %v1698
  %v1700 = vadd.f32 %v1696, %v1699
  %vm1701 = vweird.f32 %v1650
  %vm1702 = vweird.f32 %v1696
  %vm1703 = vmor %vm1701, %vm1702
  %v1704 = vsel %vm1703, %v1696, %v1700
  %v1705 = vand.u32 2147483647, %v1650
  %vm1706 = vcmp.eq.f32.partialorder %v1705, 8.507059e+37
  %v1707 = vand.u32 %v1650, 2147483648
  %v1708 = vor.u32 1.1754944e-38, %v1707
  %v1709 = vsel %vm1706, %v1708, %v1704
  %v1710 = vmul.f32 1.0, %v1709
  %v1711 = vmul.f32 %v1665, 1.0614054
  %v1712 = vmul.f32 %v1680, 1.0614054
  %v1713 = vmul.f32 %v1695, 1.0614054
  %v1714 = vmul.f32 %v1710, 1.0614054
  %v1715 = vadd.f32 %v1711, -1.4531521
  %v1716 = vadd.f32 %v1712, -1.4531521
  %v1717 = vadd.f32 %v1713, -1.4531521
  %v1718 = vadd.f32 %v1714, -1.4531521
  %v1719 = vmul.f32 %v1715, %v1665
  %v1720 = vmul.f32 %v1716, %v1680
  %v1721 = vmul.f32 %v1717, %v1695
  %v1722 = vmul.f32 %v1718, %v1710
  %v1723 = vadd.f32 %v1719, 1.4214138
  %v1724 = vadd.f32 %v1720, 1.4214138
  %v1725 = vadd.f32 %v1721, 1.4214138
  %v1726 = vadd.f32 %v1722, 1.4214138
  %v1727 = vmul.f32 %v1723, %v1665
  %v1728 = vmul.f32 %v1724, %v1680
  %v1729 = vmul.f32 %v1725, %v1695
  %v1730 = vmul.f32 %v1726, %v1710
  %v1731 = vadd.f32 %v1727, -0.28449672
  %v1732 = vadd.f32 %v1728, -0.28449672
  %v1733 = vadd.f32 %v1729, -0.28449672
  %v1734 = vadd.f32 %v1730, -0.28449672
  %v1735 = vmul.f32 %v1731, %v1665
  %v1736 = vmul.f32 %v1732, %v1680
  %v1737 = vmul.f32 %v1733, %v1695
  %v1738 = vmul.f32 %v1734, %v1710
  %v1739 = vadd.f32 %v1735, 0.2548296
  %v1740 = vadd.f32 %v1736, 0.2548296
  %v1741 = vadd.f32 %v1737, 0.2548296
  %v1742 = vadd.f32 %v1738, 0.2548296
  %v1743 = vmul.f32 %v1739, %v1665
  %v1744 = vmul.f32 %v1740, %v1680
  %v1745 = vmul.f32 %v1741, %v1695
  %v1746 = vmul.f32 %v1742, %v1710
  %v1747 = vsub.f32 0.0, %v1639
  %v1748 = vsub.f32 0.0, %v1640
  %v1749 = vsub.f32 0.0, %v1641
  %v1750 = vsub.f32 0.0, %v1642
  %v1751 = vmul.f32 %v1747, %v1639
  %v1752 = vmul.f32 %v1748, %v1640
  %v1753 = vmul.f32 %v1749, %v1641
  %v1754 = vmul.f32 %v1750, %v1642
  %v1755 = vmul.f32 %v1751, 1.442695
  %v1756 = vpow.pop %v1755
  %v1757 = vmul.f32 %v1752, 1.442695
  %v1758 = vpow.pop %v1757
  %v1759 = vmul.f32 %v1753, 1.442695
  %v1760 = vpow.pop %v1759
  %v1761 = vmul.f32 %v1754, 1.442695
  %v1762 = vpow.pop %v1761
  %v1763 = vmul.f32 %v1743, %v1756
  %v1764 = vmul.f32 %v1744, %v1758
  %v1765 = vmul.f32 %v1745, %v1760
  %v1766 = vmul.f32 %v1746, %v1762
  %v1767 = vsub.f32 1.0, %v1763
  %v1768 = vsub.f32 1.0, %v1764
  %v1769 = vsub.f32 1.0, %v1765
  %v1770 = vsub.f32 1.0, %v1766
  %vm1771 = vcmp.lt.f32.partialorder %v1635, 0.0
  %vm1772 = vcmp.lt.f32.partialorder %v1636, 0.0
  %vm1773 = vcmp.lt.f32.partialorder %v1637, 0.0
  %vm1774 = vcmp.lt.f32.partialorder %v1638, 0.0
  %v1775 = vsub.f32 0.0, %v1767
  %v1776 = vsub.f32 0.0, %v1768
  %v1777 = vsub.f32 0.0, %v1769
  %v1778 = vsub.f32 0.0, %v1770
  %v1779 = vsel %vm1771, %v1775, %v1767
  %v1780 = vsel %vm1772, %v1776, %v1768
  %v1781 = vsel %vm1773, %v1777, %v1769
  %v1782 = vsel %vm1774, %v1778, %v1770
  %v1783 = vadd.f32 %v1779, 1.0
  %v1784 = vadd.f32 %v1780, 1.0
  %v1785 = vadd.f32 %v1781, 1.0
  %v1786 = vadd.f32 %v1782, 1.0
  %v1787 = vmul.f32 %v1631, %v1783
  %v1788 = vmul.f32 %v1632, %v1784
  %v1789 = vmul.f32 %v1633, %v1785
  %v1790 = vmul.f32 %v1634, %v1786
  %v1791 = vmul.f32 %v1787, %v1627
  %v1792 = vmul.f32 %v1788, %v1628
  %v1793 = vmul.f32 %v1789, %v1629
  %v1794 = vmul.f32 %v1790, %v1630
  %v1795 = vld [vmem:[%s20] sm:$0xf]
  %v1796 = vld [vmem:[%s20 + $0x4] sm:$0xf]
  %v1797 = vpack.c.bf16 %v1792, %v1791
  %v1798 = vpack.c.bf16 %v1794, %v1793
  %v1799 = vld [vmem:[%s21] sm:$0xff]
  %v1800 = vld [vmem:[%s21 + $0x8] sm:$0xff]
  %1802 = vset.pattern.permute.xlu0 0
  %1803 = vperm.xlu0 %1802, %v1799
  %v1804 = vpop.permute.xlu0 %1803
  %1807 = vset.pattern.permute.xlu0 0
  %1808 = vperm.xlu0 %1807, %v1800
  %v1809 = vpop.permute.xlu0 %1808
  %v1813 = vunpack.c.l.b16 %v1795
  %v1814 = vunpack.c.l.b16 %v1796
  %v1815 = vpack.c.b16 %v1814, %v1813
  %vm1816 = vcmask 261120
  %v1818 = vsel %vm1816, %v1815, 0
  %1820 = vmatpush.bf16.msra.mxu0 0
  %1821 = vmatpush.bf16.msra.mxu0 0
  %1822 = vmatpush.bf16.msra.mxu0 0
  %1823 = vmatpush.bf16.msra.mxu0 0
  %1824 = vmatpush.bf16.msra.mxu0 0
  %1825 = vmatpush.bf16.msra.mxu0 0
  %1826 = vmatpush.bf16.msra.mxu0 %v1798
  %1827 = vmatpush.bf16.msra.mxu0 %v1797
  %1828 = vmatmul.bf16.gmra.mxu0 %v1818
  %v1829 = vpop.f32.mrf.mxu0
  %v1830 = vadd.f32 %v1804, %v1829
  %v1831 = vpop.f32.mrf.mxu0
  %v1832 = vadd.f32 %v1809, %v1831
  %1833 = vdwg.mxu0
  %v1834 = vadd.f32 %v728, %v1830
  %v1835 = vadd.f32 %v729, %v1832
  %1836 = vst.msk [vmem:[%s22] sm:$0xff] %vm87, %v1834
  %1837 = vst.msk [vmem:[%s22 + $0x8] sm:$0xff] %vm87, %v1835
  %1840 = vrot.lane.b32.xlu0 %v1834, 64
  %v1841 = vpop.permute.xlu0 %1840
  %1842 = vrot.lane.b32.xlu0 %v1835, 64
  %v1843 = vpop.permute.xlu0 %1842
  %s1846 = scalar_lea.vmem %s22, 16
  %1847 = vst.msk [vmem:[%s1846] sm:$0xff] %vm87, %v1841
  %1848 = vst.msk [vmem:[%s1846 + $0x8] sm:$0xff] %vm87, %v1843
  // Predicated region
  $region90: #{transformer_block_forward.3} parent=0 // pred_check
    _
  $region91: #{transformer_block_forward.3} parent=0 // pred_check_branch
    %1850 = sbr.rel (0) target = $region93
  $region92: #{transformer_block_forward.3} parent=0 // pred_region
    _
  $region93: #{transformer_block_forward.3} parent=0 // pred_fallthru
    _
  // Predicated region
  $region94: #{transformer_block_forward.3} parent=0 // pred_check
    _
  $region95: #{transformer_block_forward.3} parent=0 // pred_check_branch
    %1852 = sbr.rel (0) target = $region97
  $region96: #{transformer_block_forward.3} parent=0 // pred_region
    _
  $region97: #{transformer_block_forward.3} parent=0 // pred_fallthru
    _
  // Predicated region
  $region98: #{transformer_block_forward.3} parent=0 // pred_check
    _
  $region99: #{transformer_block_forward.3} parent=0 // pred_check_branch
    %1854 = sbr.rel (0) target = $region101
  $region100: #{transformer_block_forward.3} parent=0 // pred_region
    _
  $region101: #{transformer_block_forward.3} parent=0 // pred_fallthru
    _
  // Predicated region
  $region102: #{transformer_block_forward.3} parent=0 // pred_check
    _
  $region103: #{transformer_block_forward.3} parent=0 // pred_check_branch
    %1856 = sbr.rel (0) target = $region105
  $region104: #{transformer_block_forward.3} parent=0 // pred_region
    _
  $region105: #{transformer_block_forward.3} parent=0 // pred_fallthru
    _

</llo_original>
